<compile_context>
chip_gen: v7x
topology: tpu7x:2x2x1
jax: 0.10.0
libtpu: 0.0.40
codegen_flags: <defaults>
</compile_context>

<pallas_src>
import functools

import jax
import jax.numpy as jnp
from jax import lax
from jax.experimental import pallas as pl
from jax.experimental.pallas import tpu as pltpu

BN_EPS = 1e-5  # PyTorch BatchNorm1d default eps; track_running_stats=False -> batch stats


# ----------------------------- small helpers -----------------------------

def _vmem():
    return pl.BlockSpec(memory_space=pltpu.MemorySpace.VMEM)


def _round_up(v, m):
    return (v + m - 1) // m * m


def _pad2(a, r, c):
    return jnp.pad(a, ((0, r - a.shape[0]), (0, c - a.shape[1])))


# ----------------------------- in-kernel math -----------------------------

def _row_mask(num_rows, n_valid):
    rows = lax.broadcasted_iota(jnp.int32, (num_rows, 1), 0)
    return (rows < n_valid).astype(jnp.float32)


def _node_bn(z, mask, inv_n, gamma, beta):
    # BatchNorm1d over the valid node rows (biased variance, batch statistics).
    mean = jnp.sum(z * mask, axis=0, keepdims=True) * inv_n
    d = z - mean
    var = jnp.sum(d * d * mask, axis=0, keepdims=True) * inv_n
    return d * lax.rsqrt(var + BN_EPS) * gamma + beta


def _group_bn(t, smean, sbcast, gamma, beta):
    # Per-virtual-node BatchNorm over the batch dim. Rows of t are ordered (b, v);
    # smean [V, B*V] averages the rows of each v; sbcast [B*V, V] broadcasts back.
    # (Equivalent to PyTorch BN over the flattened [B, V*F] view, which factorizes per vn.)
    mean = jnp.dot(sbcast, jnp.dot(smean, t, preferred_element_type=jnp.float32),
                   preferred_element_type=jnp.float32)
    d = t - mean
    var = jnp.dot(sbcast, jnp.dot(smean, d * d, preferred_element_type=jnp.float32),
                  preferred_element_type=jnp.float32)
    return d * lax.rsqrt(var + BN_EPS) * gamma + beta


def _gin_bn_block(h, adj, cw1, cb1, cg, cbe, cw2, cb2, bg, bb, mask, inv_n, relu_out):
    # GINConv (eps=0, edge_attr=None): mlp(h + A @ h), mlp = Lin -> BN -> ReLU -> Lin,
    # followed by the encoder-level BatchNorm (+ optional ReLU). Dropout is identity (eval).
    agg = jnp.dot(adj, h, preferred_element_type=jnp.float32)
    z = h + agg
    t = jnp.dot(z, cw1, preferred_element_type=jnp.float32) + cb1
    t = jnp.maximum(_node_bn(t, mask, inv_n, cg, cbe), 0.0)
    t = jnp.dot(t, cw2, preferred_element_type=jnp.float32) + cb2
    t = _node_bn(t, mask, inv_n, bg, bb)
    if relu_out:
        t = jnp.maximum(t, 0.0)
    return t * mask          # keep zero-padded node rows exactly zero


# ----------------------------- Pallas kernels -----------------------------

def _prologue_kernel(x_ref, lw_ref, lb_ref, m_ref, vnf_ref,
                     h_out_ref, vt_out_ref, *, n_valid):
    mask = _row_mask(x_ref.shape[0], n_valid)
    h0 = (jnp.dot(x_ref[...], lw_ref[...], preferred_element_type=jnp.float32)
          + lb_ref[...]) * mask
    vnf = vnf_ref[...]
    # vn_embedding_temp = global_add_pool(score ⊙ h0) + vn_embedding   ( == M @ h0 + vn )
    vt_out_ref[...] = jnp.dot(m_ref[...], h0, preferred_element_type=jnp.float32) + vnf
    # h0 += score @ vn_embedding[batch]   ( == M^T @ vn, contracted in-kernel, no HBM transpose )
    h_out_ref[...] = h0 + lax.dot_general(
        m_ref[...], vnf, (((0,), (0,)), ((), ())), preferred_element_type=jnp.float32)


def _layer_vn_kernel(h_ref, adj_ref, m_ref,
                     cw1_ref, cb1_ref, cg_ref, cbe_ref, cw2_ref, cb2_ref,
                     bg_ref, bb_ref,
                     vt_ref, mw1_ref, mb1_ref, mg1_ref, mbe1_ref,
                     mw2_ref, mb2_ref, mg2_ref, mbe2_ref,
                     sm_ref, sb_ref,
                     h_out_ref, vt_out_ref, *, n_valid, relu_out):
    mask = _row_mask(h_ref.shape[0], n_valid)
    inv_n = 1.0 / float(n_valid)

    # --- GINConv + encoder BN (+ReLU) ---
    h = _gin_bn_block(h_ref[...], adj_ref[...],
                      cw1_ref[...], cb1_ref[...], cg_ref[...], cbe_ref[...],
                      cw2_ref[...], cb2_ref[...], bg_ref[...], bb_ref[...],
                      mask, inv_n, relu_out)

    # --- MLPVirtual on vn_temp (dropout identity in eval) ---
    sm, sb = sm_ref[...], sb_ref[...]
    u = jnp.dot(vt_ref[...], mw1_ref[...], preferred_element_type=jnp.float32) + mb1_ref[...]
    u = jnp.maximum(_group_bn(u, sm, sb, mg1_ref[...], mbe1_ref[...]), 0.0)
    u = jnp.dot(u, mw2_ref[...], preferred_element_type=jnp.float32) + mb2_ref[...]
    vn_emb = jnp.maximum(_group_bn(u, sm, sb, mg2_ref[...], mbe2_ref[...]), 0.0)   # [B*V, Dp]

    m = m_ref[...]
    # next vn_embedding_temp = global_add_pool(score ⊙ h) + vn_emb
    vt_out_ref[...] = jnp.dot(m, h, preferred_element_type=jnp.float32) + vn_emb
    # h += score @ vn_emb[batch]   ( == M^T @ vn_emb )
    h_out_ref[...] = h + lax.dot_general(
        m, vn_emb, (((0,), (0,)), ((), ())), preferred_element_type=jnp.float32)


def _layer_kernel(h_ref, adj_ref,
                  cw1_ref, cb1_ref, cg_ref, cbe_ref, cw2_ref, cb2_ref,
                  bg_ref, bb_ref, h_out_ref, *, n_valid, relu_out):
    mask = _row_mask(h_ref.shape[0], n_valid)
    inv_n = 1.0 / float(n_valid)
    h_out_ref[...] = _gin_bn_block(h_ref[...], adj_ref[...],
                                   cw1_ref[...], cb1_ref[...], cg_ref[...], cbe_ref[...],
                                   cw2_ref[...], cb2_ref[...], bg_ref[...], bb_ref[...],
                                   mask, inv_n, relu_out)


# ----------------------------- forward pass -----------------------------

def vgin_encoder_forward(params, x, edge_index, batch, vn, score, *, batch_size):
    # eval mode: dropout(p=0.5) is identity; GINConv eps = 0; edge_attr = None.
    N, C = x.shape
    V, D = vn.shape
    B = batch_size
    BV = B * V
    Np = _round_up(N, 8)            # sublane alignment for node rows
    Cp = _round_up(C, 128)          # lane-dense feature dims (128 lanes)
    Dp = _round_up(D, 128)
    Hp = _round_up(2 * D, 128)
    f32 = jnp.float32

    # dense adjacency: A[i, j] = #edges j -> i  (messages add-aggregated at targets)
    src, dst = edge_index[0], edge_index[1]
    adj = jnp.zeros((Np, Np), f32).at[dst, src].add(1.0)

    # M[(b,v), i] = 1[batch[i]==b] * score[i, v]  — graph membership fused with vn scores
    P = (jnp.arange(B)[:, None] == batch[None, :]).astype(f32)                 # [B, N]
    M = (P[:, None, :] * jnp.transpose(score)[None, :, :]).reshape(BV, N)      # [B*V, N]
    M = _pad2(M, BV, Np)

    # initial virtual-node embedding (broadcast over batch), flat rows ordered (b, v)
    vn_flat = _pad2(jnp.broadcast_to(vn[None], (B, V, D)).reshape(BV, D), BV, Dp)

    # one-hot selection matrices for per-vn BatchNorm statistics
    vid = jnp.arange(BV) % V
    smean = (jnp.arange(V)[:, None] == vid[None, :]).astype(f32) / B           # [V, B*V]
    sbcast = (vid[:, None] == jnp.arange(V)[None, :]).astype(f32)              # [B*V, V]

    xp = _pad2(x, Np, Cp)

    # ---- zero-padded parameters (padded lanes stay exactly zero through the net) ----
    lw = _pad2(params['lin_w'], Cp, Dp)
    lb = _pad2(params['lin_b'].reshape(1, -1), 1, Dp)

    def conv_pack(p):
        return (_pad2(p['w1'], Dp, Hp), _pad2(p['b1'].reshape(1, -1), 1, Hp),
                _pad2(p['g'].reshape(1, -1), 1, Hp), _pad2(p['be'].reshape(1, -1), 1, Hp),
                _pad2(p['w2'], Hp, Dp), _pad2(p['b2'].reshape(1, -1), 1, Dp))

    def bn_pack(g, b):
        return (_pad2(g.reshape(1, -1), 1, Dp), _pad2(b.reshape(1, -1), 1, Dp))

    def mlp_pack(p):
        # PyTorch BN over flattened [B, V*F]: gamma/beta index = v*F + f  -> tile to (b, v) rows
        g1 = jnp.tile(_pad2(p['g1'].reshape(V, 2 * D), V, Hp), (B, 1))
        be1 = jnp.tile(_pad2(p['be1'].reshape(V, 2 * D), V, Hp), (B, 1))
        g2 = jnp.tile(_pad2(p['g2'].reshape(V, D), V, Dp), (B, 1))
        be2 = jnp.tile(_pad2(p['be2'].reshape(V, D), V, Dp), (B, 1))
        return (_pad2(p['w1'], Dp, Hp), _pad2(p['b1'].reshape(1, -1), 1, Hp), g1, be1,
                _pad2(p['w2'], Hp, Dp), _pad2(p['b2'].reshape(1, -1), 1, Dp), g2, be2)

    h_shape = jax.ShapeDtypeStruct((Np, Dp), f32)
    vt_shape = jax.ShapeDtypeStruct((BV, Dp), f32)

    # ---- prologue: input Linear + initial vn interaction (1 fused kernel) ----
    h, vt = pl.pallas_call(
        functools.partial(_prologue_kernel, n_valid=N),
        out_shape=(h_shape, vt_shape),
        in_specs=[_vmem()] * 5,
        out_specs=(_vmem(), _vmem()),
    )(xp, lw, lb, M, vn_flat)

    def fused_layer_vn(h_in, vt_in, conv_p, bn_p, mlp_p, relu_out):
        return pl.pallas_call(
            functools.partial(_layer_vn_kernel, n_valid=N, relu_out=relu_out),
            out_shape=(h_shape, vt_shape),
            in_specs=[_vmem()] * 22,
            out_specs=(_vmem(), _vmem()),
        )(h_in, adj, M, *conv_p, *bn_p, vt_in, *mlp_p, smean, sbcast)

    def fused_layer(h_in, conv_p, bn_p, relu_out):
        return pl.pallas_call(
            functools.partial(_layer_kernel, n_valid=N, relu_out=relu_out),
            out_shape=h_shape,
            in_specs=[_vmem()] * 10,
            out_specs=_vmem(),
        )(h_in, adj, *conv_p, *bn_p)

    # --- layer 1: conv1 + bn1 + relu + mlp1(vn) + pool + vn residual ---
    h, vt = fused_layer_vn(h, vt, conv_pack(params['conv1']),
                           bn_pack(params['bn1_g'], params['bn1_b']),
                           mlp_pack(params['mlp1']), relu_out=True)
    # --- layer 2: conv2 + bn2 + relu + mlp2(vn) + vn residual (pool output unused) ---
    h, _ = fused_layer_vn(h, vt, conv_pack(params['conv2']),
                          bn_pack(params['bn2_g'], params['bn2_b']),
                          mlp_pack(params['mlp2']), relu_out=True)
    # --- layer 3: conv3 + bn3 (no relu, no vn) ---
    h = fused_layer(h, conv_pack(params['conv3']),
                    bn_pack(params['bn3_g'], params['bn3_b']), relu_out=False)

    return h[:N, :D]


# ----------------------------- pure-JAX reference -----------------------------

def _bn_ref(x, g, b):
    mean = x.mean(0, keepdims=True)
    var = ((x - mean) ** 2).mean(0, keepdims=True)
    return (x - mean) * lax.rsqrt(var + BN_EPS) * g + b


def reference_forward(params, x, edge_index, batch, vn, score, *, batch_size):
    N = x.shape[0]
    V, D = vn.shape
    B = batch_size
    src, dst = edge_index[0], edge_index[1]
    adj = jnp.zeros((N, N), jnp.float32).at[dst, src].add(1.0)
    P = (jnp.arange(B)[:, None] == batch[None, :]).astype(jnp.float32)
    M = (P[:, None, :] * jnp.transpose(score)[None, :, :]).reshape(B * V, N)

    def gin(h, p):
        z = h + adj @ h
        t = z @ p['w1'] + p['b1']
        t = jnp.maximum(_bn_ref(t, p['g'], p['be']), 0.0)
        return t @ p['w2'] + p['b2']

    def mlpv(x3, p):
        b_, v_, d_ = x3.shape
        t = x3 @ p['w1'] + p['b1']
        t = _bn_ref(t.reshape(b_, -1), p['g1'], p['be1']).reshape(b_, v_, 2 * d_)
        t = jnp.maximum(t, 0.0)
        t = t @ p['w2'] + p['b2']
        t = _bn_ref(t.reshape(b_, -1), p['g2'], p['be2']).reshape(b_, v_, d_)
        return jnp.maximum(t, 0.0)

    vn_emb = jnp.broadcast_to(vn[None], (B, V, D))
    h0 = x @ params['lin_w'] + params['lin_b']
    vt = (M @ h0).reshape(B, V, D) + vn_emb
    h0 = h0 + M.T @ vn_emb.reshape(B * V, D)

    h1 = jnp.maximum(_bn_ref(gin(h0, params['conv1']), params['bn1_g'], params['bn1_b']), 0.0)
    vn_emb = mlpv(vt, params['mlp1'])
    vt = (M @ h1).reshape(B, V, D) + vn_emb
    h1 = h1 + M.T @ vn_emb.reshape(B * V, D)

    h2 = jnp.maximum(_bn_ref(gin(h1, params['conv2']), params['bn2_g'], params['bn2_b']), 0.0)
    vn_emb = mlpv(vt, params['mlp2'])
    h2 = h2 + M.T @ vn_emb.reshape(B * V, D)

    return _bn_ref(gin(h2, params['conv3']), params['bn3_g'], params['bn3_b'])


# ----------------------------- parameter init -----------------------------

def init_params(key, in_channels, emb_dim, num_vn):
    keys = iter(jax.random.split(key, 64))

    def lin(fan_in, fan_out):
        kw, kb = jax.random.split(next(keys))
        bound = 1.0 / float(fan_in) ** 0.5
        w = jax.random.uniform(kw, (fan_in, fan_out), jnp.float32, -bound, bound)
        b = jax.random.uniform(kb, (fan_out,), jnp.float32, -bound, bound)
        return w, b

    def bn(feat):
        kg, kb = jax.random.split(next(keys))
        g = jax.random.uniform(kg, (feat,), jnp.float32, 0.5, 1.5)
        b = jax.random.uniform(kb, (feat,), jnp.float32, -0.1, 0.1)
        return g, b

    D, V = emb_dim, num_vn
    params = {}
    params['lin_w'], params['lin_b'] = lin(in_channels, D)
    for i in (1, 2, 3):
        w1, b1 = lin(D, 2 * D)
        g, be = bn(2 * D)
        w2, b2 = lin(2 * D, D)
        params[f'conv{i}'] = dict(w1=w1, b1=b1, g=g, be=be, w2=w2, b2=b2)
        params[f'bn{i}_g'], params[f'bn{i}_b'] = bn(D)
    for i in (1, 2):
        w1, b1 = lin(D, 2 * D)
        w2, b2 = lin(2 * D, D)
        g1, be1 = bn(2 * V * D)
        g2, be2 = bn(V * D)
        params[f'mlp{i}'] = dict(w1=w1, b1=b1, w2=w2, b2=b2,
                                 g1=g1, be1=be1, g2=g2, be2=be2)
    return params


# ----------------------------- main -----------------------------

if __name__ == "__main__":
    N, E = 32, 64
    in_channels, emb_dim, num_vn, batch_size = 16, 32, 4, 2

    key = jax.random.PRNGKey(0)
    k1, k2, k3, k4, kp = jax.random.split(key, 5)

    x = jax.random.normal(k1, (N, in_channels), jnp.float32)
    edge_index = jax.random.randint(k2, (2, E), 0, N, dtype=jnp.int32)
    batch = jnp.repeat(jnp.arange(batch_size, dtype=jnp.int32), N // batch_size)
    vn = jax.random.normal(k3, (num_vn, emb_dim), jnp.float32)
    score = jax.nn.softmax(jax.random.normal(k4, (N, num_vn), jnp.float32), axis=-1)

    params = init_params(kp, in_channels, emb_dim, num_vn)

    fwd = jax.jit(functools.partial(vgin_encoder_forward, batch_size=batch_size))
    out = jax.block_until_ready(fwd(params, x, edge_index, batch, vn, score))

    assert out.shape == (N, emb_dim) and out.dtype == jnp.float32
    assert bool(jnp.all(jnp.isfinite(out)))

    # semantic check against a pure-JAX reference (loose tolerance: MXU matmul precision
    # inside Pallas may differ slightly from XLA's default f32 matmul path)
    ref = reference_forward(params, x, edge_index, batch, vn, score, batch_size=batch_size)
    err = float(jnp.max(jnp.abs(out - ref)) / (jnp.max(jnp.abs(ref)) + 1e-6))
    assert err < 5e-2, f"mismatch vs reference: rel-max err {err:.3e}"

    print("KERNEL_OK")
</pallas_src>

<mosaic_0001>
module attributes {stable_mosaic.version = 11 : i64} {
  func.func private @main(%arg0: i32) attributes {dimension_semantics = [#tpu.dimension_semantics<core_parallel>], iteration_bounds = array<i64: 2>, tpu.core_type = #tpu.core_type<sc_scalar_subcore>, window_params = []} {
    return
  }
}

module attributes {stable_mosaic.version = 11 : i64} {
  func.func private @main(%arg0: i32) attributes {dimension_semantics = [#tpu.dimension_semantics<core_parallel>], iteration_bounds = array<i64: 2>, tpu.core_type = #tpu.core_type<sc_scalar_subcore>, window_params = []} {
    return
  }
}

module attributes {stable_mosaic.version = 11 : i64} {
  func.func @_prologue_kernel(%arg0: memref<32x128xf32, #tpu.memory_space<vmem>>, %arg1: memref<128x128xf32, #tpu.memory_space<vmem>>, %arg2: memref<1x128xf32, #tpu.memory_space<vmem>>, %arg3: memref<8x32xf32, #tpu.memory_space<vmem>>, %arg4: memref<8x128xf32, #tpu.memory_space<vmem>>, %arg5: memref<32x128xf32, #tpu.memory_space<vmem>>, %arg6: memref<8x128xf32, #tpu.memory_space<vmem>>) attributes {dimension_semantics = [], scalar_prefetch = 0 : i64, scratch_operands = 0 : i64, tpu.core_type = #tpu.core_type<tc>} {
    %0 = tpu.iota {dimensions = array<i32: 0>} : vector<32x1xi32>
    %c32_i32 = arith.constant 32 : i32
    %1 = vector.broadcast %c32_i32 : i32 to vector<32x1xi32>
    %2 = arith.cmpi slt, %0, %1 : vector<32x1xi32>
    %3 = arith.extui %2 : vector<32x1xi1> to vector<32x1xi32>
    %4 = arith.sitofp %3 : vector<32x1xi32> to vector<32x1xf32>
    %c0 = arith.constant 0 : index
    %c0_0 = arith.constant 0 : index
    %5 = vector.load %arg0[%c0, %c0_0] : memref<32x128xf32, #tpu.memory_space<vmem>>, vector<32x128xf32>
    %c0_1 = arith.constant 0 : index
    %c0_2 = arith.constant 0 : index
    %6 = vector.load %arg1[%c0_1, %c0_2] : memref<128x128xf32, #tpu.memory_space<vmem>>, vector<128x128xf32>
    %cst = arith.constant dense<0.000000e+00> : vector<32x128xf32>
    %7 = tpu.matmul %5, %6, %cst {dimension_numbers = #tpu.dot_dimension_numbers<[1], [0], [0], [1], [0, 0, 1, 1], [], []>} : vector<32x128xf32>, vector<128x128xf32>, vector<32x128xf32> -> vector<32x128xf32>
    %c0_3 = arith.constant 0 : index
    %c0_4 = arith.constant 0 : index
    %8 = vector.load %arg2[%c0_3, %c0_4] : memref<1x128xf32, #tpu.memory_space<vmem>>, vector<1x128xf32>
    %9 = vector.broadcast %8 : vector<1x128xf32> to vector<32x128xf32>
    %10 = arith.addf %7, %9 : vector<32x128xf32>
    %11 = vector.broadcast %4 : vector<32x1xf32> to vector<32x128xf32>
    %12 = arith.mulf %10, %11 : vector<32x128xf32>
    %c0_5 = arith.constant 0 : index
    %c0_6 = arith.constant 0 : index
    %13 = vector.load %arg4[%c0_5, %c0_6] : memref<8x128xf32, #tpu.memory_space<vmem>>, vector<8x128xf32>
    %c0_7 = arith.constant 0 : index
    %c0_8 = arith.constant 0 : index
    %14 = vector.load %arg3[%c0_7, %c0_8] : memref<8x32xf32, #tpu.memory_space<vmem>>, vector<8x32xf32>
    %cst_9 = arith.constant dense<0.000000e+00> : vector<8x128xf32>
    %15 = tpu.matmul %14, %12, %cst_9 {dimension_numbers = #tpu.dot_dimension_numbers<[1], [0], [0], [1], [0, 0, 1, 1], [], []>} : vector<8x32xf32>, vector<32x128xf32>, vector<8x128xf32> -> vector<8x128xf32>
    %16 = arith.addf %15, %13 : vector<8x128xf32>
    %c0_10 = arith.constant 0 : index
    %c0_11 = arith.constant 0 : index
    %17 = vector.load %arg6[%c0_10, %c0_11] : memref<8x128xf32, #tpu.memory_space<vmem>>, vector<8x128xf32>
    tpu.vector_store %arg6[%c0_10, %c0_11], %16 {strides = array<i32>} : memref<8x128xf32, #tpu.memory_space<vmem>>, vector<8x128xf32>,
    %c0_12 = arith.constant 0 : index
    %c0_13 = arith.constant 0 : index
    %18 = vector.load %arg3[%c0_12, %c0_13] : memref<8x32xf32, #tpu.memory_space<vmem>>, vector<8x32xf32>
    %cst_14 = arith.constant dense<0.000000e+00> : vector<32x128xf32>
    %19 = tpu.matmul %18, %13, %cst_14 {dimension_numbers = #tpu.dot_dimension_numbers<[0], [0], [1], [1], [0, 1, 1, 1], [], []>} : vector<8x32xf32>, vector<8x128xf32>, vector<32x128xf32> -> vector<32x128xf32>
    %20 = arith.addf %12, %19 : vector<32x128xf32>
    %c0_15 = arith.constant 0 : index
    %c0_16 = arith.constant 0 : index
    %21 = vector.load %arg5[%c0_15, %c0_16] : memref<32x128xf32, #tpu.memory_space<vmem>>, vector<32x128xf32>
    tpu.vector_store %arg5[%c0_15, %c0_16], %20 {strides = array<i32>} : memref<32x128xf32, #tpu.memory_space<vmem>>, vector<32x128xf32>,
    return
  }
}

module attributes {stable_mosaic.version = 11 : i64} {
  func.func @_layer_kernel(%arg0: memref<32x128xf32, #tpu.memory_space<vmem>>, %arg1: memref<32x32xf32, #tpu.memory_space<vmem>>, %arg2: memref<128x128xf32, #tpu.memory_space<vmem>>, %arg3: memref<1x128xf32, #tpu.memory_space<vmem>>, %arg4: memref<1x128xf32, #tpu.memory_space<vmem>>, %arg5: memref<1x128xf32, #tpu.memory_space<vmem>>, %arg6: memref<128x128xf32, #tpu.memory_space<vmem>>, %arg7: memref<1x128xf32, #tpu.memory_space<vmem>>, %arg8: memref<1x128xf32, #tpu.memory_space<vmem>>, %arg9: memref<1x128xf32, #tpu.memory_space<vmem>>, %arg10: memref<32x128xf32, #tpu.memory_space<vmem>>) attributes {dimension_semantics = [], scalar_prefetch = 0 : i64, scratch_operands = 0 : i64, tpu.core_type = #tpu.core_type<tc>} {
    %0 = tpu.iota {dimensions = array<i32: 0>} : vector<32x1xi32>
    %c32_i32 = arith.constant 32 : i32
    %1 = vector.broadcast %c32_i32 : i32 to vector<32x1xi32>
    %2 = arith.cmpi slt, %0, %1 : vector<32x1xi32>
    %3 = arith.extui %2 : vector<32x1xi1> to vector<32x1xi32>
    %4 = arith.sitofp %3 : vector<32x1xi32> to vector<32x1xf32>
    %c0 = arith.constant 0 : index
    %c0_0 = arith.constant 0 : index
    %5 = vector.load %arg0[%c0, %c0_0] : memref<32x128xf32, #tpu.memory_space<vmem>>, vector<32x128xf32>
    %c0_1 = arith.constant 0 : index
    %c0_2 = arith.constant 0 : index
    %6 = vector.load %arg1[%c0_1, %c0_2] : memref<32x32xf32, #tpu.memory_space<vmem>>, vector<32x32xf32>
    %c0_3 = arith.constant 0 : index
    %c0_4 = arith.constant 0 : index
    %7 = vector.load %arg2[%c0_3, %c0_4] : memref<128x128xf32, #tpu.memory_space<vmem>>, vector<128x128xf32>
    %c0_5 = arith.constant 0 : index
    %c0_6 = arith.constant 0 : index
    %8 = vector.load %arg3[%c0_5, %c0_6] : memref<1x128xf32, #tpu.memory_space<vmem>>, vector<1x128xf32>
    %c0_7 = arith.constant 0 : index
    %c0_8 = arith.constant 0 : index
    %9 = vector.load %arg4[%c0_7, %c0_8] : memref<1x128xf32, #tpu.memory_space<vmem>>, vector<1x128xf32>
    %c0_9 = arith.constant 0 : index
    %c0_10 = arith.constant 0 : index
    %10 = vector.load %arg5[%c0_9, %c0_10] : memref<1x128xf32, #tpu.memory_space<vmem>>, vector<1x128xf32>
    %c0_11 = arith.constant 0 : index
    %c0_12 = arith.constant 0 : index
    %11 = vector.load %arg6[%c0_11, %c0_12] : memref<128x128xf32, #tpu.memory_space<vmem>>, vector<128x128xf32>
    %c0_13 = arith.constant 0 : index
    %c0_14 = arith.constant 0 : index
    %12 = vector.load %arg7[%c0_13, %c0_14] : memref<1x128xf32, #tpu.memory_space<vmem>>, vector<1x128xf32>
    %c0_15 = arith.constant 0 : index
    %c0_16 = arith.constant 0 : index
    %13 = vector.load %arg8[%c0_15, %c0_16] : memref<1x128xf32, #tpu.memory_space<vmem>>, vector<1x128xf32>
    %c0_17 = arith.constant 0 : index
    %c0_18 = arith.constant 0 : index
    %14 = vector.load %arg9[%c0_17, %c0_18] : memref<1x128xf32, #tpu.memory_space<vmem>>, vector<1x128xf32>
    %cst = arith.constant dense<0.000000e+00> : vector<32x128xf32>
    %15 = tpu.matmul %6, %5, %cst {dimension_numbers = #tpu.dot_dimension_numbers<[1], [0], [0], [1], [0, 0, 1, 1], [], []>} : vector<32x32xf32>, vector<32x128xf32>, vector<32x128xf32> -> vector<32x128xf32>
    %16 = arith.addf %5, %15 : vector<32x128xf32>
    %cst_19 = arith.constant dense<0.000000e+00> : vector<32x128xf32>
    %17 = tpu.matmul %16, %7, %cst_19 {dimension_numbers = #tpu.dot_dimension_numbers<[1], [0], [0], [1], [0, 0, 1, 1], [], []>} : vector<32x128xf32>, vector<128x128xf32>, vector<32x128xf32> -> vector<32x128xf32>
    %18 = vector.broadcast %8 : vector<1x128xf32> to vector<32x128xf32>
    %19 = arith.addf %17, %18 : vector<32x128xf32>
    %20 = vector.broadcast %4 : vector<32x1xf32> to vector<32x128xf32>
    %21 = arith.mulf %19, %20 : vector<32x128xf32>
    %cst_20 = arith.constant dense<0.000000e+00> : vector<128xf32>
    %22 = vector.multi_reduction <add>, %21, %cst_20 [0] : vector<32x128xf32> to vector<128xf32>
    %23 = vector.shape_cast %22 : vector<128xf32> to vector<1x128xf32>
    %cst_21 = arith.constant 3.125000e-02 : f32
    %24 = vector.broadcast %cst_21 : f32 to vector<1x128xf32>
    %25 = arith.mulf %23, %24 : vector<1x128xf32>
    %26 = vector.broadcast %25 : vector<1x128xf32> to vector<32x128xf32>
    %27 = arith.subf %19, %26 : vector<32x128xf32>
    %28 = arith.mulf %27, %27 : vector<32x128xf32>
    %29 = vector.broadcast %4 : vector<32x1xf32> to vector<32x128xf32>
    %30 = arith.mulf %28, %29 : vector<32x128xf32>
    %cst_22 = arith.constant dense<0.000000e+00> : vector<128xf32>
    %31 = vector.multi_reduction <add>, %30, %cst_22 [0] : vector<32x128xf32> to vector<128xf32>
    %32 = vector.shape_cast %31 : vector<128xf32> to vector<1x128xf32>
    %cst_23 = arith.constant 3.125000e-02 : f32
    %33 = vector.broadcast %cst_23 : f32 to vector<1x128xf32>
    %34 = arith.mulf %32, %33 : vector<1x128xf32>
    %cst_24 = arith.constant 9.99999974E-6 : f32
    %35 = vector.broadcast %cst_24 : f32 to vector<1x128xf32>
    %36 = arith.addf %34, %35 : vector<1x128xf32>
    %37 = math.rsqrt %36 : vector<1x128xf32>
    %38 = vector.broadcast %37 : vector<1x128xf32> to vector<32x128xf32>
    %39 = arith.mulf %27, %38 : vector<32x128xf32>
    %40 = vector.broadcast %9 : vector<1x128xf32> to vector<32x128xf32>
    %41 = arith.mulf %39, %40 : vector<32x128xf32>
    %42 = vector.broadcast %10 : vector<1x128xf32> to vector<32x128xf32>
    %43 = arith.addf %41, %42 : vector<32x128xf32>
    %cst_25 = arith.constant 0.000000e+00 : f32
    %44 = vector.broadcast %cst_25 : f32 to vector<32x128xf32>
    %45 = arith.maximumf %43, %44 : vector<32x128xf32>
    %cst_26 = arith.constant dense<0.000000e+00> : vector<32x128xf32>
    %46 = tpu.matmul %45, %11, %cst_26 {dimension_numbers = #tpu.dot_dimension_numbers<[1], [0], [0], [1], [0, 0, 1, 1], [], []>} : vector<32x128xf32>, vector<128x128xf32>, vector<32x128xf32> -> vector<32x128xf32>
    %47 = vector.broadcast %12 : vector<1x128xf32> to vector<32x128xf32>
    %48 = arith.addf %46, %47 : vector<32x128xf32>
    %49 = vector.broadcast %4 : vector<32x1xf32> to vector<32x128xf32>
    %50 = arith.mulf %48, %49 : vector<32x128xf32>
    %cst_27 = arith.constant dense<0.000000e+00> : vector<128xf32>
    %51 = vector.multi_reduction <add>, %50, %cst_27 [0] : vector<32x128xf32> to vector<128xf32>
    %52 = vector.shape_cast %51 : vector<128xf32> to vector<1x128xf32>
    %cst_28 = arith.constant 3.125000e-02 : f32
    %53 = vector.broadcast %cst_28 : f32 to vector<1x128xf32>
    %54 = arith.mulf %52, %53 : vector<1x128xf32>
    %55 = vector.broadcast %54 : vector<1x128xf32> to vector<32x128xf32>
    %56 = arith.subf %48, %55 : vector<32x128xf32>
    %57 = arith.mulf %56, %56 : vector<32x128xf32>
    %58 = vector.broadcast %4 : vector<32x1xf32> to vector<32x128xf32>
    %59 = arith.mulf %57, %58 : vector<32x128xf32>
    %cst_29 = arith.constant dense<0.000000e+00> : vector<128xf32>
    %60 = vector.multi_reduction <add>, %59, %cst_29 [0] : vector<32x128xf32> to vector<128xf32>
    %61 = vector.shape_cast %60 : vector<128xf32> to vector<1x128xf32>
    %cst_30 = arith.constant 3.125000e-02 : f32
    %62 = vector.broadcast %cst_30 : f32 to vector<1x128xf32>
    %63 = arith.mulf %61, %62 : vector<1x128xf32>
    %cst_31 = arith.constant 9.99999974E-6 : f32
    %64 = vector.broadcast %cst_31 : f32 to vector<1x128xf32>
    %65 = arith.addf %63, %64 : vector<1x128xf32>
    %66 = math.rsqrt %65 : vector<1x128xf32>
    %67 = vector.broadcast %66 : vector<1x128xf32> to vector<32x128xf32>
    %68 = arith.mulf %56, %67 : vector<32x128xf32>
    %69 = vector.broadcast %13 : vector<1x128xf32> to vector<32x128xf32>
    %70 = arith.mulf %68, %69 : vector<32x128xf32>
    %71 = vector.broadcast %14 : vector<1x128xf32> to vector<32x128xf32>
    %72 = arith.addf %70, %71 : vector<32x128xf32>
    %73 = vector.broadcast %4 : vector<32x1xf32> to vector<32x128xf32>
    %74 = arith.mulf %72, %73 : vector<32x128xf32>
    %c0_32 = arith.constant 0 : index
    %c0_33 = arith.constant 0 : index
    %75 = vector.load %arg10[%c0_32, %c0_33] : memref<32x128xf32, #tpu.memory_space<vmem>>, vector<32x128xf32>
    tpu.vector_store %arg10[%c0_32, %c0_33], %74 {strides = array<i32>} : memref<32x128xf32, #tpu.memory_space<vmem>>, vector<32x128xf32>,
    return
  }
}

module attributes {stable_mosaic.version = 11 : i64} {
  func.func @_layer_vn_kernel(%arg0: memref<32x128xf32, #tpu.memory_space<vmem>>, %arg1: memref<32x32xf32, #tpu.memory_space<vmem>>, %arg2: memref<8x32xf32, #tpu.memory_space<vmem>>, %arg3: memref<128x128xf32, #tpu.memory_space<vmem>>, %arg4: memref<1x128xf32, #tpu.memory_space<vmem>>, %arg5: memref<1x128xf32, #tpu.memory_space<vmem>>, %arg6: memref<1x128xf32, #tpu.memory_space<vmem>>, %arg7: memref<128x128xf32, #tpu.memory_space<vmem>>, %arg8: memref<1x128xf32, #tpu.memory_space<vmem>>, %arg9: memref<1x128xf32, #tpu.memory_space<vmem>>, %arg10: memref<1x128xf32, #tpu.memory_space<vmem>>, %arg11: memref<8x128xf32, #tpu.memory_space<vmem>>, %arg12: memref<128x128xf32, #tpu.memory_space<vmem>>, %arg13: memref<1x128xf32, #tpu.memory_space<vmem>>, %arg14: memref<8x128xf32, #tpu.memory_space<vmem>>, %arg15: memref<8x128xf32, #tpu.memory_space<vmem>>, %arg16: memref<128x128xf32, #tpu.memory_space<vmem>>, %arg17: memref<1x128xf32, #tpu.memory_space<vmem>>, %arg18: memref<8x128xf32, #tpu.memory_space<vmem>>, %arg19: memref<8x128xf32, #tpu.memory_space<vmem>>, %arg20: memref<4x8xf32, #tpu.memory_space<vmem>>, %arg21: memref<8x4xf32, #tpu.memory_space<vmem>>, %arg22: memref<32x128xf32, #tpu.memory_space<vmem>>, %arg23: memref<8x128xf32, #tpu.memory_space<vmem>>) attributes {dimension_semantics = [], scalar_prefetch = 0 : i64, scratch_operands = 0 : i64, tpu.core_type = #tpu.core_type<tc>} {
    %0 = tpu.iota {dimensions = array<i32: 0>} : vector<32x1xi32>
    %c32_i32 = arith.constant 32 : i32
    %1 = vector.broadcast %c32_i32 : i32 to vector<32x1xi32>
    %2 = arith.cmpi slt, %0, %1 : vector<32x1xi32>
    %3 = arith.extui %2 : vector<32x1xi1> to vector<32x1xi32>
    %4 = arith.sitofp %3 : vector<32x1xi32> to vector<32x1xf32>
    %c0 = arith.constant 0 : index
    %c0_0 = arith.constant 0 : index
    %5 = vector.load %arg0[%c0, %c0_0] : memref<32x128xf32, #tpu.memory_space<vmem>>, vector<32x128xf32>
    %c0_1 = arith.constant 0 : index
    %c0_2 = arith.constant 0 : index
    %6 = vector.load %arg1[%c0_1, %c0_2] : memref<32x32xf32, #tpu.memory_space<vmem>>, vector<32x32xf32>
    %c0_3 = arith.constant 0 : index
    %c0_4 = arith.constant 0 : index
    %7 = vector.load %arg3[%c0_3, %c0_4] : memref<128x128xf32, #tpu.memory_space<vmem>>, vector<128x128xf32>
    %c0_5 = arith.constant 0 : index
    %c0_6 = arith.constant 0 : index
    %8 = vector.load %arg4[%c0_5, %c0_6] : memref<1x128xf32, #tpu.memory_space<vmem>>, vector<1x128xf32>
    %c0_7 = arith.constant 0 : index
    %c0_8 = arith.constant 0 : index
    %9 = vector.load %arg5[%c0_7, %c0_8] : memref<1x128xf32, #tpu.memory_space<vmem>>, vector<1x128xf32>
    %c0_9 = arith.constant 0 : index
    %c0_10 = arith.constant 0 : index
    %10 = vector.load %arg6[%c0_9, %c0_10] : memref<1x128xf32, #tpu.memory_space<vmem>>, vector<1x128xf32>
    %c0_11 = arith.constant 0 : index
    %c0_12 = arith.constant 0 : index
    %11 = vector.load %arg7[%c0_11, %c0_12] : memref<128x128xf32, #tpu.memory_space<vmem>>, vector<128x128xf32>
    %c0_13 = arith.constant 0 : index
    %c0_14 = arith.constant 0 : index
    %12 = vector.load %arg8[%c0_13, %c0_14] : memref<1x128xf32, #tpu.memory_space<vmem>>, vector<1x128xf32>
    %c0_15 = arith.constant 0 : index
    %c0_16 = arith.constant 0 : index
    %13 = vector.load %arg9[%c0_15, %c0_16] : memref<1x128xf32, #tpu.memory_space<vmem>>, vector<1x128xf32>
    %c0_17 = arith.constant 0 : index
    %c0_18 = arith.constant 0 : index
    %14 = vector.load %arg10[%c0_17, %c0_18] : memref<1x128xf32, #tpu.memory_space<vmem>>, vector<1x128xf32>
    %cst = arith.constant dense<0.000000e+00> : vector<32x128xf32>
    %15 = tpu.matmul %6, %5, %cst {dimension_numbers = #tpu.dot_dimension_numbers<[1], [0], [0], [1], [0, 0, 1, 1], [], []>} : vector<32x32xf32>, vector<32x128xf32>, vector<32x128xf32> -> vector<32x128xf32>
    %16 = arith.addf %5, %15 : vector<32x128xf32>
    %cst_19 = arith.constant dense<0.000000e+00> : vector<32x128xf32>
    %17 = tpu.matmul %16, %7, %cst_19 {dimension_numbers = #tpu.dot_dimension_numbers<[1], [0], [0], [1], [0, 0, 1, 1], [], []>} : vector<32x128xf32>, vector<128x128xf32>, vector<32x128xf32> -> vector<32x128xf32>
    %18 = vector.broadcast %8 : vector<1x128xf32> to vector<32x128xf32>
    %19 = arith.addf %17, %18 : vector<32x128xf32>
    %20 = vector.broadcast %4 : vector<32x1xf32> to vector<32x128xf32>
    %21 = arith.mulf %19, %20 : vector<32x128xf32>
    %cst_20 = arith.constant dense<0.000000e+00> : vector<128xf32>
    %22 = vector.multi_reduction <add>, %21, %cst_20 [0] : vector<32x128xf32> to vector<128xf32>
    %23 = vector.shape_cast %22 : vector<128xf32> to vector<1x128xf32>
    %cst_21 = arith.constant 3.125000e-02 : f32
    %24 = vector.broadcast %cst_21 : f32 to vector<1x128xf32>
    %25 = arith.mulf %23, %24 : vector<1x128xf32>
    %26 = vector.broadcast %25 : vector<1x128xf32> to vector<32x128xf32>
    %27 = arith.subf %19, %26 : vector<32x128xf32>
    %28 = arith.mulf %27, %27 : vector<32x128xf32>
    %29 = vector.broadcast %4 : vector<32x1xf32> to vector<32x128xf32>
    %30 = arith.mulf %28, %29 : vector<32x128xf32>
    %cst_22 = arith.constant dense<0.000000e+00> : vector<128xf32>
    %31 = vector.multi_reduction <add>, %30, %cst_22 [0] : vector<32x128xf32> to vector<128xf32>
    %32 = vector.shape_cast %31 : vector<128xf32> to vector<1x128xf32>
    %cst_23 = arith.constant 3.125000e-02 : f32
    %33 = vector.broadcast %cst_23 : f32 to vector<1x128xf32>
    %34 = arith.mulf %32, %33 : vector<1x128xf32>
    %cst_24 = arith.constant 9.99999974E-6 : f32
    %35 = vector.broadcast %cst_24 : f32 to vector<1x128xf32>
    %36 = arith.addf %34, %35 : vector<1x128xf32>
    %37 = math.rsqrt %36 : vector<1x128xf32>
    %38 = vector.broadcast %37 : vector<1x128xf32> to vector<32x128xf32>
    %39 = arith.mulf %27, %38 : vector<32x128xf32>
    %40 = vector.broadcast %9 : vector<1x128xf32> to vector<32x128xf32>
    %41 = arith.mulf %39, %40 : vector<32x128xf32>
    %42 = vector.broadcast %10 : vector<1x128xf32> to vector<32x128xf32>
    %43 = arith.addf %41, %42 : vector<32x128xf32>
    %cst_25 = arith.constant 0.000000e+00 : f32
    %44 = vector.broadcast %cst_25 : f32 to vector<32x128xf32>
    %45 = arith.maximumf %43, %44 : vector<32x128xf32>
    %cst_26 = arith.constant dense<0.000000e+00> : vector<32x128xf32>
    %46 = tpu.matmul %45, %11, %cst_26 {dimension_numbers = #tpu.dot_dimension_numbers<[1], [0], [0], [1], [0, 0, 1, 1], [], []>} : vector<32x128xf32>, vector<128x128xf32>, vector<32x128xf32> -> vector<32x128xf32>
    %47 = vector.broadcast %12 : vector<1x128xf32> to vector<32x128xf32>
    %48 = arith.addf %46, %47 : vector<32x128xf32>
    %49 = vector.broadcast %4 : vector<32x1xf32> to vector<32x128xf32>
    %50 = arith.mulf %48, %49 : vector<32x128xf32>
    %cst_27 = arith.constant dense<0.000000e+00> : vector<128xf32>
    %51 = vector.multi_reduction <add>, %50, %cst_27 [0] : vector<32x128xf32> to vector<128xf32>
    %52 = vector.shape_cast %51 : vector<128xf32> to vector<1x128xf32>
    %cst_28 = arith.constant 3.125000e-02 : f32
    %53 = vector.broadcast %cst_28 : f32 to vector<1x128xf32>
    %54 = arith.mulf %52, %53 : vector<1x128xf32>
    %55 = vector.broadcast %54 : vector<1x128xf32> to vector<32x128xf32>
    %56 = arith.subf %48, %55 : vector<32x128xf32>
    %57 = arith.mulf %56, %56 : vector<32x128xf32>
    %58 = vector.broadcast %4 : vector<32x1xf32> to vector<32x128xf32>
    %59 = arith.mulf %57, %58 : vector<32x128xf32>
    %cst_29 = arith.constant dense<0.000000e+00> : vector<128xf32>
    %60 = vector.multi_reduction <add>, %59, %cst_29 [0] : vector<32x128xf32> to vector<128xf32>
    %61 = vector.shape_cast %60 : vector<128xf32> to vector<1x128xf32>
    %cst_30 = arith.constant 3.125000e-02 : f32
    %62 = vector.broadcast %cst_30 : f32 to vector<1x128xf32>
    %63 = arith.mulf %61, %62 : vector<1x128xf32>
    %cst_31 = arith.constant 9.99999974E-6 : f32
    %64 = vector.broadcast %cst_31 : f32 to vector<1x128xf32>
    %65 = arith.addf %63, %64 : vector<1x128xf32>
    %66 = math.rsqrt %65 : vector<1x128xf32>
    %67 = vector.broadcast %66 : vector<1x128xf32> to vector<32x128xf32>
    %68 = arith.mulf %56, %67 : vector<32x128xf32>
    %69 = vector.broadcast %13 : vector<1x128xf32> to vector<32x128xf32>
    %70 = arith.mulf %68, %69 : vector<32x128xf32>
    %71 = vector.broadcast %14 : vector<1x128xf32> to vector<32x128xf32>
    %72 = arith.addf %70, %71 : vector<32x128xf32>
    %cst_32 = arith.constant 0.000000e+00 : f32
    %73 = vector.broadcast %cst_32 : f32 to vector<32x128xf32>
    %74 = arith.maximumf %72, %73 : vector<32x128xf32>
    %75 = vector.broadcast %4 : vector<32x1xf32> to vector<32x128xf32>
    %76 = arith.mulf %74, %75 : vector<32x128xf32>
    %c0_33 = arith.constant 0 : index
    %c0_34 = arith.constant 0 : index
    %77 = vector.load %arg20[%c0_33, %c0_34] : memref<4x8xf32, #tpu.memory_space<vmem>>, vector<4x8xf32>
    %c0_35 = arith.constant 0 : index
    %c0_36 = arith.constant 0 : index
    %78 = vector.load %arg21[%c0_35, %c0_36] : memref<8x4xf32, #tpu.memory_space<vmem>>, vector<8x4xf32>
    %c0_37 = arith.constant 0 : index
    %c0_38 = arith.constant 0 : index
    %79 = vector.load %arg11[%c0_37, %c0_38] : memref<8x128xf32, #tpu.memory_space<vmem>>, vector<8x128xf32>
    %c0_39 = arith.constant 0 : index
    %c0_40 = arith.constant 0 : index
    %80 = vector.load %arg12[%c0_39, %c0_40] : memref<128x128xf32, #tpu.memory_space<vmem>>, vector<128x128xf32>
    %cst_41 = arith.constant dense<0.000000e+00> : vector<8x128xf32>
    %81 = tpu.matmul %79, %80, %cst_41 {dimension_numbers = #tpu.dot_dimension_numbers<[1], [0], [0], [1], [0, 0, 1, 1], [], []>} : vector<8x128xf32>, vector<128x128xf32>, vector<8x128xf32> -> vector<8x128xf32>
    %c0_42 = arith.constant 0 : index
    %c0_43 = arith.constant 0 : index
    %82 = vector.load %arg13[%c0_42, %c0_43] : memref<1x128xf32, #tpu.memory_space<vmem>>, vector<1x128xf32>
    %83 = vector.broadcast %82 : vector<1x128xf32> to vector<8x128xf32>
    %84 = arith.addf %81, %83 : vector<8x128xf32>
    %c0_44 = arith.constant 0 : index
    %c0_45 = arith.constant 0 : index
    %85 = vector.load %arg14[%c0_44, %c0_45] : memref<8x128xf32, #tpu.memory_space<vmem>>, vector<8x128xf32>
    %c0_46 = arith.constant 0 : index
    %c0_47 = arith.constant 0 : index
    %86 = vector.load %arg15[%c0_46, %c0_47] : memref<8x128xf32, #tpu.memory_space<vmem>>, vector<8x128xf32>
    %cst_48 = arith.constant dense<0.000000e+00> : vector<4x128xf32>
    %87 = tpu.matmul %77, %84, %cst_48 {dimension_numbers = #tpu.dot_dimension_numbers<[1], [0], [0], [1], [0, 0, 1, 1], [], []>} : vector<4x8xf32>, vector<8x128xf32>, vector<4x128xf32> -> vector<4x128xf32>
    %cst_49 = arith.constant dense<0.000000e+00> : vector<8x128xf32>
    %88 = tpu.matmul %78, %87, %cst_49 {dimension_numbers = #tpu.dot_dimension_numbers<[1], [0], [0], [1], [0, 0, 1, 1], [], []>} : vector<8x4xf32>, vector<4x128xf32>, vector<8x128xf32> -> vector<8x128xf32>
    %89 = arith.subf %84, %88 : vector<8x128xf32>
    %90 = arith.mulf %89, %89 : vector<8x128xf32>
    %cst_50 = arith.constant dense<0.000000e+00> : vector<4x128xf32>
    %91 = tpu.matmul %77, %90, %cst_50 {dimension_numbers = #tpu.dot_dimension_numbers<[1], [0], [0], [1], [0, 0, 1, 1], [], []>} : vector<4x8xf32>, vector<8x128xf32>, vector<4x128xf32> -> vector<4x128xf32>
    %cst_51 = arith.constant dense<0.000000e+00> : vector<8x128xf32>
    %92 = tpu.matmul %78, %91, %cst_51 {dimension_numbers = #tpu.dot_dimension_numbers<[1], [0], [0], [1], [0, 0, 1, 1], [], []>} : vector<8x4xf32>, vector<4x128xf32>, vector<8x128xf32> -> vector<8x128xf32>
    %cst_52 = arith.constant 9.99999974E-6 : f32
    %93 = vector.broadcast %cst_52 : f32 to vector<8x128xf32>
    %94 = arith.addf %92, %93 : vector<8x128xf32>
    %95 = math.rsqrt %94 : vector<8x128xf32>
    %96 = arith.mulf %89, %95 : vector<8x128xf32>
    %97 = arith.mulf %96, %85 : vector<8x128xf32>
    %98 = arith.addf %97, %86 : vector<8x128xf32>
    %cst_53 = arith.constant 0.000000e+00 : f32
    %99 = vector.broadcast %cst_53 : f32 to vector<8x128xf32>
    %100 = arith.maximumf %98, %99 : vector<8x128xf32>
    %c0_54 = arith.constant 0 : index
    %c0_55 = arith.constant 0 : index
    %101 = vector.load %arg16[%c0_54, %c0_55] : memref<128x128xf32, #tpu.memory_space<vmem>>, vector<128x128xf32>
    %cst_56 = arith.constant dense<0.000000e+00> : vector<8x128xf32>
    %102 = tpu.matmul %100, %101, %cst_56 {dimension_numbers = #tpu.dot_dimension_numbers<[1], [0], [0], [1], [0, 0, 1, 1], [], []>} : vector<8x128xf32>, vector<128x128xf32>, vector<8x128xf32> -> vector<8x128xf32>
    %c0_57 = arith.constant 0 : index
    %c0_58 = arith.constant 0 : index
    %103 = vector.load %arg17[%c0_57, %c0_58] : memref<1x128xf32, #tpu.memory_space<vmem>>, vector<1x128xf32>
    %104 = vector.broadcast %103 : vector<1x128xf32> to vector<8x128xf32>
    %105 = arith.addf %102, %104 : vector<8x128xf32>
    %c0_59 = arith.constant 0 : index
    %c0_60 = arith.constant 0 : index
    %106 = vector.load %arg18[%c0_59, %c0_60] : memref<8x128xf32, #tpu.memory_space<vmem>>, vector<8x128xf32>
    %c0_61 = arith.constant 0 : index
    %c0_62 = arith.constant 0 : index
    %107 = vector.load %arg19[%c0_61, %c0_62] : memref<8x128xf32, #tpu.memory_space<vmem>>, vector<8x128xf32>
    %cst_63 = arith.constant dense<0.000000e+00> : vector<4x128xf32>
    %108 = tpu.matmul %77, %105, %cst_63 {dimension_numbers = #tpu.dot_dimension_numbers<[1], [0], [0], [1], [0, 0, 1, 1], [], []>} : vector<4x8xf32>, vector<8x128xf32>, vector<4x128xf32> -> vector<4x128xf32>
    %cst_64 = arith.constant dense<0.000000e+00> : vector<8x128xf32>
    %109 = tpu.matmul %78, %108, %cst_64 {dimension_numbers = #tpu.dot_dimension_numbers<[1], [0], [0], [1], [0, 0, 1, 1], [], []>} : vector<8x4xf32>, vector<4x128xf32>, vector<8x128xf32> -> vector<8x128xf32>
    %110 = arith.subf %105, %109 : vector<8x128xf32>
    %111 = arith.mulf %110, %110 : vector<8x128xf32>
    %cst_65 = arith.constant dense<0.000000e+00> : vector<4x128xf32>
    %112 = tpu.matmul %77, %111, %cst_65 {dimension_numbers = #tpu.dot_dimension_numbers<[1], [0], [0], [1], [0, 0, 1, 1], [], []>} : vector<4x8xf32>, vector<8x128xf32>, vector<4x128xf32> -> vector<4x128xf32>
    %cst_66 = arith.constant dense<0.000000e+00> : vector<8x128xf32>
    %113 = tpu.matmul %78, %112, %cst_66 {dimension_numbers = #tpu.dot_dimension_numbers<[1], [0], [0], [1], [0, 0, 1, 1], [], []>} : vector<8x4xf32>, vector<4x128xf32>, vector<8x128xf32> -> vector<8x128xf32>
    %cst_67 = arith.constant 9.99999974E-6 : f32
    %114 = vector.broadcast %cst_67 : f32 to vector<8x128xf32>
    %115 = arith.addf %113, %114 : vector<8x128xf32>
    %116 = math.rsqrt %115 : vector<8x128xf32>
    %117 = arith.mulf %110, %116 : vector<8x128xf32>
    %118 = arith.mulf %117, %106 : vector<8x128xf32>
    %119 = arith.addf %118, %107 : vector<8x128xf32>
    %cst_68 = arith.constant 0.000000e+00 : f32
    %120 = vector.broadcast %cst_68 : f32 to vector<8x128xf32>
    %121 = arith.maximumf %119, %120 : vector<8x128xf32>
    %c0_69 = arith.constant 0 : index
    %c0_70 = arith.constant 0 : index
    %122 = vector.load %arg2[%c0_69, %c0_70] : memref<8x32xf32, #tpu.memory_space<vmem>>, vector<8x32xf32>
    %cst_71 = arith.constant dense<0.000000e+00> : vector<8x128xf32>
    %123 = tpu.matmul %122, %76, %cst_71 {dimension_numbers = #tpu.dot_dimension_numbers<[1], [0], [0], [1], [0, 0, 1, 1], [], []>} : vector<8x32xf32>, vector<32x128xf32>, vector<8x128xf32> -> vector<8x128xf32>
    %124 = arith.addf %123, %121 : vector<8x128xf32>
    %c0_72 = arith.constant 0 : index
    %c0_73 = arith.constant 0 : index
    %125 = vector.load %arg23[%c0_72, %c0_73] : memref<8x128xf32, #tpu.memory_space<vmem>>, vector<8x128xf32>
    tpu.vector_store %arg23[%c0_72, %c0_73], %124 {strides = array<i32>} : memref<8x128xf32, #tpu.memory_space<vmem>>, vector<8x128xf32>,
    %cst_74 = arith.constant dense<0.000000e+00> : vector<32x128xf32>
    %126 = tpu.matmul %122, %121, %cst_74 {dimension_numbers = #tpu.dot_dimension_numbers<[0], [0], [1], [1], [0, 1, 1, 1], [], []>} : vector<8x32xf32>, vector<8x128xf32>, vector<32x128xf32> -> vector<32x128xf32>
    %127 = arith.addf %76, %126 : vector<32x128xf32>
    %c0_75 = arith.constant 0 : index
    %c0_76 = arith.constant 0 : index
    %128 = vector.load %arg22[%c0_75, %c0_76] : memref<32x128xf32, #tpu.memory_space<vmem>>, vector<32x128xf32>
    tpu.vector_store %arg22[%c0_75, %c0_76], %127 {strides = array<i32>} : memref<32x128xf32, #tpu.memory_space<vmem>>, vector<32x128xf32>,
    return
  }
}

module attributes {stable_mosaic.version = 11 : i64} {
  func.func @_layer_vn_kernel(%arg0: memref<32x128xf32, #tpu.memory_space<vmem>>, %arg1: memref<32x32xf32, #tpu.memory_space<vmem>>, %arg2: memref<8x32xf32, #tpu.memory_space<vmem>>, %arg3: memref<128x128xf32, #tpu.memory_space<vmem>>, %arg4: memref<1x128xf32, #tpu.memory_space<vmem>>, %arg5: memref<1x128xf32, #tpu.memory_space<vmem>>, %arg6: memref<1x128xf32, #tpu.memory_space<vmem>>, %arg7: memref<128x128xf32, #tpu.memory_space<vmem>>, %arg8: memref<1x128xf32, #tpu.memory_space<vmem>>, %arg9: memref<1x128xf32, #tpu.memory_space<vmem>>, %arg10: memref<1x128xf32, #tpu.memory_space<vmem>>, %arg11: memref<8x128xf32, #tpu.memory_space<vmem>>, %arg12: memref<128x128xf32, #tpu.memory_space<vmem>>, %arg13: memref<1x128xf32, #tpu.memory_space<vmem>>, %arg14: memref<8x128xf32, #tpu.memory_space<vmem>>, %arg15: memref<8x128xf32, #tpu.memory_space<vmem>>, %arg16: memref<128x128xf32, #tpu.memory_space<vmem>>, %arg17: memref<1x128xf32, #tpu.memory_space<vmem>>, %arg18: memref<8x128xf32, #tpu.memory_space<vmem>>, %arg19: memref<8x128xf32, #tpu.memory_space<vmem>>, %arg20: memref<4x8xf32, #tpu.memory_space<vmem>>, %arg21: memref<8x4xf32, #tpu.memory_space<vmem>>, %arg22: memref<32x128xf32, #tpu.memory_space<vmem>>, %arg23: memref<8x128xf32, #tpu.memory_space<vmem>>) attributes {dimension_semantics = [], scalar_prefetch = 0 : i64, scratch_operands = 0 : i64, tpu.core_type = #tpu.core_type<tc>} {
    %0 = tpu.iota {dimensions = array<i32: 0>} : vector<32x1xi32>
    %c32_i32 = arith.constant 32 : i32
    %1 = vector.broadcast %c32_i32 : i32 to vector<32x1xi32>
    %2 = arith.cmpi slt, %0, %1 : vector<32x1xi32>
    %3 = arith.extui %2 : vector<32x1xi1> to vector<32x1xi32>
    %4 = arith.sitofp %3 : vector<32x1xi32> to vector<32x1xf32>
    %c0 = arith.constant 0 : index
    %c0_0 = arith.constant 0 : index
    %5 = vector.load %arg0[%c0, %c0_0] : memref<32x128xf32, #tpu.memory_space<vmem>>, vector<32x128xf32>
    %c0_1 = arith.constant 0 : index
    %c0_2 = arith.constant 0 : index
    %6 = vector.load %arg1[%c0_1, %c0_2] : memref<32x32xf32, #tpu.memory_space<vmem>>, vector<32x32xf32>
    %c0_3 = arith.constant 0 : index
    %c0_4 = arith.constant 0 : index
    %7 = vector.load %arg3[%c0_3, %c0_4] : memref<128x128xf32, #tpu.memory_space<vmem>>, vector<128x128xf32>
    %c0_5 = arith.constant 0 : index
    %c0_6 = arith.constant 0 : index
    %8 = vector.load %arg4[%c0_5, %c0_6] : memref<1x128xf32, #tpu.memory_space<vmem>>, vector<1x128xf32>
    %c0_7 = arith.constant 0 : index
    %c0_8 = arith.constant 0 : index
    %9 = vector.load %arg5[%c0_7, %c0_8] : memref<1x128xf32, #tpu.memory_space<vmem>>, vector<1x128xf32>
    %c0_9 = arith.constant 0 : index
    %c0_10 = arith.constant 0 : index
    %10 = vector.load %arg6[%c0_9, %c0_10] : memref<1x128xf32, #tpu.memory_space<vmem>>, vector<1x128xf32>
    %c0_11 = arith.constant 0 : index
    %c0_12 = arith.constant 0 : index
    %11 = vector.load %arg7[%c0_11, %c0_12] : memref<128x128xf32, #tpu.memory_space<vmem>>, vector<128x128xf32>
    %c0_13 = arith.constant 0 : index
    %c0_14 = arith.constant 0 : index
    %12 = vector.load %arg8[%c0_13, %c0_14] : memref<1x128xf32, #tpu.memory_space<vmem>>, vector<1x128xf32>
    %c0_15 = arith.constant 0 : index
    %c0_16 = arith.constant 0 : index
    %13 = vector.load %arg9[%c0_15, %c0_16] : memref<1x128xf32, #tpu.memory_space<vmem>>, vector<1x128xf32>
    %c0_17 = arith.constant 0 : index
    %c0_18 = arith.constant 0 : index
    %14 = vector.load %arg10[%c0_17, %c0_18] : memref<1x128xf32, #tpu.memory_space<vmem>>, vector<1x128xf32>
    %cst = arith.constant dense<0.000000e+00> : vector<32x128xf32>
    %15 = tpu.matmul %6, %5, %cst {dimension_numbers = #tpu.dot_dimension_numbers<[1], [0], [0], [1], [0, 0, 1, 1], [], []>} : vector<32x32xf32>, vector<32x128xf32>, vector<32x128xf32> -> vector<32x128xf32>
    %16 = arith.addf %5, %15 : vector<32x128xf32>
    %cst_19 = arith.constant dense<0.000000e+00> : vector<32x128xf32>
    %17 = tpu.matmul %16, %7, %cst_19 {dimension_numbers = #tpu.dot_dimension_numbers<[1], [0], [0], [1], [0, 0, 1, 1], [], []>} : vector<32x128xf32>, vector<128x128xf32>, vector<32x128xf32> -> vector<32x128xf32>
    %18 = vector.broadcast %8 : vector<1x128xf32> to vector<32x128xf32>
    %19 = arith.addf %17, %18 : vector<32x128xf32>
    %20 = vector.broadcast %4 : vector<32x1xf32> to vector<32x128xf32>
    %21 = arith.mulf %19, %20 : vector<32x128xf32>
    %cst_20 = arith.constant dense<0.000000e+00> : vector<128xf32>
    %22 = vector.multi_reduction <add>, %21, %cst_20 [0] : vector<32x128xf32> to vector<128xf32>
    %23 = vector.shape_cast %22 : vector<128xf32> to vector<1x128xf32>
    %cst_21 = arith.constant 3.125000e-02 : f32
    %24 = vector.broadcast %cst_21 : f32 to vector<1x128xf32>
    %25 = arith.mulf %23, %24 : vector<1x128xf32>
    %26 = vector.broadcast %25 : vector<1x128xf32> to vector<32x128xf32>
    %27 = arith.subf %19, %26 : vector<32x128xf32>
    %28 = arith.mulf %27, %27 : vector<32x128xf32>
    %29 = vector.broadcast %4 : vector<32x1xf32> to vector<32x128xf32>
    %30 = arith.mulf %28, %29 : vector<32x128xf32>
    %cst_22 = arith.constant dense<0.000000e+00> : vector<128xf32>
    %31 = vector.multi_reduction <add>, %30, %cst_22 [0] : vector<32x128xf32> to vector<128xf32>
    %32 = vector.shape_cast %31 : vector<128xf32> to vector<1x128xf32>
    %cst_23 = arith.constant 3.125000e-02 : f32
    %33 = vector.broadcast %cst_23 : f32 to vector<1x128xf32>
    %34 = arith.mulf %32, %33 : vector<1x128xf32>
    %cst_24 = arith.constant 9.99999974E-6 : f32
    %35 = vector.broadcast %cst_24 : f32 to vector<1x128xf32>
    %36 = arith.addf %34, %35 : vector<1x128xf32>
    %37 = math.rsqrt %36 : vector<1x128xf32>
    %38 = vector.broadcast %37 : vector<1x128xf32> to vector<32x128xf32>
    %39 = arith.mulf %27, %38 : vector<32x128xf32>
    %40 = vector.broadcast %9 : vector<1x128xf32> to vector<32x128xf32>
    %41 = arith.mulf %39, %40 : vector<32x128xf32>
    %42 = vector.broadcast %10 : vector<1x128xf32> to vector<32x128xf32>
    %43 = arith.addf %41, %42 : vector<32x128xf32>
    %cst_25 = arith.constant 0.000000e+00 : f32
    %44 = vector.broadcast %cst_25 : f32 to vector<32x128xf32>
    %45 = arith.maximumf %43, %44 : vector<32x128xf32>
    %cst_26 = arith.constant dense<0.000000e+00> : vector<32x128xf32>
    %46 = tpu.matmul %45, %11, %cst_26 {dimension_numbers = #tpu.dot_dimension_numbers<[1], [0], [0], [1], [0, 0, 1, 1], [], []>} : vector<32x128xf32>, vector<128x128xf32>, vector<32x128xf32> -> vector<32x128xf32>
    %47 = vector.broadcast %12 : vector<1x128xf32> to vector<32x128xf32>
    %48 = arith.addf %46, %47 : vector<32x128xf32>
    %49 = vector.broadcast %4 : vector<32x1xf32> to vector<32x128xf32>
    %50 = arith.mulf %48, %49 : vector<32x128xf32>
    %cst_27 = arith.constant dense<0.000000e+00> : vector<128xf32>
    %51 = vector.multi_reduction <add>, %50, %cst_27 [0] : vector<32x128xf32> to vector<128xf32>
    %52 = vector.shape_cast %51 : vector<128xf32> to vector<1x128xf32>
    %cst_28 = arith.constant 3.125000e-02 : f32
    %53 = vector.broadcast %cst_28 : f32 to vector<1x128xf32>
    %54 = arith.mulf %52, %53 : vector<1x128xf32>
    %55 = vector.broadcast %54 : vector<1x128xf32> to vector<32x128xf32>
    %56 = arith.subf %48, %55 : vector<32x128xf32>
    %57 = arith.mulf %56, %56 : vector<32x128xf32>
    %58 = vector.broadcast %4 : vector<32x1xf32> to vector<32x128xf32>
    %59 = arith.mulf %57, %58 : vector<32x128xf32>
    %cst_29 = arith.constant dense<0.000000e+00> : vector<128xf32>
    %60 = vector.multi_reduction <add>, %59, %cst_29 [0] : vector<32x128xf32> to vector<128xf32>
    %61 = vector.shape_cast %60 : vector<128xf32> to vector<1x128xf32>
    %cst_30 = arith.constant 3.125000e-02 : f32
    %62 = vector.broadcast %cst_30 : f32 to vector<1x128xf32>
    %63 = arith.mulf %61, %62 : vector<1x128xf32>
    %cst_31 = arith.constant 9.99999974E-6 : f32
    %64 = vector.broadcast %cst_31 : f32 to vector<1x128xf32>
    %65 = arith.addf %63, %64 : vector<1x128xf32>
    %66 = math.rsqrt %65 : vector<1x128xf32>
    %67 = vector.broadcast %66 : vector<1x128xf32> to vector<32x128xf32>
    %68 = arith.mulf %56, %67 : vector<32x128xf32>
    %69 = vector.broadcast %13 : vector<1x128xf32> to vector<32x128xf32>
    %70 = arith.mulf %68, %69 : vector<32x128xf32>
    %71 = vector.broadcast %14 : vector<1x128xf32> to vector<32x128xf32>
    %72 = arith.addf %70, %71 : vector<32x128xf32>
    %cst_32 = arith.constant 0.000000e+00 : f32
    %73 = vector.broadcast %cst_32 : f32 to vector<32x128xf32>
    %74 = arith.maximumf %72, %73 : vector<32x128xf32>
    %75 = vector.broadcast %4 : vector<32x1xf32> to vector<32x128xf32>
    %76 = arith.mulf %74, %75 : vector<32x128xf32>
    %c0_33 = arith.constant 0 : index
    %c0_34 = arith.constant 0 : index
    %77 = vector.load %arg20[%c0_33, %c0_34] : memref<4x8xf32, #tpu.memory_space<vmem>>, vector<4x8xf32>
    %c0_35 = arith.constant 0 : index
    %c0_36 = arith.constant 0 : index
    %78 = vector.load %arg21[%c0_35, %c0_36] : memref<8x4xf32, #tpu.memory_space<vmem>>, vector<8x4xf32>
    %c0_37 = arith.constant 0 : index
    %c0_38 = arith.constant 0 : index
    %79 = vector.load %arg11[%c0_37, %c0_38] : memref<8x128xf32, #tpu.memory_space<vmem>>, vector<8x128xf32>
    %c0_39 = arith.constant 0 : index
    %c0_40 = arith.constant 0 : index
    %80 = vector.load %arg12[%c0_39, %c0_40] : memref<128x128xf32, #tpu.memory_space<vmem>>, vector<128x128xf32>
    %cst_41 = arith.constant dense<0.000000e+00> : vector<8x128xf32>
    %81 = tpu.matmul %79, %80, %cst_41 {dimension_numbers = #tpu.dot_dimension_numbers<[1], [0], [0], [1], [0, 0, 1, 1], [], []>} : vector<8x128xf32>, vector<128x128xf32>, vector<8x128xf32> -> vector<8x128xf32>
    %c0_42 = arith.constant 0 : index
    %c0_43 = arith.constant 0 : index
    %82 = vector.load %arg13[%c0_42, %c0_43] : memref<1x128xf32, #tpu.memory_space<vmem>>, vector<1x128xf32>
    %83 = vector.broadcast %82 : vector<1x128xf32> to vector<8x128xf32>
    %84 = arith.addf %81, %83 : vector<8x128xf32>
    %c0_44 = arith.constant 0 : index
    %c0_45 = arith.constant 0 : index
    %85 = vector.load %arg14[%c0_44, %c0_45] : memref<8x128xf32, #tpu.memory_space<vmem>>, vector<8x128xf32>
    %c0_46 = arith.constant 0 : index
    %c0_47 = arith.constant 0 : index
    %86 = vector.load %arg15[%c0_46, %c0_47] : memref<8x128xf32, #tpu.memory_space<vmem>>, vector<8x128xf32>
    %cst_48 = arith.constant dense<0.000000e+00> : vector<4x128xf32>
    %87 = tpu.matmul %77, %84, %cst_48 {dimension_numbers = #tpu.dot_dimension_numbers<[1], [0], [0], [1], [0, 0, 1, 1], [], []>} : vector<4x8xf32>, vector<8x128xf32>, vector<4x128xf32> -> vector<4x128xf32>
    %cst_49 = arith.constant dense<0.000000e+00> : vector<8x128xf32>
    %88 = tpu.matmul %78, %87, %cst_49 {dimension_numbers = #tpu.dot_dimension_numbers<[1], [0], [0], [1], [0, 0, 1, 1], [], []>} : vector<8x4xf32>, vector<4x128xf32>, vector<8x128xf32> -> vector<8x128xf32>
    %89 = arith.subf %84, %88 : vector<8x128xf32>
    %90 = arith.mulf %89, %89 : vector<8x128xf32>
    %cst_50 = arith.constant dense<0.000000e+00> : vector<4x128xf32>
    %91 = tpu.matmul %77, %90, %cst_50 {dimension_numbers = #tpu.dot_dimension_numbers<[1], [0], [0], [1], [0, 0, 1, 1], [], []>} : vector<4x8xf32>, vector<8x128xf32>, vector<4x128xf32> -> vector<4x128xf32>
    %cst_51 = arith.constant dense<0.000000e+00> : vector<8x128xf32>
    %92 = tpu.matmul %78, %91, %cst_51 {dimension_numbers = #tpu.dot_dimension_numbers<[1], [0], [0], [1], [0, 0, 1, 1], [], []>} : vector<8x4xf32>, vector<4x128xf32>, vector<8x128xf32> -> vector<8x128xf32>
    %cst_52 = arith.constant 9.99999974E-6 : f32
    %93 = vector.broadcast %cst_52 : f32 to vector<8x128xf32>
    %94 = arith.addf %92, %93 : vector<8x128xf32>
    %95 = math.rsqrt %94 : vector<8x128xf32>
    %96 = arith.mulf %89, %95 : vector<8x128xf32>
    %97 = arith.mulf %96, %85 : vector<8x128xf32>
    %98 = arith.addf %97, %86 : vector<8x128xf32>
    %cst_53 = arith.constant 0.000000e+00 : f32
    %99 = vector.broadcast %cst_53 : f32 to vector<8x128xf32>
    %100 = arith.maximumf %98, %99 : vector<8x128xf32>
    %c0_54 = arith.constant 0 : index
    %c0_55 = arith.constant 0 : index
    %101 = vector.load %arg16[%c0_54, %c0_55] : memref<128x128xf32, #tpu.memory_space<vmem>>, vector<128x128xf32>
    %cst_56 = arith.constant dense<0.000000e+00> : vector<8x128xf32>
    %102 = tpu.matmul %100, %101, %cst_56 {dimension_numbers = #tpu.dot_dimension_numbers<[1], [0], [0], [1], [0, 0, 1, 1], [], []>} : vector<8x128xf32>, vector<128x128xf32>, vector<8x128xf32> -> vector<8x128xf32>
    %c0_57 = arith.constant 0 : index
    %c0_58 = arith.constant 0 : index
    %103 = vector.load %arg17[%c0_57, %c0_58] : memref<1x128xf32, #tpu.memory_space<vmem>>, vector<1x128xf32>
    %104 = vector.broadcast %103 : vector<1x128xf32> to vector<8x128xf32>
    %105 = arith.addf %102, %104 : vector<8x128xf32>
    %c0_59 = arith.constant 0 : index
    %c0_60 = arith.constant 0 : index
    %106 = vector.load %arg18[%c0_59, %c0_60] : memref<8x128xf32, #tpu.memory_space<vmem>>, vector<8x128xf32>
    %c0_61 = arith.constant 0 : index
    %c0_62 = arith.constant 0 : index
    %107 = vector.load %arg19[%c0_61, %c0_62] : memref<8x128xf32, #tpu.memory_space<vmem>>, vector<8x128xf32>
    %cst_63 = arith.constant dense<0.000000e+00> : vector<4x128xf32>
    %108 = tpu.matmul %77, %105, %cst_63 {dimension_numbers = #tpu.dot_dimension_numbers<[1], [0], [0], [1], [0, 0, 1, 1], [], []>} : vector<4x8xf32>, vector<8x128xf32>, vector<4x128xf32> -> vector<4x128xf32>
    %cst_64 = arith.constant dense<0.000000e+00> : vector<8x128xf32>
    %109 = tpu.matmul %78, %108, %cst_64 {dimension_numbers = #tpu.dot_dimension_numbers<[1], [0], [0], [1], [0, 0, 1, 1], [], []>} : vector<8x4xf32>, vector<4x128xf32>, vector<8x128xf32> -> vector<8x128xf32>
    %110 = arith.subf %105, %109 : vector<8x128xf32>
    %111 = arith.mulf %110, %110 : vector<8x128xf32>
    %cst_65 = arith.constant dense<0.000000e+00> : vector<4x128xf32>
    %112 = tpu.matmul %77, %111, %cst_65 {dimension_numbers = #tpu.dot_dimension_numbers<[1], [0], [0], [1], [0, 0, 1, 1], [], []>} : vector<4x8xf32>, vector<8x128xf32>, vector<4x128xf32> -> vector<4x128xf32>
    %cst_66 = arith.constant dense<0.000000e+00> : vector<8x128xf32>
    %113 = tpu.matmul %78, %112, %cst_66 {dimension_numbers = #tpu.dot_dimension_numbers<[1], [0], [0], [1], [0, 0, 1, 1], [], []>} : vector<8x4xf32>, vector<4x128xf32>, vector<8x128xf32> -> vector<8x128xf32>
    %cst_67 = arith.constant 9.99999974E-6 : f32
    %114 = vector.broadcast %cst_67 : f32 to vector<8x128xf32>
    %115 = arith.addf %113, %114 : vector<8x128xf32>
    %116 = math.rsqrt %115 : vector<8x128xf32>
    %117 = arith.mulf %110, %116 : vector<8x128xf32>
    %118 = arith.mulf %117, %106 : vector<8x128xf32>
    %119 = arith.addf %118, %107 : vector<8x128xf32>
    %cst_68 = arith.constant 0.000000e+00 : f32
    %120 = vector.broadcast %cst_68 : f32 to vector<8x128xf32>
    %121 = arith.maximumf %119, %120 : vector<8x128xf32>
    %c0_69 = arith.constant 0 : index
    %c0_70 = arith.constant 0 : index
    %122 = vector.load %arg2[%c0_69, %c0_70] : memref<8x32xf32, #tpu.memory_space<vmem>>, vector<8x32xf32>
    %cst_71 = arith.constant dense<0.000000e+00> : vector<8x128xf32>
    %123 = tpu.matmul %122, %76, %cst_71 {dimension_numbers = #tpu.dot_dimension_numbers<[1], [0], [0], [1], [0, 0, 1, 1], [], []>} : vector<8x32xf32>, vector<32x128xf32>, vector<8x128xf32> -> vector<8x128xf32>
    %124 = arith.addf %123, %121 : vector<8x128xf32>
    %c0_72 = arith.constant 0 : index
    %c0_73 = arith.constant 0 : index
    %125 = vector.load %arg23[%c0_72, %c0_73] : memref<8x128xf32, #tpu.memory_space<vmem>>, vector<8x128xf32>
    tpu.vector_store %arg23[%c0_72, %c0_73], %124 {strides = array<i32>} : memref<8x128xf32, #tpu.memory_space<vmem>>, vector<8x128xf32>,
    %cst_74 = arith.constant dense<0.000000e+00> : vector<32x128xf32>
    %126 = tpu.matmul %122, %121, %cst_74 {dimension_numbers = #tpu.dot_dimension_numbers<[0], [0], [1], [1], [0, 1, 1, 1], [], []>} : vector<8x32xf32>, vector<8x128xf32>, vector<32x128xf32> -> vector<32x128xf32>
    %127 = arith.addf %76, %126 : vector<32x128xf32>
    %c0_75 = arith.constant 0 : index
    %c0_76 = arith.constant 0 : index
    %128 = vector.load %arg22[%c0_75, %c0_76] : memref<32x128xf32, #tpu.memory_space<vmem>>, vector<32x128xf32>
    tpu.vector_store %arg22[%c0_75, %c0_76], %127 {strides = array<i32>} : memref<32x128xf32, #tpu.memory_space<vmem>>, vector<32x128xf32>,
    return
  }
}

</mosaic_0001>

<llo_original>
// kernel: vgin_encoder_forward.4
$region0: #{vgin_encoder_forward.4}
  #allocation0 [shape = 'u32[]', space=smem, size = 0x4, offset = 0x4, fixed_abs, tag = 'smem constant byte address 0x4 - core index']
  #allocation1 [shape = 'u32[144,128]{1,0:T(1,128)}', space=vmem, size = 0x12000, scoped, tag = 'internal scratch']
  %s0 = inlined_call_operand.vmem [shape: f32[32,128], index: 0, kind: input, shape index: {}]
  %s1 = inlined_call_operand.vmem [shape: f32[128,128], index: 1, kind: input, shape index: {}]
  %s2 = inlined_call_operand.vmem [shape: f32[1,128], index: 2, kind: input, shape index: {}]
  %s3 = inlined_call_operand.vmem [shape: f32[8,32], index: 3, kind: input, shape index: {}]
  %s4 = inlined_call_operand.vmem [shape: f32[8,128], index: 4, kind: input, shape index: {}]
  %s5 = inlined_call_operand.vmem [shape: f32[32,128], index: 5, kind: output, shape index: {0}]
  %s6 = inlined_call_operand.vmem [shape: f32[8,128], index: 6, kind: output, shape index: {1}]
  %7 = xla_tuple %s5, %s6
  %s8 = sld [smem:[#allocation0]]
  $region38: #{vgin_encoder_forward.4} parent=0
    _
  %s10 = ssub.s32 1, %s8
  %s11 = scalar_select 0, %s10, %s8
  // Predicated region
  $region2: #{vgin_encoder_forward.4} parent=0 // pred_check
    _
  $region3: #{vgin_encoder_forward.4} parent=0 // pred_check_branch
    %13 = sbr.rel (0) target = $region5
  $region4: #{vgin_encoder_forward.4} parent=0 // pred_region
    _
  $region5: #{vgin_encoder_forward.4} parent=0 // pred_fallthru
    _
  // Predicated region
  $region6: #{vgin_encoder_forward.4} parent=0 // pred_check
    _
  $region7: #{vgin_encoder_forward.4} parent=0 // pred_check_branch
    %15 = sbr.rel (0) target = $region9
  $region8: #{vgin_encoder_forward.4} parent=0 // pred_region
    _
  $region9: #{vgin_encoder_forward.4} parent=0 // pred_fallthru
    _
  // Predicated region
  $region10: #{vgin_encoder_forward.4} parent=0 // pred_check
    _
  $region11: #{vgin_encoder_forward.4} parent=0 // pred_check_branch
    %17 = sbr.rel (0) target = $region13
  $region12: #{vgin_encoder_forward.4} parent=0 // pred_region
    _
  $region13: #{vgin_encoder_forward.4} parent=0 // pred_fallthru
    _
  // Predicated region
  $region14: #{vgin_encoder_forward.4} parent=0 // pred_check
    _
  $region15: #{vgin_encoder_forward.4} parent=0 // pred_check_branch
    %19 = sbr.rel (0) target = $region17
  $region16: #{vgin_encoder_forward.4} parent=0 // pred_region
    _
  $region17: #{vgin_encoder_forward.4} parent=0 // pred_fallthru
    _
  // Predicated region
  $region18: #{vgin_encoder_forward.4} parent=0 // pred_check
    _
  $region19: #{vgin_encoder_forward.4} parent=0 // pred_check_branch
    %21 = sbr.rel (0) target = $region21
  $region20: #{vgin_encoder_forward.4} parent=0 // pred_region
    _
  $region21: #{vgin_encoder_forward.4} parent=0 // pred_fallthru
    _
  %v22 = vlaneseq
  %v23 = vshrl.u32 %v22, 7
  %v24 = vadd.s32 %v23, 8
  %v25 = vadd.s32 %v23, 16
  %v26 = vadd.s32 %v23, 24
  %vm27 = vcmp.lt.s32.totalorder %v23, 32
  %vm28 = vcmp.lt.s32.totalorder %v24, 32
  %vm29 = vcmp.lt.s32.totalorder %v25, 32
  %vm30 = vcmp.lt.s32.totalorder %v26, 32
  %v31 = vsel %vm27, 1, 0
  %v32 = vsel %vm28, 1, 0
  %v33 = vsel %vm29, 1, 0
  %v34 = vsel %vm30, 1, 0
  %v35 = vcvt.s32.f32 %v31
  %v36 = vcvt.s32.f32 %v32
  %v37 = vcvt.s32.f32 %v33
  %v38 = vcvt.s32.f32 %v34
  %v39 = vld [vmem:[%s0] sm:$0xff]
  %v40 = vld [vmem:[%s0 + $0x8] sm:$0xff]
  %v41 = vld [vmem:[%s0 + $0x10] sm:$0xff]
  %v42 = vld [vmem:[%s0 + $0x18] sm:$0xff]
  %v43 = vld [vmem:[%s1] sm:$0xff]
  %v44 = vld [vmem:[%s1 + $0x8] sm:$0xff]
  %v45 = vld [vmem:[%s1 + $0x10] sm:$0xff]
  %v46 = vld [vmem:[%s1 + $0x18] sm:$0xff]
  %v47 = vld [vmem:[%s1 + $0x20] sm:$0xff]
  %v48 = vld [vmem:[%s1 + $0x28] sm:$0xff]
  %v49 = vld [vmem:[%s1 + $0x30] sm:$0xff]
  %v50 = vld [vmem:[%s1 + $0x38] sm:$0xff]
  %v51 = vld [vmem:[%s1 + $0x40] sm:$0xff]
  %v52 = vld [vmem:[%s1 + $0x48] sm:$0xff]
  %v53 = vld [vmem:[%s1 + $0x50] sm:$0xff]
  %v54 = vld [vmem:[%s1 + $0x58] sm:$0xff]
  %v55 = vld [vmem:[%s1 + $0x60] sm:$0xff]
  %v56 = vld [vmem:[%s1 + $0x68] sm:$0xff]
  %v57 = vld [vmem:[%s1 + $0x70] sm:$0xff]
  %v58 = vld [vmem:[%s1 + $0x78] sm:$0xff]
  %v59 = vld [vmem:[%s2] sm:$0x1]
  %v61 = vlaneseq
  %v62 = vshrl.u32 %v61, 7
  %v63 = vsub.s32 0, %v62
  %v64 = vrot.slane %v59, %v63
  %66 = vmatprep.subr.mxu0 0.0
  %67 = vmatpush1.msra.mxu0 %v43
  %68 = vmatprep.subr.mxu0 0.0
  %69 = vmatpush1.msra.mxu0 %v44
  %70 = vmatprep.subr.mxu0 0.0
  %71 = vmatpush1.msra.mxu0 %v45
  %72 = vmatprep.subr.mxu0 0.0
  %73 = vmatpush1.msra.mxu0 %v46
  %74 = vmatprep.subr.mxu0 0.0
  %75 = vmatpush1.msra.mxu0 %v47
  %76 = vmatprep.subr.mxu0 0.0
  %77 = vmatpush1.msra.mxu0 %v48
  %78 = vmatprep.subr.mxu0 0.0
  %79 = vmatpush1.msra.mxu0 %v49
  %80 = vmatprep.subr.mxu0 0.0
  %81 = vmatpush1.msra.mxu0 %v50
  %82 = vmatprep.subr.mxu0 0.0
  %83 = vmatpush1.msra.mxu0 %v51
  %84 = vmatprep.subr.mxu0 0.0
  %85 = vmatpush1.msra.mxu0 %v52
  %86 = vmatprep.subr.mxu0 0.0
  %87 = vmatpush1.msra.mxu0 %v53
  %88 = vmatprep.subr.mxu0 0.0
  %89 = vmatpush1.msra.mxu0 %v54
  %90 = vmatprep.subr.mxu0 0.0
  %91 = vmatpush1.msra.mxu0 %v55
  %92 = vmatprep.subr.mxu0 0.0
  %93 = vmatpush1.msra.mxu0 %v56
  %94 = vmatprep.subr.mxu0 0.0
  %95 = vmatpush1.msra.mxu0 %v57
  %96 = vmatprep.subr.mxu0 0.0
  %97 = vmatpush1.msra.mxu0 %v58
  %98 = vmatprep.subr.mxu0 0.0
  %99 = vmatpush1.msra.mxu0 0.0
  %100 = vmatprep.subr.mxu0 0.0
  %101 = vmatpush1.msra.mxu0 0.0
  %102 = vmatprep.subr.mxu0 0.0
  %103 = vmatpush1.msra.mxu0 0.0
  %104 = vmatprep.subr.mxu0 0.0
  %105 = vmatpush1.msra.mxu0 0.0
  %106 = vmatprep.subr.mxu0 0.0
  %107 = vmatpush1.msra.mxu0 0.0
  %108 = vmatprep.subr.mxu0 0.0
  %109 = vmatpush1.msra.mxu0 0.0
  %110 = vmatprep.subr.mxu0 0.0
  %111 = vmatpush1.msra.mxu0 0.0
  %112 = vmatprep.subr.mxu0 0.0
  %113 = vmatpush1.msra.mxu0 0.0
  %114 = vmatprep.subr.mxu0 0.0
  %115 = vmatpush1.msra.mxu0 0.0
  %116 = vmatprep.subr.mxu0 0.0
  %117 = vmatpush1.msra.mxu0 0.0
  %118 = vmatprep.subr.mxu0 0.0
  %119 = vmatpush1.msra.mxu0 0.0
  %120 = vmatprep.subr.mxu0 0.0
  %121 = vmatpush1.msra.mxu0 0.0
  %122 = vmatprep.subr.mxu0 0.0
  %123 = vmatpush1.msra.mxu0 0.0
  %124 = vmatprep.subr.mxu0 0.0
  %125 = vmatpush1.msra.mxu0 0.0
  %126 = vmatprep.subr.mxu0 0.0
  %127 = vmatpush1.msra.mxu0 0.0
  %128 = vmatprep.subr.mxu0 0.0
  %129 = vmatpush1.msra.mxu0 0.0
  %130 = vmatprep.mubr.f32.mxu0 0.0
  %131 = vmatmul.mubr.f32.gmra.mrb[0].mxu0 %v39
  %v132 = vpop.f32.mrb[0].mxu0
  %v133 = vadd.f32 %v64, %v132
  %v134 = vpop.f32.mrb[0].mxu0
  %135 = vmatprep.mubr.f32.mxu0 0.0
  %136 = vmatmul.mubr.f32.gmra.mrb[0].mxu0 %v40
  %v137 = vpop.f32.mrb[0].mxu0
  %v138 = vadd.f32 %v64, %v137
  %v139 = vpop.f32.mrb[0].mxu0
  %140 = vmatprep.mubr.f32.mxu0 0.0
  %141 = vmatmul.mubr.f32.gmra.mrb[0].mxu0 %v41
  %v142 = vpop.f32.mrb[0].mxu0
  %v143 = vadd.f32 %v64, %v142
  %v144 = vpop.f32.mrb[0].mxu0
  %145 = vmatprep.mubr.f32.mxu0 0.0
  %146 = vmatmul.mubr.f32.gmra.mrb[0].mxu0 %v42
  %v147 = vpop.f32.mrb[0].mxu0
  %v148 = vadd.f32 %v64, %v147
  %v149 = vpop.f32.mrb[0].mxu0
  %150 = vdwg.mxu0
  %v151 = vmul.f32 %v133, %v35
  %v152 = vmul.f32 %v138, %v36
  %v153 = vmul.f32 %v143, %v37
  %v154 = vmul.f32 %v148, %v38
  %v155 = vld [vmem:[%s4] sm:$0xff]
  %v156 = vld [vmem:[%s3] sm:$0xff]
  %vm157 = vcmask 261120
  %v159 = vsel %vm157, %v156, 0
  %161 = vmatprep.subr.mxu0 0.0
  %162 = vmatpush1.msra.mxu0 %v151
  %163 = vmatprep.subr.mxu0 0.0
  %164 = vmatpush1.msra.mxu0 %v152
  %165 = vmatprep.subr.mxu0 0.0
  %166 = vmatpush1.msra.mxu0 %v153
  %167 = vmatprep.subr.mxu0 0.0
  %168 = vmatpush1.msra.mxu0 %v154
  %169 = vmatprep.subr.mxu0 0.0
  %170 = vmatpush1.msra.mxu0 0.0
  %171 = vmatprep.subr.mxu0 0.0
  %172 = vmatpush1.msra.mxu0 0.0
  %173 = vmatprep.subr.mxu0 0.0
  %174 = vmatpush1.msra.mxu0 0.0
  %175 = vmatprep.subr.mxu0 0.0
  %176 = vmatpush1.msra.mxu0 0.0
  %177 = vmatprep.subr.mxu0 0.0
  %178 = vmatpush1.msra.mxu0 0.0
  %179 = vmatprep.subr.mxu0 0.0
  %180 = vmatpush1.msra.mxu0 0.0
  %181 = vmatprep.subr.mxu0 0.0
  %182 = vmatpush1.msra.mxu0 0.0
  %183 = vmatprep.subr.mxu0 0.0
  %184 = vmatpush1.msra.mxu0 0.0
  %185 = vmatprep.subr.mxu0 0.0
  %186 = vmatpush1.msra.mxu0 0.0
  %187 = vmatprep.subr.mxu0 0.0
  %188 = vmatpush1.msra.mxu0 0.0
  %189 = vmatprep.subr.mxu0 0.0
  %190 = vmatpush1.msra.mxu0 0.0
  %191 = vmatprep.subr.mxu0 0.0
  %192 = vmatpush1.msra.mxu0 0.0
  %193 = vmatprep.subr.mxu0 0.0
  %194 = vmatpush1.msra.mxu0 0.0
  %195 = vmatprep.subr.mxu0 0.0
  %196 = vmatpush1.msra.mxu0 0.0
  %197 = vmatprep.subr.mxu0 0.0
  %198 = vmatpush1.msra.mxu0 0.0
  %199 = vmatprep.subr.mxu0 0.0
  %200 = vmatpush1.msra.mxu0 0.0
  %201 = vmatprep.subr.mxu0 0.0
  %202 = vmatpush1.msra.mxu0 0.0
  %203 = vmatprep.subr.mxu0 0.0
  %204 = vmatpush1.msra.mxu0 0.0
  %205 = vmatprep.subr.mxu0 0.0
  %206 = vmatpush1.msra.mxu0 0.0
  %207 = vmatprep.subr.mxu0 0.0
  %208 = vmatpush1.msra.mxu0 0.0
  %209 = vmatprep.subr.mxu0 0.0
  %210 = vmatpush1.msra.mxu0 0.0
  %211 = vmatprep.subr.mxu0 0.0
  %212 = vmatpush1.msra.mxu0 0.0
  %213 = vmatprep.subr.mxu0 0.0
  %214 = vmatpush1.msra.mxu0 0.0
  %215 = vmatprep.subr.mxu0 0.0
  %216 = vmatpush1.msra.mxu0 0.0
  %217 = vmatprep.subr.mxu0 0.0
  %218 = vmatpush1.msra.mxu0 0.0
  %219 = vmatprep.subr.mxu0 0.0
  %220 = vmatpush1.msra.mxu0 0.0
  %221 = vmatprep.subr.mxu0 0.0
  %222 = vmatpush1.msra.mxu0 0.0
  %223 = vmatprep.subr.mxu0 0.0
  %224 = vmatpush1.msra.mxu0 0.0
  %225 = vmatprep.mubr.f32.mxu0 0.0
  %226 = vmatmul.mubr.f32.gmra.mrb[0].mxu0 %v159
  %v227 = vpop.f32.mrb[0].mxu0
  %v228 = vadd.f32 %v155, %v227
  %v229 = vpop.f32.mrb[0].mxu0
  %230 = vdwg.mxu0
  %231 = vst [vmem:[%s6] sm:$0xff] %v228
  %v232 = vld [vmem:[%s3] sm:$0xff]
  %233 = vxpose.xlu0.b32.start [1/16] %v232, 128
  %234 = vxpose.xlu0.b32.cont [2/16] 0.0, 128
  %235 = vxpose.xlu0.b32.cont [3/16] 0.0, 128
  %236 = vxpose.xlu0.b32.cont [4/16] 0.0, 128
  %237 = vxpose.xlu0.b32.cont [5/16] 0.0, 128
  %238 = vxpose.xlu0.b32.cont [6/16] 0.0, 128
  %239 = vxpose.xlu0.b32.cont [7/16] 0.0, 128
  %240 = vxpose.xlu0.b32.cont [8/16] 0.0, 128
  %241 = vxpose.xlu0.b32.cont [9/16] 0.0, 128
  %242 = vxpose.xlu0.b32.cont [10/16] 0.0, 128
  %243 = vxpose.xlu0.b32.cont [11/16] 0.0, 128
  %244 = vxpose.xlu0.b32.cont [12/16] 0.0, 128
  %245 = vxpose.xlu0.b32.cont [13/16] 0.0, 128
  %246 = vxpose.xlu0.b32.cont [14/16] 0.0, 128
  %247 = vxpose.xlu0.b32.cont [15/16] 0.0, 128
  %248 = vxpose.xlu0.b32.end [16/16] 0.0, 128
  %v249 = vpop.trf.xlu0
  %v250 = vpop.trf.xlu0
  %v251 = vpop.trf.xlu0
  %v252 = vpop.trf.xlu0
  %v253 = vpop.trf.xlu0
  %v254 = vpop.trf.xlu0
  %v255 = vpop.trf.xlu0
  %v256 = vpop.trf.xlu0
  %v257 = vpop.trf.xlu0
  %v258 = vpop.trf.xlu0
  %v259 = vpop.trf.xlu0
  %v260 = vpop.trf.xlu0
  %v261 = vpop.trf.xlu0
  %v262 = vpop.trf.xlu0
  %v263 = vpop.trf.xlu0
  %v264 = vpop.trf.xlu0
  %vm265 = vcmask 64512
  %v267 = vsel %vm265, %v249, 0
  %v270 = vsel %vm265, %v250, 0
  %v273 = vsel %vm265, %v251, 0
  %v276 = vsel %vm265, %v252, 0
  %278 = vmatprep.subr.mxu0 0.0
  %279 = vmatpush1.msra.mxu0 %v155
  %280 = vmatprep.subr.mxu0 0.0
  %281 = vmatpush1.msra.mxu0 0.0
  %282 = vmatprep.subr.mxu0 0.0
  %283 = vmatpush1.msra.mxu0 0.0
  %284 = vmatprep.subr.mxu0 0.0
  %285 = vmatpush1.msra.mxu0 0.0
  %286 = vmatprep.subr.mxu0 0.0
  %287 = vmatpush1.msra.mxu0 0.0
  %288 = vmatprep.subr.mxu0 0.0
  %289 = vmatpush1.msra.mxu0 0.0
  %290 = vmatprep.subr.mxu0 0.0
  %291 = vmatpush1.msra.mxu0 0.0
  %292 = vmatprep.subr.mxu0 0.0
  %293 = vmatpush1.msra.mxu0 0.0
  %294 = vmatprep.subr.mxu0 0.0
  %295 = vmatpush1.msra.mxu0 0.0
  %296 = vmatprep.subr.mxu0 0.0
  %297 = vmatpush1.msra.mxu0 0.0
  %298 = vmatprep.subr.mxu0 0.0
  %299 = vmatpush1.msra.mxu0 0.0
  %300 = vmatprep.subr.mxu0 0.0
  %301 = vmatpush1.msra.mxu0 0.0
  %302 = vmatprep.subr.mxu0 0.0
  %303 = vmatpush1.msra.mxu0 0.0
  %304 = vmatprep.subr.mxu0 0.0
  %305 = vmatpush1.msra.mxu0 0.0
  %306 = vmatprep.subr.mxu0 0.0
  %307 = vmatpush1.msra.mxu0 0.0
  %308 = vmatprep.subr.mxu0 0.0
  %309 = vmatpush1.msra.mxu0 0.0
  %310 = vmatprep.subr.mxu0 0.0
  %311 = vmatpush1.msra.mxu0 0.0
  %312 = vmatprep.subr.mxu0 0.0
  %313 = vmatpush1.msra.mxu0 0.0
  %314 = vmatprep.subr.mxu0 0.0
  %315 = vmatpush1.msra.mxu0 0.0
  %316 = vmatprep.subr.mxu0 0.0
  %317 = vmatpush1.msra.mxu0 0.0
  %318 = vmatprep.subr.mxu0 0.0
  %319 = vmatpush1.msra.mxu0 0.0
  %320 = vmatprep.subr.mxu0 0.0
  %321 = vmatpush1.msra.mxu0 0.0
  %322 = vmatprep.subr.mxu0 0.0
  %323 = vmatpush1.msra.mxu0 0.0
  %324 = vmatprep.subr.mxu0 0.0
  %325 = vmatpush1.msra.mxu0 0.0
  %326 = vmatprep.subr.mxu0 0.0
  %327 = vmatpush1.msra.mxu0 0.0
  %328 = vmatprep.subr.mxu0 0.0
  %329 = vmatpush1.msra.mxu0 0.0
  %330 = vmatprep.subr.mxu0 0.0
  %331 = vmatpush1.msra.mxu0 0.0
  %332 = vmatprep.subr.mxu0 0.0
  %333 = vmatpush1.msra.mxu0 0.0
  %334 = vmatprep.subr.mxu0 0.0
  %335 = vmatpush1.msra.mxu0 0.0
  %336 = vmatprep.subr.mxu0 0.0
  %337 = vmatpush1.msra.mxu0 0.0
  %338 = vmatprep.subr.mxu0 0.0
  %339 = vmatpush1.msra.mxu0 0.0
  %340 = vmatprep.subr.mxu0 0.0
  %341 = vmatpush1.msra.mxu0 0.0
  %342 = vmatprep.mubr.f32.mxu0 0.0
  %343 = vmatmul.mubr.f32.gmra.mrb[0].mxu0 %v267
  %v344 = vpop.f32.mrb[0].mxu0
  %v345 = vadd.f32 0.0, %v344
  %v346 = vpop.f32.mrb[0].mxu0
  %347 = vmatprep.mubr.f32.mxu0 0.0
  %348 = vmatmul.mubr.f32.gmra.mrb[0].mxu0 %v270
  %v349 = vpop.f32.mrb[0].mxu0
  %v350 = vadd.f32 0.0, %v349
  %v351 = vpop.f32.mrb[0].mxu0
  %352 = vmatprep.mubr.f32.mxu0 0.0
  %353 = vmatmul.mubr.f32.gmra.mrb[0].mxu0 %v273
  %v354 = vpop.f32.mrb[0].mxu0
  %v355 = vadd.f32 0.0, %v354
  %v356 = vpop.f32.mrb[0].mxu0
  %357 = vmatprep.mubr.f32.mxu0 0.0
  %358 = vmatmul.mubr.f32.gmra.mrb[0].mxu0 %v276
  %v359 = vpop.f32.mrb[0].mxu0
  %v360 = vadd.f32 0.0, %v359
  %v361 = vpop.f32.mrb[0].mxu0
  %362 = vdwg.mxu0
  %v363 = vadd.f32 %v151, %v345
  %v364 = vadd.f32 %v152, %v350
  %v365 = vadd.f32 %v153, %v355
  %v366 = vadd.f32 %v154, %v360
  %367 = vst [vmem:[%s5] sm:$0xff] %v363
  %368 = vst [vmem:[%s5 + $0x8] sm:$0xff] %v364
  %369 = vst [vmem:[%s5 + $0x10] sm:$0xff] %v365
  %370 = vst [vmem:[%s5 + $0x18] sm:$0xff] %v366
  // Predicated region
  $region22: #{vgin_encoder_forward.4} parent=0 // pred_check
    _
  $region23: #{vgin_encoder_forward.4} parent=0 // pred_check_branch
    %372 = sbr.rel (0) target = $region25
  $region24: #{vgin_encoder_forward.4} parent=0 // pred_region
    _
  $region25: #{vgin_encoder_forward.4} parent=0 // pred_fallthru
    _
  // Predicated region
  $region26: #{vgin_encoder_forward.4} parent=0 // pred_check
    _
  $region27: #{vgin_encoder_forward.4} parent=0 // pred_check_branch
    %374 = sbr.rel (0) target = $region29
  $region28: #{vgin_encoder_forward.4} parent=0 // pred_region
    _
  $region29: #{vgin_encoder_forward.4} parent=0 // pred_fallthru
    _
  // Predicated region
  $region30: #{vgin_encoder_forward.4} parent=0 // pred_check
    _
  $region31: #{vgin_encoder_forward.4} parent=0 // pred_check_branch
    %376 = sbr.rel (0) target = $region33
  $region32: #{vgin_encoder_forward.4} parent=0 // pred_region
    _
  $region33: #{vgin_encoder_forward.4} parent=0 // pred_fallthru
    _
  // Predicated region
  $region34: #{vgin_encoder_forward.4} parent=0 // pred_check
    _
  $region35: #{vgin_encoder_forward.4} parent=0 // pred_check_branch
    %378 = sbr.rel (0) target = $region37
  $region36: #{vgin_encoder_forward.4} parent=0 // pred_region
    _
  $region37: #{vgin_encoder_forward.4} parent=0 // pred_fallthru
    _

// kernel: vgin_encoder_forward.7
$region0: #{vgin_encoder_forward.7}
  #allocation0 [shape = 'u32[]', space=smem, size = 0x4, offset = 0x4, fixed_abs, tag = 'smem constant byte address 0x4 - core index']
  #allocation1 [shape = 'u32[144,128]{1,0:T(1,128)}', space=vmem, size = 0x12000, scoped, tag = 'internal scratch']
  %s0 = inlined_call_operand.vmem [shape: f32[32,128], index: 0, kind: input, shape index: {}]
  %s1 = inlined_call_operand.vmem [shape: f32[32,32], index: 1, kind: input, shape index: {}]
  %s2 = inlined_call_operand.vmem [shape: f32[128,128], index: 2, kind: input, shape index: {}]
  %s3 = inlined_call_operand.vmem [shape: f32[1,128], index: 3, kind: input, shape index: {}]
  %s4 = inlined_call_operand.vmem [shape: f32[1,128], index: 4, kind: input, shape index: {}]
  %s5 = inlined_call_operand.vmem [shape: f32[1,128], index: 5, kind: input, shape index: {}]
  %s6 = inlined_call_operand.vmem [shape: f32[128,128], index: 6, kind: input, shape index: {}]
  %s7 = inlined_call_operand.vmem [shape: f32[1,128], index: 7, kind: input, shape index: {}]
  %s8 = inlined_call_operand.vmem [shape: f32[1,128], index: 8, kind: input, shape index: {}]
  %s9 = inlined_call_operand.vmem [shape: f32[1,128], index: 9, kind: input, shape index: {}]
  %s10 = inlined_call_operand.hbm [shape: f32[32,128], index: 10, kind: output, shape index: {}]
  %s11 = sld [smem:[#allocation0]]
  $region50: #{vgin_encoder_forward.7} parent=0
    _
  %s13 = ssub.s32 1, %s11
  %s14 = scalar_select 0, %s13, %s11
  $region1: #{vgin_encoder_forward.7} parent=0
    #allocation2 [shape = 'u8[16384]{0}', space=vmem, size = 0x4000, scoped, tag = 'output window, operand 0, single buffered']
    #allocation3 [shape = 's32[1]{0}', space=sflag, size = 0x4, scoped, tag = 'scoped memory for vgin_encoder_forward.7']
    %15 = vsyncpa [#allocation3], 0
    // Predicated region
    $region2: #{vgin_encoder_forward.7} parent=1 // pred_check
      _
    $region3: #{vgin_encoder_forward.7} parent=1 // pred_check_branch
      %17 = sbr.rel (0) target = $region5
    $region4: #{vgin_encoder_forward.7} parent=1 // pred_region
      _
    $region5: #{vgin_encoder_forward.7} parent=1 // pred_fallthru
      _
    // Predicated region
    $region6: #{vgin_encoder_forward.7} parent=1 // pred_check
      _
    $region7: #{vgin_encoder_forward.7} parent=1 // pred_check_branch
      %19 = sbr.rel (0) target = $region9
    $region8: #{vgin_encoder_forward.7} parent=1 // pred_region
      _
    $region9: #{vgin_encoder_forward.7} parent=1 // pred_fallthru
      _
    // Predicated region
    $region10: #{vgin_encoder_forward.7} parent=1 // pred_check
      _
    $region11: #{vgin_encoder_forward.7} parent=1 // pred_check_branch
      %21 = sbr.rel (0) target = $region13
    $region12: #{vgin_encoder_forward.7} parent=1 // pred_region
      _
    $region13: #{vgin_encoder_forward.7} parent=1 // pred_fallthru
      _
    // Predicated region
    $region14: #{vgin_encoder_forward.7} parent=1 // pred_check
      _
    $region15: #{vgin_encoder_forward.7} parent=1 // pred_check_branch
      %23 = sbr.rel (0) target = $region17
    $region16: #{vgin_encoder_forward.7} parent=1 // pred_region
      _
    $region17: #{vgin_encoder_forward.7} parent=1 // pred_fallthru
      _
    // Predicated region
    $region18: #{vgin_encoder_forward.7} parent=1 // pred_check
      _
    $region19: #{vgin_encoder_forward.7} parent=1 // pred_check_branch
      %25 = sbr.rel (0) target = $region21
    $region20: #{vgin_encoder_forward.7} parent=1 // pred_region
      _
    $region21: #{vgin_encoder_forward.7} parent=1 // pred_fallthru
      _
    // Predicated region
    $region22: #{vgin_encoder_forward.7} parent=1 // pred_check
      _
    $region23: #{vgin_encoder_forward.7} parent=1 // pred_check_branch
      %27 = sbr.rel (0) target = $region25
    $region24: #{vgin_encoder_forward.7} parent=1 // pred_region
      _
    $region25: #{vgin_encoder_forward.7} parent=1 // pred_fallthru
      _
    // Predicated region
    $region26: #{vgin_encoder_forward.7} parent=1 // pred_check
      _
    $region27: #{vgin_encoder_forward.7} parent=1 // pred_check_branch
      %29 = sbr.rel (0) target = $region29
    $region28: #{vgin_encoder_forward.7} parent=1 // pred_region
      _
    $region29: #{vgin_encoder_forward.7} parent=1 // pred_fallthru
      _
    // Predicated region
    $region30: #{vgin_encoder_forward.7} parent=1 // pred_check
      _
    $region31: #{vgin_encoder_forward.7} parent=1 // pred_check_branch
      %31 = sbr.rel (0) target = $region33
    $region32: #{vgin_encoder_forward.7} parent=1 // pred_region
      _
    $region33: #{vgin_encoder_forward.7} parent=1 // pred_fallthru
      _
    // Predicated region
    $region34: #{vgin_encoder_forward.7} parent=1 // pred_check
      _
    $region35: #{vgin_encoder_forward.7} parent=1 // pred_check_branch
      %33 = sbr.rel (0) target = $region37
    $region36: #{vgin_encoder_forward.7} parent=1 // pred_region
      _
    $region37: #{vgin_encoder_forward.7} parent=1 // pred_fallthru
      _
    // Predicated region
    $region38: #{vgin_encoder_forward.7} parent=1 // pred_check
      _
    $region39: #{vgin_encoder_forward.7} parent=1 // pred_check_branch
      %35 = sbr.rel (0) target = $region41
    $region40: #{vgin_encoder_forward.7} parent=1 // pred_region
      _
    $region41: #{vgin_encoder_forward.7} parent=1 // pred_fallthru
      _
    %v36 = vlaneseq
    %v37 = vshrl.u32 %v36, 7
    %v38 = vadd.s32 %v37, 8
    %v39 = vadd.s32 %v37, 16
    %v40 = vadd.s32 %v37, 24
    %vm41 = vcmp.lt.s32.totalorder %v37, 32
    %vm42 = vcmp.lt.s32.totalorder %v38, 32
    %vm43 = vcmp.lt.s32.totalorder %v39, 32
    %vm44 = vcmp.lt.s32.totalorder %v40, 32
    %v45 = vsel %vm41, 1, 0
    %v46 = vsel %vm42, 1, 0
    %v47 = vsel %vm43, 1, 0
    %v48 = vsel %vm44, 1, 0
    %v49 = vcvt.s32.f32 %v45
    %v50 = vcvt.s32.f32 %v46
    %v51 = vcvt.s32.f32 %v47
    %v52 = vcvt.s32.f32 %v48
    %v53 = vld [vmem:[%s0] sm:$0xff]
    %v54 = vld [vmem:[%s0 + $0x8] sm:$0xff]
    %v55 = vld [vmem:[%s0 + $0x10] sm:$0xff]
    %v56 = vld [vmem:[%s0 + $0x18] sm:$0xff]
    %v57 = vld [vmem:[%s1] sm:$0xff]
    %v58 = vld [vmem:[%s1 + $0x8] sm:$0xff]
    %v59 = vld [vmem:[%s1 + $0x10] sm:$0xff]
    %v60 = vld [vmem:[%s1 + $0x18] sm:$0xff]
    %v61 = vld [vmem:[%s2] sm:$0xff]
    %v62 = vld [vmem:[%s2 + $0x8] sm:$0xff]
    %v63 = vld [vmem:[%s2 + $0x10] sm:$0xff]
    %v64 = vld [vmem:[%s2 + $0x18] sm:$0xff]
    %v65 = vld [vmem:[%s2 + $0x20] sm:$0xff]
    %v66 = vld [vmem:[%s2 + $0x28] sm:$0xff]
    %v67 = vld [vmem:[%s2 + $0x30] sm:$0xff]
    %v68 = vld [vmem:[%s2 + $0x38] sm:$0xff]
    %v69 = vld [vmem:[%s2 + $0x40] sm:$0xff]
    %v70 = vld [vmem:[%s2 + $0x48] sm:$0xff]
    %v71 = vld [vmem:[%s2 + $0x50] sm:$0xff]
    %v72 = vld [vmem:[%s2 + $0x58] sm:$0xff]
    %v73 = vld [vmem:[%s2 + $0x60] sm:$0xff]
    %v74 = vld [vmem:[%s2 + $0x68] sm:$0xff]
    %v75 = vld [vmem:[%s2 + $0x70] sm:$0xff]
    %v76 = vld [vmem:[%s2 + $0x78] sm:$0xff]
    %v77 = vld [vmem:[%s3] sm:$0x1]
    %v78 = vld [vmem:[%s4] sm:$0x1]
    %v79 = vld [vmem:[%s5] sm:$0x1]
    %v80 = vld [vmem:[%s6] sm:$0xff]
    %v81 = vld [vmem:[%s6 + $0x8] sm:$0xff]
    %v82 = vld [vmem:[%s6 + $0x10] sm:$0xff]
    %v83 = vld [vmem:[%s6 + $0x18] sm:$0xff]
    %v84 = vld [vmem:[%s6 + $0x20] sm:$0xff]
    %v85 = vld [vmem:[%s6 + $0x28] sm:$0xff]
    %v86 = vld [vmem:[%s6 + $0x30] sm:$0xff]
    %v87 = vld [vmem:[%s6 + $0x38] sm:$0xff]
    %v88 = vld [vmem:[%s6 + $0x40] sm:$0xff]
    %v89 = vld [vmem:[%s6 + $0x48] sm:$0xff]
    %v90 = vld [vmem:[%s6 + $0x50] sm:$0xff]
    %v91 = vld [vmem:[%s6 + $0x58] sm:$0xff]
    %v92 = vld [vmem:[%s6 + $0x60] sm:$0xff]
    %v93 = vld [vmem:[%s6 + $0x68] sm:$0xff]
    %v94 = vld [vmem:[%s6 + $0x70] sm:$0xff]
    %v95 = vld [vmem:[%s6 + $0x78] sm:$0xff]
    %v96 = vld [vmem:[%s7] sm:$0x1]
    %v97 = vld [vmem:[%s8] sm:$0x1]
    %v98 = vld [vmem:[%s9] sm:$0x1]
    %vm99 = vcmask 261120
    %v101 = vsel %vm99, %v57, 0
    %v104 = vsel %vm99, %v58, 0
    %v107 = vsel %vm99, %v59, 0
    %v110 = vsel %vm99, %v60, 0
    %112 = vmatprep.subr.mxu0 0.0
    %113 = vmatpush1.msra.mxu0 %v53
    %114 = vmatprep.subr.mxu0 0.0
    %115 = vmatpush1.msra.mxu0 %v54
    %116 = vmatprep.subr.mxu0 0.0
    %117 = vmatpush1.msra.mxu0 %v55
    %118 = vmatprep.subr.mxu0 0.0
    %119 = vmatpush1.msra.mxu0 %v56
    %120 = vmatprep.subr.mxu0 0.0
    %121 = vmatpush1.msra.mxu0 0.0
    %122 = vmatprep.subr.mxu0 0.0
    %123 = vmatpush1.msra.mxu0 0.0
    %124 = vmatprep.subr.mxu0 0.0
    %125 = vmatpush1.msra.mxu0 0.0
    %126 = vmatprep.subr.mxu0 0.0
    %127 = vmatpush1.msra.mxu0 0.0
    %128 = vmatprep.subr.mxu0 0.0
    %129 = vmatpush1.msra.mxu0 0.0
    %130 = vmatprep.subr.mxu0 0.0
    %131 = vmatpush1.msra.mxu0 0.0
    %132 = vmatprep.subr.mxu0 0.0
    %133 = vmatpush1.msra.mxu0 0.0
    %134 = vmatprep.subr.mxu0 0.0
    %135 = vmatpush1.msra.mxu0 0.0
    %136 = vmatprep.subr.mxu0 0.0
    %137 = vmatpush1.msra.mxu0 0.0
    %138 = vmatprep.subr.mxu0 0.0
    %139 = vmatpush1.msra.mxu0 0.0
    %140 = vmatprep.subr.mxu0 0.0
    %141 = vmatpush1.msra.mxu0 0.0
    %142 = vmatprep.subr.mxu0 0.0
    %143 = vmatpush1.msra.mxu0 0.0
    %144 = vmatprep.subr.mxu0 0.0
    %145 = vmatpush1.msra.mxu0 0.0
    %146 = vmatprep.subr.mxu0 0.0
    %147 = vmatpush1.msra.mxu0 0.0
    %148 = vmatprep.subr.mxu0 0.0
    %149 = vmatpush1.msra.mxu0 0.0
    %150 = vmatprep.subr.mxu0 0.0
    %151 = vmatpush1.msra.mxu0 0.0
    %152 = vmatprep.subr.mxu0 0.0
    %153 = vmatpush1.msra.mxu0 0.0
    %154 = vmatprep.subr.mxu0 0.0
    %155 = vmatpush1.msra.mxu0 0.0
    %156 = vmatprep.subr.mxu0 0.0
    %157 = vmatpush1.msra.mxu0 0.0
    %158 = vmatprep.subr.mxu0 0.0
    %159 = vmatpush1.msra.mxu0 0.0
    %160 = vmatprep.subr.mxu0 0.0
    %161 = vmatpush1.msra.mxu0 0.0
    %162 = vmatprep.subr.mxu0 0.0
    %163 = vmatpush1.msra.mxu0 0.0
    %164 = vmatprep.subr.mxu0 0.0
    %165 = vmatpush1.msra.mxu0 0.0
    %166 = vmatprep.subr.mxu0 0.0
    %167 = vmatpush1.msra.mxu0 0.0
    %168 = vmatprep.subr.mxu0 0.0
    %169 = vmatpush1.msra.mxu0 0.0
    %170 = vmatprep.subr.mxu0 0.0
    %171 = vmatpush1.msra.mxu0 0.0
    %172 = vmatprep.subr.mxu0 0.0
    %173 = vmatpush1.msra.mxu0 0.0
    %174 = vmatprep.subr.mxu0 0.0
    %175 = vmatpush1.msra.mxu0 0.0
    %176 = vmatprep.mubr.f32.mxu0 0.0
    %177 = vmatmul.mubr.f32.gmra.mrb[0].mxu0 %v101
    %v178 = vpop.f32.mrb[0].mxu0
    %v179 = vadd.f32 0.0, %v178
    %v180 = vpop.f32.mrb[0].mxu0
    %181 = vmatprep.mubr.f32.mxu0 0.0
    %182 = vmatmul.mubr.f32.gmra.mrb[0].mxu0 %v104
    %v183 = vpop.f32.mrb[0].mxu0
    %v184 = vadd.f32 0.0, %v183
    %v185 = vpop.f32.mrb[0].mxu0
    %186 = vmatprep.mubr.f32.mxu0 0.0
    %187 = vmatmul.mubr.f32.gmra.mrb[0].mxu0 %v107
    %v188 = vpop.f32.mrb[0].mxu0
    %v189 = vadd.f32 0.0, %v188
    %v190 = vpop.f32.mrb[0].mxu0
    %191 = vmatprep.mubr.f32.mxu0 0.0
    %192 = vmatmul.mubr.f32.gmra.mrb[0].mxu0 %v110
    %v193 = vpop.f32.mrb[0].mxu0
    %v194 = vadd.f32 0.0, %v193
    %v195 = vpop.f32.mrb[0].mxu0
    %196 = vdwg.mxu0
    %v197 = vadd.f32 %v53, %v179
    %v198 = vadd.f32 %v54, %v184
    %v199 = vadd.f32 %v55, %v189
    %v200 = vadd.f32 %v56, %v194
    %v202 = vlaneseq
    %v203 = vshrl.u32 %v202, 7
    %v204 = vsub.s32 0, %v203
    %v205 = vrot.slane %v77, %v204
    %207 = vmatprep.subr.mxu0 0.0
    %208 = vmatpush1.msra.mxu0 %v61
    %209 = vmatprep.subr.mxu0 0.0
    %210 = vmatpush1.msra.mxu0 %v62
    %211 = vmatprep.subr.mxu0 0.0
    %212 = vmatpush1.msra.mxu0 %v63
    %213 = vmatprep.subr.mxu0 0.0
    %214 = vmatpush1.msra.mxu0 %v64
    %215 = vmatprep.subr.mxu0 0.0
    %216 = vmatpush1.msra.mxu0 %v65
    %217 = vmatprep.subr.mxu0 0.0
    %218 = vmatpush1.msra.mxu0 %v66
    %219 = vmatprep.subr.mxu0 0.0
    %220 = vmatpush1.msra.mxu0 %v67
    %221 = vmatprep.subr.mxu0 0.0
    %222 = vmatpush1.msra.mxu0 %v68
    %223 = vmatprep.subr.mxu0 0.0
    %224 = vmatpush1.msra.mxu0 %v69
    %225 = vmatprep.subr.mxu0 0.0
    %226 = vmatpush1.msra.mxu0 %v70
    %227 = vmatprep.subr.mxu0 0.0
    %228 = vmatpush1.msra.mxu0 %v71
    %229 = vmatprep.subr.mxu0 0.0
    %230 = vmatpush1.msra.mxu0 %v72
    %231 = vmatprep.subr.mxu0 0.0
    %232 = vmatpush1.msra.mxu0 %v73
    %233 = vmatprep.subr.mxu0 0.0
    %234 = vmatpush1.msra.mxu0 %v74
    %235 = vmatprep.subr.mxu0 0.0
    %236 = vmatpush1.msra.mxu0 %v75
    %237 = vmatprep.subr.mxu0 0.0
    %238 = vmatpush1.msra.mxu0 %v76
    %239 = vmatprep.subr.mxu0 0.0
    %240 = vmatpush1.msra.mxu0 0.0
    %241 = vmatprep.subr.mxu0 0.0
    %242 = vmatpush1.msra.mxu0 0.0
    %243 = vmatprep.subr.mxu0 0.0
    %244 = vmatpush1.msra.mxu0 0.0
    %245 = vmatprep.subr.mxu0 0.0
    %246 = vmatpush1.msra.mxu0 0.0
    %247 = vmatprep.subr.mxu0 0.0
    %248 = vmatpush1.msra.mxu0 0.0
    %249 = vmatprep.subr.mxu0 0.0
    %250 = vmatpush1.msra.mxu0 0.0
    %251 = vmatprep.subr.mxu0 0.0
    %252 = vmatpush1.msra.mxu0 0.0
    %253 = vmatprep.subr.mxu0 0.0
    %254 = vmatpush1.msra.mxu0 0.0
    %255 = vmatprep.subr.mxu0 0.0
    %256 = vmatpush1.msra.mxu0 0.0
    %257 = vmatprep.subr.mxu0 0.0
    %258 = vmatpush1.msra.mxu0 0.0
    %259 = vmatprep.subr.mxu0 0.0
    %260 = vmatpush1.msra.mxu0 0.0
    %261 = vmatprep.subr.mxu0 0.0
    %262 = vmatpush1.msra.mxu0 0.0
    %263 = vmatprep.subr.mxu0 0.0
    %264 = vmatpush1.msra.mxu0 0.0
    %265 = vmatprep.subr.mxu0 0.0
    %266 = vmatpush1.msra.mxu0 0.0
    %267 = vmatprep.subr.mxu0 0.0
    %268 = vmatpush1.msra.mxu0 0.0
    %269 = vmatprep.subr.mxu0 0.0
    %270 = vmatpush1.msra.mxu0 0.0
    %271 = vmatprep.mubr.f32.mxu0 0.0
    %272 = vmatmul.mubr.f32.gmra.mrb[0].mxu0 %v197
    %v273 = vpop.f32.mrb[0].mxu0
    %v274 = vadd.f32 %v205, %v273
    %v275 = vpop.f32.mrb[0].mxu0
    %276 = vmatprep.mubr.f32.mxu0 0.0
    %277 = vmatmul.mubr.f32.gmra.mrb[0].mxu0 %v198
    %v278 = vpop.f32.mrb[0].mxu0
    %v279 = vadd.f32 %v205, %v278
    %v280 = vpop.f32.mrb[0].mxu0
    %281 = vmatprep.mubr.f32.mxu0 0.0
    %282 = vmatmul.mubr.f32.gmra.mrb[0].mxu0 %v199
    %v283 = vpop.f32.mrb[0].mxu0
    %v284 = vadd.f32 %v205, %v283
    %v285 = vpop.f32.mrb[0].mxu0
    %286 = vmatprep.mubr.f32.mxu0 0.0
    %287 = vmatmul.mubr.f32.gmra.mrb[0].mxu0 %v200
    %v288 = vpop.f32.mrb[0].mxu0
    %v289 = vadd.f32 %v205, %v288
    %v290 = vpop.f32.mrb[0].mxu0
    %291 = vdwg.mxu0
    %v292 = vmul.f32 %v274, %v49
    %v293 = vmul.f32 %v279, %v50
    %v294 = vmul.f32 %v284, %v51
    %v295 = vmul.f32 %v289, %v52
    %v296 = vadd.f32 %v292, %v293
    %v297 = vadd.f32 %v296, %v294
    %v298 = vadd.f32 %v297, %v295
    %v299 = vrot.slane %v298, 4
    %v300 = vadd.f32 %v298, %v299
    %v301 = vrot.slane %v300, 2
    %v302 = vadd.f32 %v300, %v301
    %v303 = vrot.slane %v302, 1
    %v304 = vadd.f32 %v302, %v303
    %v305 = vmul.f32 %v304, 0.03125
    %v306 = vsub.f32 %v274, %v305
    %v307 = vsub.f32 %v279, %v305
    %v308 = vsub.f32 %v284, %v305
    %v309 = vsub.f32 %v289, %v305
    %v310 = vmul.f32 %v306, %v306
    %v311 = vmul.f32 %v307, %v307
    %v312 = vmul.f32 %v308, %v308
    %v313 = vmul.f32 %v309, %v309
    %v314 = vmul.f32 %v310, %v49
    %v315 = vmul.f32 %v311, %v50
    %v316 = vmul.f32 %v312, %v51
    %v317 = vmul.f32 %v313, %v52
    %v318 = vadd.f32 %v314, %v315
    %v319 = vadd.f32 %v318, %v316
    %v320 = vadd.f32 %v319, %v317
    %v321 = vrot.slane %v320, 4
    %v322 = vadd.f32 %v320, %v321
    %v323 = vrot.slane %v322, 2
    %v324 = vadd.f32 %v322, %v323
    %v325 = vrot.slane %v324, 1
    %v326 = vadd.f32 %v324, %v325
    %v327 = vmul.f32 %v326, 0.03125
    %v328 = vadd.f32 %v327, 1e-05
    %v329 = vrsqrt.pop %v328
    %v330 = vmul.f32 %v306, %v329
    %v331 = vmul.f32 %v307, %v329
    %v332 = vmul.f32 %v308, %v329
    %v333 = vmul.f32 %v309, %v329
    %v335 = vlaneseq
    %v336 = vshrl.u32 %v335, 7
    %v337 = vsub.s32 0, %v336
    %v338 = vrot.slane %v78, %v337
    %v340 = vmul.f32 %v330, %v338
    %v341 = vmul.f32 %v331, %v338
    %v342 = vmul.f32 %v332, %v338
    %v343 = vmul.f32 %v333, %v338
    %v345 = vlaneseq
    %v346 = vshrl.u32 %v345, 7
    %v347 = vsub.s32 0, %v346
    %v348 = vrot.slane %v79, %v347
    %v350 = vadd.f32 %v340, %v348
    %v351 = vadd.f32 %v341, %v348
    %v352 = vadd.f32 %v342, %v348
    %v353 = vadd.f32 %v343, %v348
    %v354 = vmax.f32 %v350, 0.0
    %v355 = vmax.f32 %v351, 0.0
    %v356 = vmax.f32 %v352, 0.0
    %v357 = vmax.f32 %v353, 0.0
    %v359 = vlaneseq
    %v360 = vshrl.u32 %v359, 7
    %v361 = vsub.s32 0, %v360
    %v362 = vrot.slane %v96, %v361
    %364 = vmatprep.subr.mxu0 0.0
    %365 = vmatpush1.msra.mxu0 %v80
    %366 = vmatprep.subr.mxu0 0.0
    %367 = vmatpush1.msra.mxu0 %v81
    %368 = vmatprep.subr.mxu0 0.0
    %369 = vmatpush1.msra.mxu0 %v82
    %370 = vmatprep.subr.mxu0 0.0
    %371 = vmatpush1.msra.mxu0 %v83
    %372 = vmatprep.subr.mxu0 0.0
    %373 = vmatpush1.msra.mxu0 %v84
    %374 = vmatprep.subr.mxu0 0.0
    %375 = vmatpush1.msra.mxu0 %v85
    %376 = vmatprep.subr.mxu0 0.0
    %377 = vmatpush1.msra.mxu0 %v86
    %378 = vmatprep.subr.mxu0 0.0
    %379 = vmatpush1.msra.mxu0 %v87
    %380 = vmatprep.subr.mxu0 0.0
    %381 = vmatpush1.msra.mxu0 %v88
    %382 = vmatprep.subr.mxu0 0.0
    %383 = vmatpush1.msra.mxu0 %v89
    %384 = vmatprep.subr.mxu0 0.0
    %385 = vmatpush1.msra.mxu0 %v90
    %386 = vmatprep.subr.mxu0 0.0
    %387 = vmatpush1.msra.mxu0 %v91
    %388 = vmatprep.subr.mxu0 0.0
    %389 = vmatpush1.msra.mxu0 %v92
    %390 = vmatprep.subr.mxu0 0.0
    %391 = vmatpush1.msra.mxu0 %v93
    %392 = vmatprep.subr.mxu0 0.0
    %393 = vmatpush1.msra.mxu0 %v94
    %394 = vmatprep.subr.mxu0 0.0
    %395 = vmatpush1.msra.mxu0 %v95
    %396 = vmatprep.subr.mxu0 0.0
    %397 = vmatpush1.msra.mxu0 0.0
    %398 = vmatprep.subr.mxu0 0.0
    %399 = vmatpush1.msra.mxu0 0.0
    %400 = vmatprep.subr.mxu0 0.0
    %401 = vmatpush1.msra.mxu0 0.0
    %402 = vmatprep.subr.mxu0 0.0
    %403 = vmatpush1.msra.mxu0 0.0
    %404 = vmatprep.subr.mxu0 0.0
    %405 = vmatpush1.msra.mxu0 0.0
    %406 = vmatprep.subr.mxu0 0.0
    %407 = vmatpush1.msra.mxu0 0.0
    %408 = vmatprep.subr.mxu0 0.0
    %409 = vmatpush1.msra.mxu0 0.0
    %410 = vmatprep.subr.mxu0 0.0
    %411 = vmatpush1.msra.mxu0 0.0
    %412 = vmatprep.subr.mxu0 0.0
    %413 = vmatpush1.msra.mxu0 0.0
    %414 = vmatprep.subr.mxu0 0.0
    %415 = vmatpush1.msra.mxu0 0.0
    %416 = vmatprep.subr.mxu0 0.0
    %417 = vmatpush1.msra.mxu0 0.0
    %418 = vmatprep.subr.mxu0 0.0
    %419 = vmatpush1.msra.mxu0 0.0
    %420 = vmatprep.subr.mxu0 0.0
    %421 = vmatpush1.msra.mxu0 0.0
    %422 = vmatprep.subr.mxu0 0.0
    %423 = vmatpush1.msra.mxu0 0.0
    %424 = vmatprep.subr.mxu0 0.0
    %425 = vmatpush1.msra.mxu0 0.0
    %426 = vmatprep.subr.mxu0 0.0
    %427 = vmatpush1.msra.mxu0 0.0
    %428 = vmatprep.mubr.f32.mxu0 0.0
    %429 = vmatmul.mubr.f32.gmra.mrb[0].mxu0 %v354
    %v430 = vpop.f32.mrb[0].mxu0
    %v431 = vadd.f32 %v362, %v430
    %v432 = vpop.f32.mrb[0].mxu0
    %433 = vmatprep.mubr.f32.mxu0 0.0
    %434 = vmatmul.mubr.f32.gmra.mrb[0].mxu0 %v355
    %v435 = vpop.f32.mrb[0].mxu0
    %v436 = vadd.f32 %v362, %v435
    %v437 = vpop.f32.mrb[0].mxu0
    %438 = vmatprep.mubr.f32.mxu0 0.0
    %439 = vmatmul.mubr.f32.gmra.mrb[0].mxu0 %v356
    %v440 = vpop.f32.mrb[0].mxu0
    %v441 = vadd.f32 %v362, %v440
    %v442 = vpop.f32.mrb[0].mxu0
    %443 = vmatprep.mubr.f32.mxu0 0.0
    %444 = vmatmul.mubr.f32.gmra.mrb[0].mxu0 %v357
    %v445 = vpop.f32.mrb[0].mxu0
    %v446 = vadd.f32 %v362, %v445
    %v447 = vpop.f32.mrb[0].mxu0
    %448 = vdwg.mxu0
    %v449 = vmul.f32 %v431, %v49
    %v450 = vmul.f32 %v436, %v50
    %v451 = vmul.f32 %v441, %v51
    %v452 = vmul.f32 %v446, %v52
    %v453 = vadd.f32 %v449, %v450
    %v454 = vadd.f32 %v453, %v451
    %v455 = vadd.f32 %v454, %v452
    %v456 = vrot.slane %v455, 4
    %v457 = vadd.f32 %v455, %v456
    %v458 = vrot.slane %v457, 2
    %v459 = vadd.f32 %v457, %v458
    %v460 = vrot.slane %v459, 1
    %v461 = vadd.f32 %v459, %v460
    %v462 = vmul.f32 %v461, 0.03125
    %v463 = vsub.f32 %v431, %v462
    %v464 = vsub.f32 %v436, %v462
    %v465 = vsub.f32 %v441, %v462
    %v466 = vsub.f32 %v446, %v462
    %v467 = vmul.f32 %v463, %v463
    %v468 = vmul.f32 %v464, %v464
    %v469 = vmul.f32 %v465, %v465
    %v470 = vmul.f32 %v466, %v466
    %v471 = vmul.f32 %v467, %v49
    %v472 = vmul.f32 %v468, %v50
    %v473 = vmul.f32 %v469, %v51
    %v474 = vmul.f32 %v470, %v52
    %v475 = vadd.f32 %v471, %v472
    %v476 = vadd.f32 %v475, %v473
    %v477 = vadd.f32 %v476, %v474
    %v478 = vrot.slane %v477, 4
    %v479 = vadd.f32 %v477, %v478
    %v480 = vrot.slane %v479, 2
    %v481 = vadd.f32 %v479, %v480
    %v482 = vrot.slane %v481, 1
    %v483 = vadd.f32 %v481, %v482
    %v484 = vmul.f32 %v483, 0.03125
    %v485 = vadd.f32 %v484, 1e-05
    %v486 = vrsqrt.pop %v485
    %v487 = vmul.f32 %v463, %v486
    %v488 = vmul.f32 %v464, %v486
    %v489 = vmul.f32 %v465, %v486
    %v490 = vmul.f32 %v466, %v486
    %v492 = vlaneseq
    %v493 = vshrl.u32 %v492, 7
    %v494 = vsub.s32 0, %v493
    %v495 = vrot.slane %v97, %v494
    %v497 = vmul.f32 %v487, %v495
    %v498 = vmul.f32 %v488, %v495
    %v499 = vmul.f32 %v489, %v495
    %v500 = vmul.f32 %v490, %v495
    %v502 = vlaneseq
    %v503 = vshrl.u32 %v502, 7
    %v504 = vsub.s32 0, %v503
    %v505 = vrot.slane %v98, %v504
    %v507 = vadd.f32 %v497, %v505
    %v508 = vadd.f32 %v498, %v505
    %v509 = vadd.f32 %v499, %v505
    %v510 = vadd.f32 %v500, %v505
    %v511 = vmul.f32 %v507, %v49
    %v512 = vmul.f32 %v508, %v50
    %v513 = vmul.f32 %v509, %v51
    %v514 = vmul.f32 %v510, %v52
    %515 = vst [vmem:[#allocation2] sm:$0xff] %v511
    %516 = vst [vmem:[#allocation2 + $0x8] sm:$0xff] %v512
    %517 = vst [vmem:[#allocation2 + $0x10] sm:$0xff] %v513
    %518 = vst [vmem:[#allocation2 + $0x18] sm:$0xff] %v514
    // Predicated region
    $region42: #{vgin_encoder_forward.7} parent=1 // pred_check
      _
    $region43: #{vgin_encoder_forward.7} parent=1 // pred_check_branch
      %520 = sbr.rel (0) target = $region45
    $region44: #{vgin_encoder_forward.7} parent=1 // pred_region
      %s522 = ssub.s32 512, 512
      %523 = vsyncadd [#allocation3], %s522
      %s524 = sshll.u32 [#allocation2], 4
      %s525 = int_to_ptr.vmem [resolvable:$true] %s524
      %530 = dma.vmem_to_hbm [thread:$0]  %s525, 512, %s10, [#allocation3], 128, 128, 8
    $region45: #{vgin_encoder_forward.7} parent=1 // pred_fallthru
      _
    // Predicated region
    $region46: #{vgin_encoder_forward.7} parent=1 // pred_check
      _
    $region47: #{vgin_encoder_forward.7} parent=1 // pred_check_branch
      %532 = sbr.rel (0) target = $region49
    $region48: #{vgin_encoder_forward.7} parent=1 // pred_region
      %533 = dma.done [#allocation3], 512
    $region49: #{vgin_encoder_forward.7} parent=1 // pred_fallthru
      _
    %534 = vsyncpa [#allocation3], 1

// kernel: vgin_encoder_forward.5
$region0: #{vgin_encoder_forward.5}
  #allocation0 [shape = 'u32[]', space=smem, size = 0x4, offset = 0x4, fixed_abs, tag = 'smem constant byte address 0x4 - core index']
  #allocation1 [shape = 'u32[144,128]{1,0:T(1,128)}', space=vmem, size = 0x12000, scoped, tag = 'internal scratch']
  %s0 = inlined_call_operand.vmem [shape: f32[32,128], index: 0, kind: input, shape index: {}]
  %s1 = inlined_call_operand.vmem [shape: f32[32,32], index: 1, kind: input, shape index: {}]
  %s2 = inlined_call_operand.vmem [shape: f32[8,32], index: 2, kind: input, shape index: {}]
  %s3 = inlined_call_operand.vmem [shape: f32[128,128], index: 3, kind: input, shape index: {}]
  %s4 = inlined_call_operand.vmem [shape: f32[1,128], index: 4, kind: input, shape index: {}]
  %s5 = inlined_call_operand.vmem [shape: f32[1,128], index: 5, kind: input, shape index: {}]
  %s6 = inlined_call_operand.vmem [shape: f32[1,128], index: 6, kind: input, shape index: {}]
  %s7 = inlined_call_operand.vmem [shape: f32[128,128], index: 7, kind: input, shape index: {}]
  %s8 = inlined_call_operand.vmem [shape: f32[1,128], index: 8, kind: input, shape index: {}]
  %s9 = inlined_call_operand.vmem [shape: f32[1,128], index: 9, kind: input, shape index: {}]
  %s10 = inlined_call_operand.vmem [shape: f32[1,128], index: 10, kind: input, shape index: {}]
  %s11 = inlined_call_operand.vmem [shape: f32[8,128], index: 11, kind: input, shape index: {}]
  %s12 = inlined_call_operand.vmem [shape: f32[128,128], index: 12, kind: input, shape index: {}]
  %s13 = inlined_call_operand.vmem [shape: f32[1,128], index: 13, kind: input, shape index: {}]
  %s14 = inlined_call_operand.vmem [shape: f32[8,128], index: 14, kind: input, shape index: {}]
  %s15 = inlined_call_operand.vmem [shape: f32[8,128], index: 15, kind: input, shape index: {}]
  %s16 = inlined_call_operand.vmem [shape: f32[128,128], index: 16, kind: input, shape index: {}]
  %s17 = inlined_call_operand.vmem [shape: f32[1,128], index: 17, kind: input, shape index: {}]
  %s18 = inlined_call_operand.vmem [shape: f32[8,128], index: 18, kind: input, shape index: {}]
  %s19 = inlined_call_operand.vmem [shape: f32[8,128], index: 19, kind: input, shape index: {}]
  %s20 = inlined_call_operand.vmem [shape: f32[4,8], index: 20, kind: input, shape index: {}]
  %s21 = inlined_call_operand.vmem [shape: f32[8,4], index: 21, kind: input, shape index: {}]
  %s22 = inlined_call_operand.vmem [shape: f32[32,128], index: 22, kind: output, shape index: {0}]
  %s23 = inlined_call_operand.vmem [shape: f32[8,128], index: 23, kind: output, shape index: {1}]
  %24 = xla_tuple %s22, %s23
  %s25 = sld [smem:[#allocation0]]
  $region106: #{vgin_encoder_forward.5} parent=0
    _
  %s27 = ssub.s32 1, %s25
  %s28 = scalar_select 0, %s27, %s25
  // Predicated region
  $region2: #{vgin_encoder_forward.5} parent=0 // pred_check
    _
  $region3: #{vgin_encoder_forward.5} parent=0 // pred_check_branch
    %30 = sbr.rel (0) target = $region5
  $region4: #{vgin_encoder_forward.5} parent=0 // pred_region
    _
  $region5: #{vgin_encoder_forward.5} parent=0 // pred_fallthru
    _
  // Predicated region
  $region6: #{vgin_encoder_forward.5} parent=0 // pred_check
    _
  $region7: #{vgin_encoder_forward.5} parent=0 // pred_check_branch
    %32 = sbr.rel (0) target = $region9
  $region8: #{vgin_encoder_forward.5} parent=0 // pred_region
    _
  $region9: #{vgin_encoder_forward.5} parent=0 // pred_fallthru
    _
  // Predicated region
  $region10: #{vgin_encoder_forward.5} parent=0 // pred_check
    _
  $region11: #{vgin_encoder_forward.5} parent=0 // pred_check_branch
    %34 = sbr.rel (0) target = $region13
  $region12: #{vgin_encoder_forward.5} parent=0 // pred_region
    _
  $region13: #{vgin_encoder_forward.5} parent=0 // pred_fallthru
    _
  // Predicated region
  $region14: #{vgin_encoder_forward.5} parent=0 // pred_check
    _
  $region15: #{vgin_encoder_forward.5} parent=0 // pred_check_branch
    %36 = sbr.rel (0) target = $region17
  $region16: #{vgin_encoder_forward.5} parent=0 // pred_region
    _
  $region17: #{vgin_encoder_forward.5} parent=0 // pred_fallthru
    _
  // Predicated region
  $region18: #{vgin_encoder_forward.5} parent=0 // pred_check
    _
  $region19: #{vgin_encoder_forward.5} parent=0 // pred_check_branch
    %38 = sbr.rel (0) target = $region21
  $region20: #{vgin_encoder_forward.5} parent=0 // pred_region
    _
  $region21: #{vgin_encoder_forward.5} parent=0 // pred_fallthru
    _
  // Predicated region
  $region22: #{vgin_encoder_forward.5} parent=0 // pred_check
    _
  $region23: #{vgin_encoder_forward.5} parent=0 // pred_check_branch
    %40 = sbr.rel (0) target = $region25
  $region24: #{vgin_encoder_forward.5} parent=0 // pred_region
    _
  $region25: #{vgin_encoder_forward.5} parent=0 // pred_fallthru
    _
  // Predicated region
  $region26: #{vgin_encoder_forward.5} parent=0 // pred_check
    _
  $region27: #{vgin_encoder_forward.5} parent=0 // pred_check_branch
    %42 = sbr.rel (0) target = $region29
  $region28: #{vgin_encoder_forward.5} parent=0 // pred_region
    _
  $region29: #{vgin_encoder_forward.5} parent=0 // pred_fallthru
    _
  // Predicated region
  $region30: #{vgin_encoder_forward.5} parent=0 // pred_check
    _
  $region31: #{vgin_encoder_forward.5} parent=0 // pred_check_branch
    %44 = sbr.rel (0) target = $region33
  $region32: #{vgin_encoder_forward.5} parent=0 // pred_region
    _
  $region33: #{vgin_encoder_forward.5} parent=0 // pred_fallthru
    _
  // Predicated region
  $region34: #{vgin_encoder_forward.5} parent=0 // pred_check
    _
  $region35: #{vgin_encoder_forward.5} parent=0 // pred_check_branch
    %46 = sbr.rel (0) target = $region37
  $region36: #{vgin_encoder_forward.5} parent=0 // pred_region
    _
  $region37: #{vgin_encoder_forward.5} parent=0 // pred_fallthru
    _
  // Predicated region
  $region38: #{vgin_encoder_forward.5} parent=0 // pred_check
    _
  $region39: #{vgin_encoder_forward.5} parent=0 // pred_check_branch
    %48 = sbr.rel (0) target = $region41
  $region40: #{vgin_encoder_forward.5} parent=0 // pred_region
    _
  $region41: #{vgin_encoder_forward.5} parent=0 // pred_fallthru
    _
  // Predicated region
  $region42: #{vgin_encoder_forward.5} parent=0 // pred_check
    _
  $region43: #{vgin_encoder_forward.5} parent=0 // pred_check_branch
    %50 = sbr.rel (0) target = $region45
  $region44: #{vgin_encoder_forward.5} parent=0 // pred_region
    _
  $region45: #{vgin_encoder_forward.5} parent=0 // pred_fallthru
    _
  // Predicated region
  $region46: #{vgin_encoder_forward.5} parent=0 // pred_check
    _
  $region47: #{vgin_encoder_forward.5} parent=0 // pred_check_branch
    %52 = sbr.rel (0) target = $region49
  $region48: #{vgin_encoder_forward.5} parent=0 // pred_region
    _
  $region49: #{vgin_encoder_forward.5} parent=0 // pred_fallthru
    _
  // Predicated region
  $region50: #{vgin_encoder_forward.5} parent=0 // pred_check
    _
  $region51: #{vgin_encoder_forward.5} parent=0 // pred_check_branch
    %54 = sbr.rel (0) target = $region53
  $region52: #{vgin_encoder_forward.5} parent=0 // pred_region
    _
  $region53: #{vgin_encoder_forward.5} parent=0 // pred_fallthru
    _
  // Predicated region
  $region54: #{vgin_encoder_forward.5} parent=0 // pred_check
    _
  $region55: #{vgin_encoder_forward.5} parent=0 // pred_check_branch
    %56 = sbr.rel (0) target = $region57
  $region56: #{vgin_encoder_forward.5} parent=0 // pred_region
    _
  $region57: #{vgin_encoder_forward.5} parent=0 // pred_fallthru
    _
  // Predicated region
  $region58: #{vgin_encoder_forward.5} parent=0 // pred_check
    _
  $region59: #{vgin_encoder_forward.5} parent=0 // pred_check_branch
    %58 = sbr.rel (0) target = $region61
  $region60: #{vgin_encoder_forward.5} parent=0 // pred_region
    _
  $region61: #{vgin_encoder_forward.5} parent=0 // pred_fallthru
    _
  // Predicated region
  $region62: #{vgin_encoder_forward.5} parent=0 // pred_check
    _
  $region63: #{vgin_encoder_forward.5} parent=0 // pred_check_branch
    %60 = sbr.rel (0) target = $region65
  $region64: #{vgin_encoder_forward.5} parent=0 // pred_region
    _
  $region65: #{vgin_encoder_forward.5} parent=0 // pred_fallthru
    _
  // Predicated region
  $region66: #{vgin_encoder_forward.5} parent=0 // pred_check
    _
  $region67: #{vgin_encoder_forward.5} parent=0 // pred_check_branch
    %62 = sbr.rel (0) target = $region69
  $region68: #{vgin_encoder_forward.5} parent=0 // pred_region
    _
  $region69: #{vgin_encoder_forward.5} parent=0 // pred_fallthru
    _
  // Predicated region
  $region70: #{vgin_encoder_forward.5} parent=0 // pred_check
    _
  $region71: #{vgin_encoder_forward.5} parent=0 // pred_check_branch
    %64 = sbr.rel (0) target = $region73
  $region72: #{vgin_encoder_forward.5} parent=0 // pred_region
    _
  $region73: #{vgin_encoder_forward.5} parent=0 // pred_fallthru
    _
  // Predicated region
  $region74: #{vgin_encoder_forward.5} parent=0 // pred_check
    _
  $region75: #{vgin_encoder_forward.5} parent=0 // pred_check_branch
    %66 = sbr.rel (0) target = $region77
  $region76: #{vgin_encoder_forward.5} parent=0 // pred_region
    _
  $region77: #{vgin_encoder_forward.5} parent=0 // pred_fallthru
    _
  // Predicated region
  $region78: #{vgin_encoder_forward.5} parent=0 // pred_check
    _
  $region79: #{vgin_encoder_forward.5} parent=0 // pred_check_branch
    %68 = sbr.rel (0) target = $region81
  $region80: #{vgin_encoder_forward.5} parent=0 // pred_region
    _
  $region81: #{vgin_encoder_forward.5} parent=0 // pred_fallthru
    _
  // Predicated region
  $region82: #{vgin_encoder_forward.5} parent=0 // pred_check
    _
  $region83: #{vgin_encoder_forward.5} parent=0 // pred_check_branch
    %70 = sbr.rel (0) target = $region85
  $region84: #{vgin_encoder_forward.5} parent=0 // pred_region
    _
  $region85: #{vgin_encoder_forward.5} parent=0 // pred_fallthru
    _
  // Predicated region
  $region86: #{vgin_encoder_forward.5} parent=0 // pred_check
    _
  $region87: #{vgin_encoder_forward.5} parent=0 // pred_check_branch
    %72 = sbr.rel (0) target = $region89
  $region88: #{vgin_encoder_forward.5} parent=0 // pred_region
    _
  $region89: #{vgin_encoder_forward.5} parent=0 // pred_fallthru
    _
  %v73 = vlaneseq
  %v74 = vshrl.u32 %v73, 7
  %v75 = vadd.s32 %v74, 8
  %v76 = vadd.s32 %v74, 16
  %v77 = vadd.s32 %v74, 24
  %vm78 = vcmp.lt.s32.totalorder %v74, 32
  %vm79 = vcmp.lt.s32.totalorder %v75, 32
  %vm80 = vcmp.lt.s32.totalorder %v76, 32
  %vm81 = vcmp.lt.s32.totalorder %v77, 32
  %v82 = vsel %vm78, 1, 0
  %v83 = vsel %vm79, 1, 0
  %v84 = vsel %vm80, 1, 0
  %v85 = vsel %vm81, 1, 0
  %v86 = vcvt.s32.f32 %v82
  %v87 = vcvt.s32.f32 %v83
  %v88 = vcvt.s32.f32 %v84
  %v89 = vcvt.s32.f32 %v85
  %v90 = vld [vmem:[%s0] sm:$0xff]
  %v91 = vld [vmem:[%s0 + $0x8] sm:$0xff]
  %v92 = vld [vmem:[%s0 + $0x10] sm:$0xff]
  %v93 = vld [vmem:[%s0 + $0x18] sm:$0xff]
  %v94 = vld [vmem:[%s1] sm:$0xff]
  %v95 = vld [vmem:[%s1 + $0x8] sm:$0xff]
  %v96 = vld [vmem:[%s1 + $0x10] sm:$0xff]
  %v97 = vld [vmem:[%s1 + $0x18] sm:$0xff]
  %v98 = vld [vmem:[%s3] sm:$0xff]
  %v99 = vld [vmem:[%s3 + $0x8] sm:$0xff]
  %v100 = vld [vmem:[%s3 + $0x10] sm:$0xff]
  %v101 = vld [vmem:[%s3 + $0x18] sm:$0xff]
  %v102 = vld [vmem:[%s3 + $0x20] sm:$0xff]
  %v103 = vld [vmem:[%s3 + $0x28] sm:$0xff]
  %v104 = vld [vmem:[%s3 + $0x30] sm:$0xff]
  %v105 = vld [vmem:[%s3 + $0x38] sm:$0xff]
  %v106 = vld [vmem:[%s3 + $0x40] sm:$0xff]
  %v107 = vld [vmem:[%s3 + $0x48] sm:$0xff]
  %v108 = vld [vmem:[%s3 + $0x50] sm:$0xff]
  %v109 = vld [vmem:[%s3 + $0x58] sm:$0xff]
  %v110 = vld [vmem:[%s3 + $0x60] sm:$0xff]
  %v111 = vld [vmem:[%s3 + $0x68] sm:$0xff]
  %v112 = vld [vmem:[%s3 + $0x70] sm:$0xff]
  %v113 = vld [vmem:[%s3 + $0x78] sm:$0xff]
  %v114 = vld [vmem:[%s4] sm:$0x1]
  %v115 = vld [vmem:[%s5] sm:$0x1]
  %v116 = vld [vmem:[%s6] sm:$0x1]
  %v117 = vld [vmem:[%s7] sm:$0xff]
  %v118 = vld [vmem:[%s7 + $0x8] sm:$0xff]
  %v119 = vld [vmem:[%s7 + $0x10] sm:$0xff]
  %v120 = vld [vmem:[%s7 + $0x18] sm:$0xff]
  %v121 = vld [vmem:[%s7 + $0x20] sm:$0xff]
  %v122 = vld [vmem:[%s7 + $0x28] sm:$0xff]
  %v123 = vld [vmem:[%s7 + $0x30] sm:$0xff]
  %v124 = vld [vmem:[%s7 + $0x38] sm:$0xff]
  %v125 = vld [vmem:[%s7 + $0x40] sm:$0xff]
  %v126 = vld [vmem:[%s7 + $0x48] sm:$0xff]
  %v127 = vld [vmem:[%s7 + $0x50] sm:$0xff]
  %v128 = vld [vmem:[%s7 + $0x58] sm:$0xff]
  %v129 = vld [vmem:[%s7 + $0x60] sm:$0xff]
  %v130 = vld [vmem:[%s7 + $0x68] sm:$0xff]
  %v131 = vld [vmem:[%s7 + $0x70] sm:$0xff]
  %v132 = vld [vmem:[%s7 + $0x78] sm:$0xff]
  %v133 = vld [vmem:[%s8] sm:$0x1]
  %v134 = vld [vmem:[%s9] sm:$0x1]
  %v135 = vld [vmem:[%s10] sm:$0x1]
  %vm136 = vcmask 261120
  %v138 = vsel %vm136, %v94, 0
  %v141 = vsel %vm136, %v95, 0
  %v144 = vsel %vm136, %v96, 0
  %v147 = vsel %vm136, %v97, 0
  %149 = vmatprep.subr.mxu0 0.0
  %150 = vmatpush1.msra.mxu0 %v90
  %151 = vmatprep.subr.mxu0 0.0
  %152 = vmatpush1.msra.mxu0 %v91
  %153 = vmatprep.subr.mxu0 0.0
  %154 = vmatpush1.msra.mxu0 %v92
  %155 = vmatprep.subr.mxu0 0.0
  %156 = vmatpush1.msra.mxu0 %v93
  %157 = vmatprep.subr.mxu0 0.0
  %158 = vmatpush1.msra.mxu0 0.0
  %159 = vmatprep.subr.mxu0 0.0
  %160 = vmatpush1.msra.mxu0 0.0
  %161 = vmatprep.subr.mxu0 0.0
  %162 = vmatpush1.msra.mxu0 0.0
  %163 = vmatprep.subr.mxu0 0.0
  %164 = vmatpush1.msra.mxu0 0.0
  %165 = vmatprep.subr.mxu0 0.0
  %166 = vmatpush1.msra.mxu0 0.0
  %167 = vmatprep.subr.mxu0 0.0
  %168 = vmatpush1.msra.mxu0 0.0
  %169 = vmatprep.subr.mxu0 0.0
  %170 = vmatpush1.msra.mxu0 0.0
  %171 = vmatprep.subr.mxu0 0.0
  %172 = vmatpush1.msra.mxu0 0.0
  %173 = vmatprep.subr.mxu0 0.0
  %174 = vmatpush1.msra.mxu0 0.0
  %175 = vmatprep.subr.mxu0 0.0
  %176 = vmatpush1.msra.mxu0 0.0
  %177 = vmatprep.subr.mxu0 0.0
  %178 = vmatpush1.msra.mxu0 0.0
  %179 = vmatprep.subr.mxu0 0.0
  %180 = vmatpush1.msra.mxu0 0.0
  %181 = vmatprep.subr.mxu0 0.0
  %182 = vmatpush1.msra.mxu0 0.0
  %183 = vmatprep.subr.mxu0 0.0
  %184 = vmatpush1.msra.mxu0 0.0
  %185 = vmatprep.subr.mxu0 0.0
  %186 = vmatpush1.msra.mxu0 0.0
  %187 = vmatprep.subr.mxu0 0.0
  %188 = vmatpush1.msra.mxu0 0.0
  %189 = vmatprep.subr.mxu0 0.0
  %190 = vmatpush1.msra.mxu0 0.0
  %191 = vmatprep.subr.mxu0 0.0
  %192 = vmatpush1.msra.mxu0 0.0
  %193 = vmatprep.subr.mxu0 0.0
  %194 = vmatpush1.msra.mxu0 0.0
  %195 = vmatprep.subr.mxu0 0.0
  %196 = vmatpush1.msra.mxu0 0.0
  %197 = vmatprep.subr.mxu0 0.0
  %198 = vmatpush1.msra.mxu0 0.0
  %199 = vmatprep.subr.mxu0 0.0
  %200 = vmatpush1.msra.mxu0 0.0
  %201 = vmatprep.subr.mxu0 0.0
  %202 = vmatpush1.msra.mxu0 0.0
  %203 = vmatprep.subr.mxu0 0.0
  %204 = vmatpush1.msra.mxu0 0.0
  %205 = vmatprep.subr.mxu0 0.0
  %206 = vmatpush1.msra.mxu0 0.0
  %207 = vmatprep.subr.mxu0 0.0
  %208 = vmatpush1.msra.mxu0 0.0
  %209 = vmatprep.subr.mxu0 0.0
  %210 = vmatpush1.msra.mxu0 0.0
  %211 = vmatprep.subr.mxu0 0.0
  %212 = vmatpush1.msra.mxu0 0.0
  %213 = vmatprep.mubr.f32.mxu0 0.0
  %214 = vmatmul.mubr.f32.gmra.mrb[0].mxu0 %v138
  %v215 = vpop.f32.mrb[0].mxu0
  %v216 = vadd.f32 0.0, %v215
  %v217 = vpop.f32.mrb[0].mxu0
  %218 = vmatprep.mubr.f32.mxu0 0.0
  %219 = vmatmul.mubr.f32.gmra.mrb[0].mxu0 %v141
  %v220 = vpop.f32.mrb[0].mxu0
  %v221 = vadd.f32 0.0, %v220
  %v222 = vpop.f32.mrb[0].mxu0
  %223 = vmatprep.mubr.f32.mxu0 0.0
  %224 = vmatmul.mubr.f32.gmra.mrb[0].mxu0 %v144
  %v225 = vpop.f32.mrb[0].mxu0
  %v226 = vadd.f32 0.0, %v225
  %v227 = vpop.f32.mrb[0].mxu0
  %228 = vmatprep.mubr.f32.mxu0 0.0
  %229 = vmatmul.mubr.f32.gmra.mrb[0].mxu0 %v147
  %v230 = vpop.f32.mrb[0].mxu0
  %v231 = vadd.f32 0.0, %v230
  %v232 = vpop.f32.mrb[0].mxu0
  %233 = vdwg.mxu0
  %v234 = vadd.f32 %v90, %v216
  %v235 = vadd.f32 %v91, %v221
  %v236 = vadd.f32 %v92, %v226
  %v237 = vadd.f32 %v93, %v231
  %v239 = vlaneseq
  %v240 = vshrl.u32 %v239, 7
  %v241 = vsub.s32 0, %v240
  %v242 = vrot.slane %v114, %v241
  %244 = vmatprep.subr.mxu0 0.0
  %245 = vmatpush1.msra.mxu0 %v98
  %246 = vmatprep.subr.mxu0 0.0
  %247 = vmatpush1.msra.mxu0 %v99
  %248 = vmatprep.subr.mxu0 0.0
  %249 = vmatpush1.msra.mxu0 %v100
  %250 = vmatprep.subr.mxu0 0.0
  %251 = vmatpush1.msra.mxu0 %v101
  %252 = vmatprep.subr.mxu0 0.0
  %253 = vmatpush1.msra.mxu0 %v102
  %254 = vmatprep.subr.mxu0 0.0
  %255 = vmatpush1.msra.mxu0 %v103
  %256 = vmatprep.subr.mxu0 0.0
  %257 = vmatpush1.msra.mxu0 %v104
  %258 = vmatprep.subr.mxu0 0.0
  %259 = vmatpush1.msra.mxu0 %v105
  %260 = vmatprep.subr.mxu0 0.0
  %261 = vmatpush1.msra.mxu0 %v106
  %262 = vmatprep.subr.mxu0 0.0
  %263 = vmatpush1.msra.mxu0 %v107
  %264 = vmatprep.subr.mxu0 0.0
  %265 = vmatpush1.msra.mxu0 %v108
  %266 = vmatprep.subr.mxu0 0.0
  %267 = vmatpush1.msra.mxu0 %v109
  %268 = vmatprep.subr.mxu0 0.0
  %269 = vmatpush1.msra.mxu0 %v110
  %270 = vmatprep.subr.mxu0 0.0
  %271 = vmatpush1.msra.mxu0 %v111
  %272 = vmatprep.subr.mxu0 0.0
  %273 = vmatpush1.msra.mxu0 %v112
  %274 = vmatprep.subr.mxu0 0.0
  %275 = vmatpush1.msra.mxu0 %v113
  %276 = vmatprep.subr.mxu0 0.0
  %277 = vmatpush1.msra.mxu0 0.0
  %278 = vmatprep.subr.mxu0 0.0
  %279 = vmatpush1.msra.mxu0 0.0
  %280 = vmatprep.subr.mxu0 0.0
  %281 = vmatpush1.msra.mxu0 0.0
  %282 = vmatprep.subr.mxu0 0.0
  %283 = vmatpush1.msra.mxu0 0.0
  %284 = vmatprep.subr.mxu0 0.0
  %285 = vmatpush1.msra.mxu0 0.0
  %286 = vmatprep.subr.mxu0 0.0
  %287 = vmatpush1.msra.mxu0 0.0
  %288 = vmatprep.subr.mxu0 0.0
  %289 = vmatpush1.msra.mxu0 0.0
  %290 = vmatprep.subr.mxu0 0.0
  %291 = vmatpush1.msra.mxu0 0.0
  %292 = vmatprep.subr.mxu0 0.0
  %293 = vmatpush1.msra.mxu0 0.0
  %294 = vmatprep.subr.mxu0 0.0
  %295 = vmatpush1.msra.mxu0 0.0
  %296 = vmatprep.subr.mxu0 0.0
  %297 = vmatpush1.msra.mxu0 0.0
  %298 = vmatprep.subr.mxu0 0.0
  %299 = vmatpush1.msra.mxu0 0.0
  %300 = vmatprep.subr.mxu0 0.0
  %301 = vmatpush1.msra.mxu0 0.0
  %302 = vmatprep.subr.mxu0 0.0
  %303 = vmatpush1.msra.mxu0 0.0
  %304 = vmatprep.subr.mxu0 0.0
  %305 = vmatpush1.msra.mxu0 0.0
  %306 = vmatprep.subr.mxu0 0.0
  %307 = vmatpush1.msra.mxu0 0.0
  %308 = vmatprep.mubr.f32.mxu0 0.0
  %309 = vmatmul.mubr.f32.gmra.mrb[0].mxu0 %v234
  %v310 = vpop.f32.mrb[0].mxu0
  %v311 = vadd.f32 %v242, %v310
  %v312 = vpop.f32.mrb[0].mxu0
  %313 = vmatprep.mubr.f32.mxu0 0.0
  %314 = vmatmul.mubr.f32.gmra.mrb[0].mxu0 %v235
  %v315 = vpop.f32.mrb[0].mxu0
  %v316 = vadd.f32 %v242, %v315
  %v317 = vpop.f32.mrb[0].mxu0
  %318 = vmatprep.mubr.f32.mxu0 0.0
  %319 = vmatmul.mubr.f32.gmra.mrb[0].mxu0 %v236
  %v320 = vpop.f32.mrb[0].mxu0
  %v321 = vadd.f32 %v242, %v320
  %v322 = vpop.f32.mrb[0].mxu0
  %323 = vmatprep.mubr.f32.mxu0 0.0
  %324 = vmatmul.mubr.f32.gmra.mrb[0].mxu0 %v237
  %v325 = vpop.f32.mrb[0].mxu0
  %v326 = vadd.f32 %v242, %v325
  %v327 = vpop.f32.mrb[0].mxu0
  %328 = vdwg.mxu0
  %v329 = vmul.f32 %v311, %v86
  %v330 = vmul.f32 %v316, %v87
  %v331 = vmul.f32 %v321, %v88
  %v332 = vmul.f32 %v326, %v89
  %v333 = vadd.f32 %v329, %v330
  %v334 = vadd.f32 %v333, %v331
  %v335 = vadd.f32 %v334, %v332
  %v336 = vrot.slane %v335, 4
  %v337 = vadd.f32 %v335, %v336
  %v338 = vrot.slane %v337, 2
  %v339 = vadd.f32 %v337, %v338
  %v340 = vrot.slane %v339, 1
  %v341 = vadd.f32 %v339, %v340
  %v342 = vmul.f32 %v341, 0.03125
  %v343 = vsub.f32 %v311, %v342
  %v344 = vsub.f32 %v316, %v342
  %v345 = vsub.f32 %v321, %v342
  %v346 = vsub.f32 %v326, %v342
  %v347 = vmul.f32 %v343, %v343
  %v348 = vmul.f32 %v344, %v344
  %v349 = vmul.f32 %v345, %v345
  %v350 = vmul.f32 %v346, %v346
  %v351 = vmul.f32 %v347, %v86
  %v352 = vmul.f32 %v348, %v87
  %v353 = vmul.f32 %v349, %v88
  %v354 = vmul.f32 %v350, %v89
  %v355 = vadd.f32 %v351, %v352
  %v356 = vadd.f32 %v355, %v353
  %v357 = vadd.f32 %v356, %v354
  %v358 = vrot.slane %v357, 4
  %v359 = vadd.f32 %v357, %v358
  %v360 = vrot.slane %v359, 2
  %v361 = vadd.f32 %v359, %v360
  %v362 = vrot.slane %v361, 1
  %v363 = vadd.f32 %v361, %v362
  %v364 = vmul.f32 %v363, 0.03125
  %v365 = vadd.f32 %v364, 1e-05
  %v366 = vrsqrt.pop %v365
  %v367 = vmul.f32 %v343, %v366
  %v368 = vmul.f32 %v344, %v366
  %v369 = vmul.f32 %v345, %v366
  %v370 = vmul.f32 %v346, %v366
  %v372 = vlaneseq
  %v373 = vshrl.u32 %v372, 7
  %v374 = vsub.s32 0, %v373
  %v375 = vrot.slane %v115, %v374
  %v377 = vmul.f32 %v367, %v375
  %v378 = vmul.f32 %v368, %v375
  %v379 = vmul.f32 %v369, %v375
  %v380 = vmul.f32 %v370, %v375
  %v382 = vlaneseq
  %v383 = vshrl.u32 %v382, 7
  %v384 = vsub.s32 0, %v383
  %v385 = vrot.slane %v116, %v384
  %v387 = vadd.f32 %v377, %v385
  %v388 = vadd.f32 %v378, %v385
  %v389 = vadd.f32 %v379, %v385
  %v390 = vadd.f32 %v380, %v385
  %v391 = vmax.f32 %v387, 0.0
  %v392 = vmax.f32 %v388, 0.0
  %v393 = vmax.f32 %v389, 0.0
  %v394 = vmax.f32 %v390, 0.0
  %v396 = vlaneseq
  %v397 = vshrl.u32 %v396, 7
  %v398 = vsub.s32 0, %v397
  %v399 = vrot.slane %v133, %v398
  %401 = vmatprep.subr.mxu0 0.0
  %402 = vmatpush1.msra.mxu0 %v117
  %403 = vmatprep.subr.mxu0 0.0
  %404 = vmatpush1.msra.mxu0 %v118
  %405 = vmatprep.subr.mxu0 0.0
  %406 = vmatpush1.msra.mxu0 %v119
  %407 = vmatprep.subr.mxu0 0.0
  %408 = vmatpush1.msra.mxu0 %v120
  %409 = vmatprep.subr.mxu0 0.0
  %410 = vmatpush1.msra.mxu0 %v121
  %411 = vmatprep.subr.mxu0 0.0
  %412 = vmatpush1.msra.mxu0 %v122
  %413 = vmatprep.subr.mxu0 0.0
  %414 = vmatpush1.msra.mxu0 %v123
  %415 = vmatprep.subr.mxu0 0.0
  %416 = vmatpush1.msra.mxu0 %v124
  %417 = vmatprep.subr.mxu0 0.0
  %418 = vmatpush1.msra.mxu0 %v125
  %419 = vmatprep.subr.mxu0 0.0
  %420 = vmatpush1.msra.mxu0 %v126
  %421 = vmatprep.subr.mxu0 0.0
  %422 = vmatpush1.msra.mxu0 %v127
  %423 = vmatprep.subr.mxu0 0.0
  %424 = vmatpush1.msra.mxu0 %v128
  %425 = vmatprep.subr.mxu0 0.0
  %426 = vmatpush1.msra.mxu0 %v129
  %427 = vmatprep.subr.mxu0 0.0
  %428 = vmatpush1.msra.mxu0 %v130
  %429 = vmatprep.subr.mxu0 0.0
  %430 = vmatpush1.msra.mxu0 %v131
  %431 = vmatprep.subr.mxu0 0.0
  %432 = vmatpush1.msra.mxu0 %v132
  %433 = vmatprep.subr.mxu0 0.0
  %434 = vmatpush1.msra.mxu0 0.0
  %435 = vmatprep.subr.mxu0 0.0
  %436 = vmatpush1.msra.mxu0 0.0
  %437 = vmatprep.subr.mxu0 0.0
  %438 = vmatpush1.msra.mxu0 0.0
  %439 = vmatprep.subr.mxu0 0.0
  %440 = vmatpush1.msra.mxu0 0.0
  %441 = vmatprep.subr.mxu0 0.0
  %442 = vmatpush1.msra.mxu0 0.0
  %443 = vmatprep.subr.mxu0 0.0
  %444 = vmatpush1.msra.mxu0 0.0
  %445 = vmatprep.subr.mxu0 0.0
  %446 = vmatpush1.msra.mxu0 0.0
  %447 = vmatprep.subr.mxu0 0.0
  %448 = vmatpush1.msra.mxu0 0.0
  %449 = vmatprep.subr.mxu0 0.0
  %450 = vmatpush1.msra.mxu0 0.0
  %451 = vmatprep.subr.mxu0 0.0
  %452 = vmatpush1.msra.mxu0 0.0
  %453 = vmatprep.subr.mxu0 0.0
  %454 = vmatpush1.msra.mxu0 0.0
  %455 = vmatprep.subr.mxu0 0.0
  %456 = vmatpush1.msra.mxu0 0.0
  %457 = vmatprep.subr.mxu0 0.0
  %458 = vmatpush1.msra.mxu0 0.0
  %459 = vmatprep.subr.mxu0 0.0
  %460 = vmatpush1.msra.mxu0 0.0
  %461 = vmatprep.subr.mxu0 0.0
  %462 = vmatpush1.msra.mxu0 0.0
  %463 = vmatprep.subr.mxu0 0.0
  %464 = vmatpush1.msra.mxu0 0.0
  %465 = vmatprep.mubr.f32.mxu0 0.0
  %466 = vmatmul.mubr.f32.gmra.mrb[0].mxu0 %v391
  %v467 = vpop.f32.mrb[0].mxu0
  %v468 = vadd.f32 %v399, %v467
  %v469 = vpop.f32.mrb[0].mxu0
  %470 = vmatprep.mubr.f32.mxu0 0.0
  %471 = vmatmul.mubr.f32.gmra.mrb[0].mxu0 %v392
  %v472 = vpop.f32.mrb[0].mxu0
  %v473 = vadd.f32 %v399, %v472
  %v474 = vpop.f32.mrb[0].mxu0
  %475 = vmatprep.mubr.f32.mxu0 0.0
  %476 = vmatmul.mubr.f32.gmra.mrb[0].mxu0 %v393
  %v477 = vpop.f32.mrb[0].mxu0
  %v478 = vadd.f32 %v399, %v477
  %v479 = vpop.f32.mrb[0].mxu0
  %480 = vmatprep.mubr.f32.mxu0 0.0
  %481 = vmatmul.mubr.f32.gmra.mrb[0].mxu0 %v394
  %v482 = vpop.f32.mrb[0].mxu0
  %v483 = vadd.f32 %v399, %v482
  %v484 = vpop.f32.mrb[0].mxu0
  %485 = vdwg.mxu0
  %v486 = vmul.f32 %v468, %v86
  %v487 = vmul.f32 %v473, %v87
  %v488 = vmul.f32 %v478, %v88
  %v489 = vmul.f32 %v483, %v89
  %v490 = vadd.f32 %v486, %v487
  %v491 = vadd.f32 %v490, %v488
  %v492 = vadd.f32 %v491, %v489
  %v493 = vrot.slane %v492, 4
  %v494 = vadd.f32 %v492, %v493
  %v495 = vrot.slane %v494, 2
  %v496 = vadd.f32 %v494, %v495
  %v497 = vrot.slane %v496, 1
  %v498 = vadd.f32 %v496, %v497
  %v499 = vmul.f32 %v498, 0.03125
  %v500 = vsub.f32 %v468, %v499
  %v501 = vsub.f32 %v473, %v499
  %v502 = vsub.f32 %v478, %v499
  %v503 = vsub.f32 %v483, %v499
  %v504 = vmul.f32 %v500, %v500
  %v505 = vmul.f32 %v501, %v501
  %v506 = vmul.f32 %v502, %v502
  %v507 = vmul.f32 %v503, %v503
  %v508 = vmul.f32 %v504, %v86
  %v509 = vmul.f32 %v505, %v87
  %v510 = vmul.f32 %v506, %v88
  %v511 = vmul.f32 %v507, %v89
  %v512 = vadd.f32 %v508, %v509
  %v513 = vadd.f32 %v512, %v510
  %v514 = vadd.f32 %v513, %v511
  %v515 = vrot.slane %v514, 4
  %v516 = vadd.f32 %v514, %v515
  %v517 = vrot.slane %v516, 2
  %v518 = vadd.f32 %v516, %v517
  %v519 = vrot.slane %v518, 1
  %v520 = vadd.f32 %v518, %v519
  %v521 = vmul.f32 %v520, 0.03125
  %v522 = vadd.f32 %v521, 1e-05
  %v523 = vrsqrt.pop %v522
  %v524 = vmul.f32 %v500, %v523
  %v525 = vmul.f32 %v501, %v523
  %v526 = vmul.f32 %v502, %v523
  %v527 = vmul.f32 %v503, %v523
  %v529 = vlaneseq
  %v530 = vshrl.u32 %v529, 7
  %v531 = vsub.s32 0, %v530
  %v532 = vrot.slane %v134, %v531
  %v534 = vmul.f32 %v524, %v532
  %v535 = vmul.f32 %v525, %v532
  %v536 = vmul.f32 %v526, %v532
  %v537 = vmul.f32 %v527, %v532
  %v539 = vlaneseq
  %v540 = vshrl.u32 %v539, 7
  %v541 = vsub.s32 0, %v540
  %v542 = vrot.slane %v135, %v541
  %v544 = vadd.f32 %v534, %v542
  %v545 = vadd.f32 %v535, %v542
  %v546 = vadd.f32 %v536, %v542
  %v547 = vadd.f32 %v537, %v542
  %v548 = vmax.f32 %v544, 0.0
  %v549 = vmax.f32 %v545, 0.0
  %v550 = vmax.f32 %v546, 0.0
  %v551 = vmax.f32 %v547, 0.0
  %v552 = vmul.f32 %v548, %v86
  %v553 = vmul.f32 %v549, %v87
  %v554 = vmul.f32 %v550, %v88
  %v555 = vmul.f32 %v551, %v89
  %v556 = vld [vmem:[%s20] sm:$0xf]
  %v557 = vld [vmem:[%s21] sm:$0xff]
  %v558 = vld [vmem:[%s11] sm:$0xff]
  %v559 = vld [vmem:[%s12] sm:$0xff]
  %v560 = vld [vmem:[%s12 + $0x8] sm:$0xff]
  %v561 = vld [vmem:[%s12 + $0x10] sm:$0xff]
  %v562 = vld [vmem:[%s12 + $0x18] sm:$0xff]
  %v563 = vld [vmem:[%s12 + $0x20] sm:$0xff]
  %v564 = vld [vmem:[%s12 + $0x28] sm:$0xff]
  %v565 = vld [vmem:[%s12 + $0x30] sm:$0xff]
  %v566 = vld [vmem:[%s12 + $0x38] sm:$0xff]
  %v567 = vld [vmem:[%s12 + $0x40] sm:$0xff]
  %v568 = vld [vmem:[%s12 + $0x48] sm:$0xff]
  %v569 = vld [vmem:[%s12 + $0x50] sm:$0xff]
  %v570 = vld [vmem:[%s12 + $0x58] sm:$0xff]
  %v571 = vld [vmem:[%s12 + $0x60] sm:$0xff]
  %v572 = vld [vmem:[%s12 + $0x68] sm:$0xff]
  %v573 = vld [vmem:[%s12 + $0x70] sm:$0xff]
  %v574 = vld [vmem:[%s12 + $0x78] sm:$0xff]
  %v575 = vld [vmem:[%s13] sm:$0x1]
  %v577 = vlaneseq
  %v578 = vshrl.u32 %v577, 7
  %v579 = vsub.s32 0, %v578
  %v580 = vrot.slane %v575, %v579
  %582 = vmatprep.subr.mxu0 0.0
  %583 = vmatpush1.msra.mxu0 %v559
  %584 = vmatprep.subr.mxu0 0.0
  %585 = vmatpush1.msra.mxu0 %v560
  %586 = vmatprep.subr.mxu0 0.0
  %587 = vmatpush1.msra.mxu0 %v561
  %588 = vmatprep.subr.mxu0 0.0
  %589 = vmatpush1.msra.mxu0 %v562
  %590 = vmatprep.subr.mxu0 0.0
  %591 = vmatpush1.msra.mxu0 %v563
  %592 = vmatprep.subr.mxu0 0.0
  %593 = vmatpush1.msra.mxu0 %v564
  %594 = vmatprep.subr.mxu0 0.0
  %595 = vmatpush1.msra.mxu0 %v565
  %596 = vmatprep.subr.mxu0 0.0
  %597 = vmatpush1.msra.mxu0 %v566
  %598 = vmatprep.subr.mxu0 0.0
  %599 = vmatpush1.msra.mxu0 %v567
  %600 = vmatprep.subr.mxu0 0.0
  %601 = vmatpush1.msra.mxu0 %v568
  %602 = vmatprep.subr.mxu0 0.0
  %603 = vmatpush1.msra.mxu0 %v569
  %604 = vmatprep.subr.mxu0 0.0
  %605 = vmatpush1.msra.mxu0 %v570
  %606 = vmatprep.subr.mxu0 0.0
  %607 = vmatpush1.msra.mxu0 %v571
  %608 = vmatprep.subr.mxu0 0.0
  %609 = vmatpush1.msra.mxu0 %v572
  %610 = vmatprep.subr.mxu0 0.0
  %611 = vmatpush1.msra.mxu0 %v573
  %612 = vmatprep.subr.mxu0 0.0
  %613 = vmatpush1.msra.mxu0 %v574
  %614 = vmatprep.subr.mxu0 0.0
  %615 = vmatpush1.msra.mxu0 0.0
  %616 = vmatprep.subr.mxu0 0.0
  %617 = vmatpush1.msra.mxu0 0.0
  %618 = vmatprep.subr.mxu0 0.0
  %619 = vmatpush1.msra.mxu0 0.0
  %620 = vmatprep.subr.mxu0 0.0
  %621 = vmatpush1.msra.mxu0 0.0
  %622 = vmatprep.subr.mxu0 0.0
  %623 = vmatpush1.msra.mxu0 0.0
  %624 = vmatprep.subr.mxu0 0.0
  %625 = vmatpush1.msra.mxu0 0.0
  %626 = vmatprep.subr.mxu0 0.0
  %627 = vmatpush1.msra.mxu0 0.0
  %628 = vmatprep.subr.mxu0 0.0
  %629 = vmatpush1.msra.mxu0 0.0
  %630 = vmatprep.subr.mxu0 0.0
  %631 = vmatpush1.msra.mxu0 0.0
  %632 = vmatprep.subr.mxu0 0.0
  %633 = vmatpush1.msra.mxu0 0.0
  %634 = vmatprep.subr.mxu0 0.0
  %635 = vmatpush1.msra.mxu0 0.0
  %636 = vmatprep.subr.mxu0 0.0
  %637 = vmatpush1.msra.mxu0 0.0
  %638 = vmatprep.subr.mxu0 0.0
  %639 = vmatpush1.msra.mxu0 0.0
  %640 = vmatprep.subr.mxu0 0.0
  %641 = vmatpush1.msra.mxu0 0.0
  %642 = vmatprep.subr.mxu0 0.0
  %643 = vmatpush1.msra.mxu0 0.0
  %644 = vmatprep.subr.mxu0 0.0
  %645 = vmatpush1.msra.mxu0 0.0
  %646 = vmatprep.mubr.f32.mxu0 0.0
  %647 = vmatmul.mubr.f32.gmra.mrb[0].mxu0 %v558
  %v648 = vpop.f32.mrb[0].mxu0
  %v649 = vadd.f32 %v580, %v648
  %v650 = vpop.f32.mrb[0].mxu0
  %651 = vdwg.mxu0
  %v652 = vld [vmem:[%s14] sm:$0xff]
  %v653 = vld [vmem:[%s15] sm:$0xff]
  %vm654 = vcmask 64512
  %v656 = vsel %vm654, %v556, 0
  %658 = vmatprep.subr.mxu0 0.0
  %659 = vmatpush1.msra.mxu0 %v649
  %660 = vmatprep.subr.mxu0 0.0
  %661 = vmatpush1.msra.mxu0 0.0
  %662 = vmatprep.subr.mxu0 0.0
  %663 = vmatpush1.msra.mxu0 0.0
  %664 = vmatprep.subr.mxu0 0.0
  %665 = vmatpush1.msra.mxu0 0.0
  %666 = vmatprep.subr.mxu0 0.0
  %667 = vmatpush1.msra.mxu0 0.0
  %668 = vmatprep.subr.mxu0 0.0
  %669 = vmatpush1.msra.mxu0 0.0
  %670 = vmatprep.subr.mxu0 0.0
  %671 = vmatpush1.msra.mxu0 0.0
  %672 = vmatprep.subr.mxu0 0.0
  %673 = vmatpush1.msra.mxu0 0.0
  %674 = vmatprep.subr.mxu0 0.0
  %675 = vmatpush1.msra.mxu0 0.0
  %676 = vmatprep.subr.mxu0 0.0
  %677 = vmatpush1.msra.mxu0 0.0
  %678 = vmatprep.subr.mxu0 0.0
  %679 = vmatpush1.msra.mxu0 0.0
  %680 = vmatprep.subr.mxu0 0.0
  %681 = vmatpush1.msra.mxu0 0.0
  %682 = vmatprep.subr.mxu0 0.0
  %683 = vmatpush1.msra.mxu0 0.0
  %684 = vmatprep.subr.mxu0 0.0
  %685 = vmatpush1.msra.mxu0 0.0
  %686 = vmatprep.subr.mxu0 0.0
  %687 = vmatpush1.msra.mxu0 0.0
  %688 = vmatprep.subr.mxu0 0.0
  %689 = vmatpush1.msra.mxu0 0.0
  %690 = vmatprep.subr.mxu0 0.0
  %691 = vmatpush1.msra.mxu0 0.0
  %692 = vmatprep.subr.mxu0 0.0
  %693 = vmatpush1.msra.mxu0 0.0
  %694 = vmatprep.subr.mxu0 0.0
  %695 = vmatpush1.msra.mxu0 0.0
  %696 = vmatprep.subr.mxu0 0.0
  %697 = vmatpush1.msra.mxu0 0.0
  %698 = vmatprep.subr.mxu0 0.0
  %699 = vmatpush1.msra.mxu0 0.0
  %700 = vmatprep.subr.mxu0 0.0
  %701 = vmatpush1.msra.mxu0 0.0
  %702 = vmatprep.subr.mxu0 0.0
  %703 = vmatpush1.msra.mxu0 0.0
  %704 = vmatprep.subr.mxu0 0.0
  %705 = vmatpush1.msra.mxu0 0.0
  %706 = vmatprep.subr.mxu0 0.0
  %707 = vmatpush1.msra.mxu0 0.0
  %708 = vmatprep.subr.mxu0 0.0
  %709 = vmatpush1.msra.mxu0 0.0
  %710 = vmatprep.subr.mxu0 0.0
  %711 = vmatpush1.msra.mxu0 0.0
  %712 = vmatprep.subr.mxu0 0.0
  %713 = vmatpush1.msra.mxu0 0.0
  %714 = vmatprep.subr.mxu0 0.0
  %715 = vmatpush1.msra.mxu0 0.0
  %716 = vmatprep.subr.mxu0 0.0
  %717 = vmatpush1.msra.mxu0 0.0
  %718 = vmatprep.subr.mxu0 0.0
  %719 = vmatpush1.msra.mxu0 0.0
  %720 = vmatprep.subr.mxu0 0.0
  %721 = vmatpush1.msra.mxu0 0.0
  %722 = vmatprep.mubr.f32.mxu0 0.0
  %723 = vmatmul.mubr.f32.gmra.mrb[0].mxu0 %v656
  %v724 = vpop.f32.mrb[0].mxu0
  %v725 = vadd.f32 0.0, %v724
  %v726 = vpop.f32.mrb[0].mxu0
  %727 = vdwg.mxu0
  %vm728 = vcmask 31744
  %v730 = vsel %vm728, %v557, 0
  %vm732 = vcmask 1043456
  %v734 = vsel %vm732, %v725, 0
  %736 = vmatprep.subr.mxu0 0.0
  %737 = vmatpush1.msra.mxu0 %v734
  %738 = vmatprep.subr.mxu0 0.0
  %739 = vmatpush1.msra.mxu0 0.0
  %740 = vmatprep.subr.mxu0 0.0
  %741 = vmatpush1.msra.mxu0 0.0
  %742 = vmatprep.subr.mxu0 0.0
  %743 = vmatpush1.msra.mxu0 0.0
  %744 = vmatprep.subr.mxu0 0.0
  %745 = vmatpush1.msra.mxu0 0.0
  %746 = vmatprep.subr.mxu0 0.0
  %747 = vmatpush1.msra.mxu0 0.0
  %748 = vmatprep.subr.mxu0 0.0
  %749 = vmatpush1.msra.mxu0 0.0
  %750 = vmatprep.subr.mxu0 0.0
  %751 = vmatpush1.msra.mxu0 0.0
  %752 = vmatprep.subr.mxu0 0.0
  %753 = vmatpush1.msra.mxu0 0.0
  %754 = vmatprep.subr.mxu0 0.0
  %755 = vmatpush1.msra.mxu0 0.0
  %756 = vmatprep.subr.mxu0 0.0
  %757 = vmatpush1.msra.mxu0 0.0
  %758 = vmatprep.subr.mxu0 0.0
  %759 = vmatpush1.msra.mxu0 0.0
  %760 = vmatprep.subr.mxu0 0.0
  %761 = vmatpush1.msra.mxu0 0.0
  %762 = vmatprep.subr.mxu0 0.0
  %763 = vmatpush1.msra.mxu0 0.0
  %764 = vmatprep.subr.mxu0 0.0
  %765 = vmatpush1.msra.mxu0 0.0
  %766 = vmatprep.subr.mxu0 0.0
  %767 = vmatpush1.msra.mxu0 0.0
  %768 = vmatprep.subr.mxu0 0.0
  %769 = vmatpush1.msra.mxu0 0.0
  %770 = vmatprep.subr.mxu0 0.0
  %771 = vmatpush1.msra.mxu0 0.0
  %772 = vmatprep.subr.mxu0 0.0
  %773 = vmatpush1.msra.mxu0 0.0
  %774 = vmatprep.subr.mxu0 0.0
  %775 = vmatpush1.msra.mxu0 0.0
  %776 = vmatprep.subr.mxu0 0.0
  %777 = vmatpush1.msra.mxu0 0.0
  %778 = vmatprep.subr.mxu0 0.0
  %779 = vmatpush1.msra.mxu0 0.0
  %780 = vmatprep.subr.mxu0 0.0
  %781 = vmatpush1.msra.mxu0 0.0
  %782 = vmatprep.subr.mxu0 0.0
  %783 = vmatpush1.msra.mxu0 0.0
  %784 = vmatprep.subr.mxu0 0.0
  %785 = vmatpush1.msra.mxu0 0.0
  %786 = vmatprep.subr.mxu0 0.0
  %787 = vmatpush1.msra.mxu0 0.0
  %788 = vmatprep.subr.mxu0 0.0
  %789 = vmatpush1.msra.mxu0 0.0
  %790 = vmatprep.subr.mxu0 0.0
  %791 = vmatpush1.msra.mxu0 0.0
  %792 = vmatprep.subr.mxu0 0.0
  %793 = vmatpush1.msra.mxu0 0.0
  %794 = vmatprep.subr.mxu0 0.0
  %795 = vmatpush1.msra.mxu0 0.0
  %796 = vmatprep.subr.mxu0 0.0
  %797 = vmatpush1.msra.mxu0 0.0
  %798 = vmatprep.subr.mxu0 0.0
  %799 = vmatpush1.msra.mxu0 0.0
  %800 = vmatprep.mubr.f32.mxu0 0.0
  %801 = vmatmul.mubr.f32.gmra.mrb[0].mxu0 %v730
  %v802 = vpop.f32.mrb[0].mxu0
  %v803 = vadd.f32 0.0, %v802
  %v804 = vpop.f32.mrb[0].mxu0
  %805 = vdwg.mxu0
  %v806 = vsub.f32 %v649, %v803
  %v807 = vmul.f32 %v806, %v806
  %808 = vmatprep.subr.mxu0 0.0
  %809 = vmatpush1.msra.mxu0 %v807
  %810 = vmatprep.subr.mxu0 0.0
  %811 = vmatpush1.msra.mxu0 0.0
  %812 = vmatprep.subr.mxu0 0.0
  %813 = vmatpush1.msra.mxu0 0.0
  %814 = vmatprep.subr.mxu0 0.0
  %815 = vmatpush1.msra.mxu0 0.0
  %816 = vmatprep.subr.mxu0 0.0
  %817 = vmatpush1.msra.mxu0 0.0
  %818 = vmatprep.subr.mxu0 0.0
  %819 = vmatpush1.msra.mxu0 0.0
  %820 = vmatprep.subr.mxu0 0.0
  %821 = vmatpush1.msra.mxu0 0.0
  %822 = vmatprep.subr.mxu0 0.0
  %823 = vmatpush1.msra.mxu0 0.0
  %824 = vmatprep.subr.mxu0 0.0
  %825 = vmatpush1.msra.mxu0 0.0
  %826 = vmatprep.subr.mxu0 0.0
  %827 = vmatpush1.msra.mxu0 0.0
  %828 = vmatprep.subr.mxu0 0.0
  %829 = vmatpush1.msra.mxu0 0.0
  %830 = vmatprep.subr.mxu0 0.0
  %831 = vmatpush1.msra.mxu0 0.0
  %832 = vmatprep.subr.mxu0 0.0
  %833 = vmatpush1.msra.mxu0 0.0
  %834 = vmatprep.subr.mxu0 0.0
  %835 = vmatpush1.msra.mxu0 0.0
  %836 = vmatprep.subr.mxu0 0.0
  %837 = vmatpush1.msra.mxu0 0.0
  %838 = vmatprep.subr.mxu0 0.0
  %839 = vmatpush1.msra.mxu0 0.0
  %840 = vmatprep.subr.mxu0 0.0
  %841 = vmatpush1.msra.mxu0 0.0
  %842 = vmatprep.subr.mxu0 0.0
  %843 = vmatpush1.msra.mxu0 0.0
  %844 = vmatprep.subr.mxu0 0.0
  %845 = vmatpush1.msra.mxu0 0.0
  %846 = vmatprep.subr.mxu0 0.0
  %847 = vmatpush1.msra.mxu0 0.0
  %848 = vmatprep.subr.mxu0 0.0
  %849 = vmatpush1.msra.mxu0 0.0
  %850 = vmatprep.subr.mxu0 0.0
  %851 = vmatpush1.msra.mxu0 0.0
  %852 = vmatprep.subr.mxu0 0.0
  %853 = vmatpush1.msra.mxu0 0.0
  %854 = vmatprep.subr.mxu0 0.0
  %855 = vmatpush1.msra.mxu0 0.0
  %856 = vmatprep.subr.mxu0 0.0
  %857 = vmatpush1.msra.mxu0 0.0
  %858 = vmatprep.subr.mxu0 0.0
  %859 = vmatpush1.msra.mxu0 0.0
  %860 = vmatprep.subr.mxu0 0.0
  %861 = vmatpush1.msra.mxu0 0.0
  %862 = vmatprep.subr.mxu0 0.0
  %863 = vmatpush1.msra.mxu0 0.0
  %864 = vmatprep.subr.mxu0 0.0
  %865 = vmatpush1.msra.mxu0 0.0
  %866 = vmatprep.subr.mxu0 0.0
  %867 = vmatpush1.msra.mxu0 0.0
  %868 = vmatprep.subr.mxu0 0.0
  %869 = vmatpush1.msra.mxu0 0.0
  %870 = vmatprep.subr.mxu0 0.0
  %871 = vmatpush1.msra.mxu0 0.0
  %872 = vmatprep.mubr.f32.mxu0 0.0
  %873 = vmatmul.mubr.f32.gmra.mrb[0].mxu0 %v656
  %v874 = vpop.f32.mrb[0].mxu0
  %v875 = vadd.f32 0.0, %v874
  %v876 = vpop.f32.mrb[0].mxu0
  %877 = vdwg.mxu0
  %v879 = vsel %vm732, %v875, 0
  %881 = vmatprep.subr.mxu0 0.0
  %882 = vmatpush1.msra.mxu0 %v879
  %883 = vmatprep.subr.mxu0 0.0
  %884 = vmatpush1.msra.mxu0 0.0
  %885 = vmatprep.subr.mxu0 0.0
  %886 = vmatpush1.msra.mxu0 0.0
  %887 = vmatprep.subr.mxu0 0.0
  %888 = vmatpush1.msra.mxu0 0.0
  %889 = vmatprep.subr.mxu0 0.0
  %890 = vmatpush1.msra.mxu0 0.0
  %891 = vmatprep.subr.mxu0 0.0
  %892 = vmatpush1.msra.mxu0 0.0
  %893 = vmatprep.subr.mxu0 0.0
  %894 = vmatpush1.msra.mxu0 0.0
  %895 = vmatprep.subr.mxu0 0.0
  %896 = vmatpush1.msra.mxu0 0.0
  %897 = vmatprep.subr.mxu0 0.0
  %898 = vmatpush1.msra.mxu0 0.0
  %899 = vmatprep.subr.mxu0 0.0
  %900 = vmatpush1.msra.mxu0 0.0
  %901 = vmatprep.subr.mxu0 0.0
  %902 = vmatpush1.msra.mxu0 0.0
  %903 = vmatprep.subr.mxu0 0.0
  %904 = vmatpush1.msra.mxu0 0.0
  %905 = vmatprep.subr.mxu0 0.0
  %906 = vmatpush1.msra.mxu0 0.0
  %907 = vmatprep.subr.mxu0 0.0
  %908 = vmatpush1.msra.mxu0 0.0
  %909 = vmatprep.subr.mxu0 0.0
  %910 = vmatpush1.msra.mxu0 0.0
  %911 = vmatprep.subr.mxu0 0.0
  %912 = vmatpush1.msra.mxu0 0.0
  %913 = vmatprep.subr.mxu0 0.0
  %914 = vmatpush1.msra.mxu0 0.0
  %915 = vmatprep.subr.mxu0 0.0
  %916 = vmatpush1.msra.mxu0 0.0
  %917 = vmatprep.subr.mxu0 0.0
  %918 = vmatpush1.msra.mxu0 0.0
  %919 = vmatprep.subr.mxu0 0.0
  %920 = vmatpush1.msra.mxu0 0.0
  %921 = vmatprep.subr.mxu0 0.0
  %922 = vmatpush1.msra.mxu0 0.0
  %923 = vmatprep.subr.mxu0 0.0
  %924 = vmatpush1.msra.mxu0 0.0
  %925 = vmatprep.subr.mxu0 0.0
  %926 = vmatpush1.msra.mxu0 0.0
  %927 = vmatprep.subr.mxu0 0.0
  %928 = vmatpush1.msra.mxu0 0.0
  %929 = vmatprep.subr.mxu0 0.0
  %930 = vmatpush1.msra.mxu0 0.0
  %931 = vmatprep.subr.mxu0 0.0
  %932 = vmatpush1.msra.mxu0 0.0
  %933 = vmatprep.subr.mxu0 0.0
  %934 = vmatpush1.msra.mxu0 0.0
  %935 = vmatprep.subr.mxu0 0.0
  %936 = vmatpush1.msra.mxu0 0.0
  %937 = vmatprep.subr.mxu0 0.0
  %938 = vmatpush1.msra.mxu0 0.0
  %939 = vmatprep.subr.mxu0 0.0
  %940 = vmatpush1.msra.mxu0 0.0
  %941 = vmatprep.subr.mxu0 0.0
  %942 = vmatpush1.msra.mxu0 0.0
  %943 = vmatprep.subr.mxu0 0.0
  %944 = vmatpush1.msra.mxu0 0.0
  %945 = vmatprep.mubr.f32.mxu0 0.0
  %946 = vmatmul.mubr.f32.gmra.mrb[0].mxu0 %v730
  %v947 = vpop.f32.mrb[0].mxu0
  %v948 = vadd.f32 1e-05, %v947
  %v949 = vpop.f32.mrb[0].mxu0
  %950 = vdwg.mxu0
  %v951 = vrsqrt.pop %v948
  %v952 = vmul.f32 %v806, %v951
  %v953 = vmul.f32 %v952, %v652
  %v954 = vadd.f32 %v953, %v653
  %v955 = vmax.f32 %v954, 0.0
  %v956 = vld [vmem:[%s16] sm:$0xff]
  %v957 = vld [vmem:[%s16 + $0x8] sm:$0xff]
  %v958 = vld [vmem:[%s16 + $0x10] sm:$0xff]
  %v959 = vld [vmem:[%s16 + $0x18] sm:$0xff]
  %v960 = vld [vmem:[%s16 + $0x20] sm:$0xff]
  %v961 = vld [vmem:[%s16 + $0x28] sm:$0xff]
  %v962 = vld [vmem:[%s16 + $0x30] sm:$0xff]
  %v963 = vld [vmem:[%s16 + $0x38] sm:$0xff]
  %v964 = vld [vmem:[%s16 + $0x40] sm:$0xff]
  %v965 = vld [vmem:[%s16 + $0x48] sm:$0xff]
  %v966 = vld [vmem:[%s16 + $0x50] sm:$0xff]
  %v967 = vld [vmem:[%s16 + $0x58] sm:$0xff]
  %v968 = vld [vmem:[%s16 + $0x60] sm:$0xff]
  %v969 = vld [vmem:[%s16 + $0x68] sm:$0xff]
  %v970 = vld [vmem:[%s16 + $0x70] sm:$0xff]
  %v971 = vld [vmem:[%s16 + $0x78] sm:$0xff]
  %v972 = vld [vmem:[%s17] sm:$0x1]
  %v974 = vlaneseq
  %v975 = vshrl.u32 %v974, 7
  %v976 = vsub.s32 0, %v975
  %v977 = vrot.slane %v972, %v976
  %979 = vmatprep.subr.mxu0 0.0
  %980 = vmatpush1.msra.mxu0 %v956
  %981 = vmatprep.subr.mxu0 0.0
  %982 = vmatpush1.msra.mxu0 %v957
  %983 = vmatprep.subr.mxu0 0.0
  %984 = vmatpush1.msra.mxu0 %v958
  %985 = vmatprep.subr.mxu0 0.0
  %986 = vmatpush1.msra.mxu0 %v959
  %987 = vmatprep.subr.mxu0 0.0
  %988 = vmatpush1.msra.mxu0 %v960
  %989 = vmatprep.subr.mxu0 0.0
  %990 = vmatpush1.msra.mxu0 %v961
  %991 = vmatprep.subr.mxu0 0.0
  %992 = vmatpush1.msra.mxu0 %v962
  %993 = vmatprep.subr.mxu0 0.0
  %994 = vmatpush1.msra.mxu0 %v963
  %995 = vmatprep.subr.mxu0 0.0
  %996 = vmatpush1.msra.mxu0 %v964
  %997 = vmatprep.subr.mxu0 0.0
  %998 = vmatpush1.msra.mxu0 %v965
  %999 = vmatprep.subr.mxu0 0.0
  %1000 = vmatpush1.msra.mxu0 %v966
  %1001 = vmatprep.subr.mxu0 0.0
  %1002 = vmatpush1.msra.mxu0 %v967
  %1003 = vmatprep.subr.mxu0 0.0
  %1004 = vmatpush1.msra.mxu0 %v968
  %1005 = vmatprep.subr.mxu0 0.0
  %1006 = vmatpush1.msra.mxu0 %v969
  %1007 = vmatprep.subr.mxu0 0.0
  %1008 = vmatpush1.msra.mxu0 %v970
  %1009 = vmatprep.subr.mxu0 0.0
  %1010 = vmatpush1.msra.mxu0 %v971
  %1011 = vmatprep.subr.mxu0 0.0
  %1012 = vmatpush1.msra.mxu0 0.0
  %1013 = vmatprep.subr.mxu0 0.0
  %1014 = vmatpush1.msra.mxu0 0.0
  %1015 = vmatprep.subr.mxu0 0.0
  %1016 = vmatpush1.msra.mxu0 0.0
  %1017 = vmatprep.subr.mxu0 0.0
  %1018 = vmatpush1.msra.mxu0 0.0
  %1019 = vmatprep.subr.mxu0 0.0
  %1020 = vmatpush1.msra.mxu0 0.0
  %1021 = vmatprep.subr.mxu0 0.0
  %1022 = vmatpush1.msra.mxu0 0.0
  %1023 = vmatprep.subr.mxu0 0.0
  %1024 = vmatpush1.msra.mxu0 0.0
  %1025 = vmatprep.subr.mxu0 0.0
  %1026 = vmatpush1.msra.mxu0 0.0
  %1027 = vmatprep.subr.mxu0 0.0
  %1028 = vmatpush1.msra.mxu0 0.0
  %1029 = vmatprep.subr.mxu0 0.0
  %1030 = vmatpush1.msra.mxu0 0.0
  %1031 = vmatprep.subr.mxu0 0.0
  %1032 = vmatpush1.msra.mxu0 0.0
  %1033 = vmatprep.subr.mxu0 0.0
  %1034 = vmatpush1.msra.mxu0 0.0
  %1035 = vmatprep.subr.mxu0 0.0
  %1036 = vmatpush1.msra.mxu0 0.0
  %1037 = vmatprep.subr.mxu0 0.0
  %1038 = vmatpush1.msra.mxu0 0.0
  %1039 = vmatprep.subr.mxu0 0.0
  %1040 = vmatpush1.msra.mxu0 0.0
  %1041 = vmatprep.subr.mxu0 0.0
  %1042 = vmatpush1.msra.mxu0 0.0
  %1043 = vmatprep.mubr.f32.mxu0 0.0
  %1044 = vmatmul.mubr.f32.gmra.mrb[0].mxu0 %v955
  %v1045 = vpop.f32.mrb[0].mxu0
  %v1046 = vadd.f32 %v977, %v1045
  %v1047 = vpop.f32.mrb[0].mxu0
  %1048 = vdwg.mxu0
  %v1049 = vld [vmem:[%s18] sm:$0xff]
  %v1050 = vld [vmem:[%s19] sm:$0xff]
  %1051 = vmatprep.subr.mxu0 0.0
  %1052 = vmatpush1.msra.mxu0 %v1046
  %1053 = vmatprep.subr.mxu0 0.0
  %1054 = vmatpush1.msra.mxu0 0.0
  %1055 = vmatprep.subr.mxu0 0.0
  %1056 = vmatpush1.msra.mxu0 0.0
  %1057 = vmatprep.subr.mxu0 0.0
  %1058 = vmatpush1.msra.mxu0 0.0
  %1059 = vmatprep.subr.mxu0 0.0
  %1060 = vmatpush1.msra.mxu0 0.0
  %1061 = vmatprep.subr.mxu0 0.0
  %1062 = vmatpush1.msra.mxu0 0.0
  %1063 = vmatprep.subr.mxu0 0.0
  %1064 = vmatpush1.msra.mxu0 0.0
  %1065 = vmatprep.subr.mxu0 0.0
  %1066 = vmatpush1.msra.mxu0 0.0
  %1067 = vmatprep.subr.mxu0 0.0
  %1068 = vmatpush1.msra.mxu0 0.0
  %1069 = vmatprep.subr.mxu0 0.0
  %1070 = vmatpush1.msra.mxu0 0.0
  %1071 = vmatprep.subr.mxu0 0.0
  %1072 = vmatpush1.msra.mxu0 0.0
  %1073 = vmatprep.subr.mxu0 0.0
  %1074 = vmatpush1.msra.mxu0 0.0
  %1075 = vmatprep.subr.mxu0 0.0
  %1076 = vmatpush1.msra.mxu0 0.0
  %1077 = vmatprep.subr.mxu0 0.0
  %1078 = vmatpush1.msra.mxu0 0.0
  %1079 = vmatprep.subr.mxu0 0.0
  %1080 = vmatpush1.msra.mxu0 0.0
  %1081 = vmatprep.subr.mxu0 0.0
  %1082 = vmatpush1.msra.mxu0 0.0
  %1083 = vmatprep.subr.mxu0 0.0
  %1084 = vmatpush1.msra.mxu0 0.0
  %1085 = vmatprep.subr.mxu0 0.0
  %1086 = vmatpush1.msra.mxu0 0.0
  %1087 = vmatprep.subr.mxu0 0.0
  %1088 = vmatpush1.msra.mxu0 0.0
  %1089 = vmatprep.subr.mxu0 0.0
  %1090 = vmatpush1.msra.mxu0 0.0
  %1091 = vmatprep.subr.mxu0 0.0
  %1092 = vmatpush1.msra.mxu0 0.0
  %1093 = vmatprep.subr.mxu0 0.0
  %1094 = vmatpush1.msra.mxu0 0.0
  %1095 = vmatprep.subr.mxu0 0.0
  %1096 = vmatpush1.msra.mxu0 0.0
  %1097 = vmatprep.subr.mxu0 0.0
  %1098 = vmatpush1.msra.mxu0 0.0
  %1099 = vmatprep.subr.mxu0 0.0
  %1100 = vmatpush1.msra.mxu0 0.0
  %1101 = vmatprep.subr.mxu0 0.0
  %1102 = vmatpush1.msra.mxu0 0.0
  %1103 = vmatprep.subr.mxu0 0.0
  %1104 = vmatpush1.msra.mxu0 0.0
  %1105 = vmatprep.subr.mxu0 0.0
  %1106 = vmatpush1.msra.mxu0 0.0
  %1107 = vmatprep.subr.mxu0 0.0
  %1108 = vmatpush1.msra.mxu0 0.0
  %1109 = vmatprep.subr.mxu0 0.0
  %1110 = vmatpush1.msra.mxu0 0.0
  %1111 = vmatprep.subr.mxu0 0.0
  %1112 = vmatpush1.msra.mxu0 0.0
  %1113 = vmatprep.subr.mxu0 0.0
  %1114 = vmatpush1.msra.mxu0 0.0
  %1115 = vmatprep.mubr.f32.mxu0 0.0
  %1116 = vmatmul.mubr.f32.gmra.mrb[0].mxu0 %v656
  %v1117 = vpop.f32.mrb[0].mxu0
  %v1118 = vadd.f32 0.0, %v1117
  %v1119 = vpop.f32.mrb[0].mxu0
  %1120 = vdwg.mxu0
  %v1122 = vsel %vm732, %v1118, 0
  %1124 = vmatprep.subr.mxu0 0.0
  %1125 = vmatpush1.msra.mxu0 %v1122
  %1126 = vmatprep.subr.mxu0 0.0
  %1127 = vmatpush1.msra.mxu0 0.0
  %1128 = vmatprep.subr.mxu0 0.0
  %1129 = vmatpush1.msra.mxu0 0.0
  %1130 = vmatprep.subr.mxu0 0.0
  %1131 = vmatpush1.msra.mxu0 0.0
  %1132 = vmatprep.subr.mxu0 0.0
  %1133 = vmatpush1.msra.mxu0 0.0
  %1134 = vmatprep.subr.mxu0 0.0
  %1135 = vmatpush1.msra.mxu0 0.0
  %1136 = vmatprep.subr.mxu0 0.0
  %1137 = vmatpush1.msra.mxu0 0.0
  %1138 = vmatprep.subr.mxu0 0.0
  %1139 = vmatpush1.msra.mxu0 0.0
  %1140 = vmatprep.subr.mxu0 0.0
  %1141 = vmatpush1.msra.mxu0 0.0
  %1142 = vmatprep.subr.mxu0 0.0
  %1143 = vmatpush1.msra.mxu0 0.0
  %1144 = vmatprep.subr.mxu0 0.0
  %1145 = vmatpush1.msra.mxu0 0.0
  %1146 = vmatprep.subr.mxu0 0.0
  %1147 = vmatpush1.msra.mxu0 0.0
  %1148 = vmatprep.subr.mxu0 0.0
  %1149 = vmatpush1.msra.mxu0 0.0
  %1150 = vmatprep.subr.mxu0 0.0
  %1151 = vmatpush1.msra.mxu0 0.0
  %1152 = vmatprep.subr.mxu0 0.0
  %1153 = vmatpush1.msra.mxu0 0.0
  %1154 = vmatprep.subr.mxu0 0.0
  %1155 = vmatpush1.msra.mxu0 0.0
  %1156 = vmatprep.subr.mxu0 0.0
  %1157 = vmatpush1.msra.mxu0 0.0
  %1158 = vmatprep.subr.mxu0 0.0
  %1159 = vmatpush1.msra.mxu0 0.0
  %1160 = vmatprep.subr.mxu0 0.0
  %1161 = vmatpush1.msra.mxu0 0.0
  %1162 = vmatprep.subr.mxu0 0.0
  %1163 = vmatpush1.msra.mxu0 0.0
  %1164 = vmatprep.subr.mxu0 0.0
  %1165 = vmatpush1.msra.mxu0 0.0
  %1166 = vmatprep.subr.mxu0 0.0
  %1167 = vmatpush1.msra.mxu0 0.0
  %1168 = vmatprep.subr.mxu0 0.0
  %1169 = vmatpush1.msra.mxu0 0.0
  %1170 = vmatprep.subr.mxu0 0.0
  %1171 = vmatpush1.msra.mxu0 0.0
  %1172 = vmatprep.subr.mxu0 0.0
  %1173 = vmatpush1.msra.mxu0 0.0
  %1174 = vmatprep.subr.mxu0 0.0
  %1175 = vmatpush1.msra.mxu0 0.0
  %1176 = vmatprep.subr.mxu0 0.0
  %1177 = vmatpush1.msra.mxu0 0.0
  %1178 = vmatprep.subr.mxu0 0.0
  %1179 = vmatpush1.msra.mxu0 0.0
  %1180 = vmatprep.subr.mxu0 0.0
  %1181 = vmatpush1.msra.mxu0 0.0
  %1182 = vmatprep.subr.mxu0 0.0
  %1183 = vmatpush1.msra.mxu0 0.0
  %1184 = vmatprep.subr.mxu0 0.0
  %1185 = vmatpush1.msra.mxu0 0.0
  %1186 = vmatprep.subr.mxu0 0.0
  %1187 = vmatpush1.msra.mxu0 0.0
  %1188 = vmatprep.mubr.f32.mxu0 0.0
  %1189 = vmatmul.mubr.f32.gmra.mrb[0].mxu0 %v730
  %v1190 = vpop.f32.mrb[0].mxu0
  %v1191 = vadd.f32 0.0, %v1190
  %v1192 = vpop.f32.mrb[0].mxu0
  %1193 = vdwg.mxu0
  %v1194 = vsub.f32 %v1046, %v1191
  %v1195 = vmul.f32 %v1194, %v1194
  %1196 = vmatprep.subr.mxu0 0.0
  %1197 = vmatpush1.msra.mxu0 %v1195
  %1198 = vmatprep.subr.mxu0 0.0
  %1199 = vmatpush1.msra.mxu0 0.0
  %1200 = vmatprep.subr.mxu0 0.0
  %1201 = vmatpush1.msra.mxu0 0.0
  %1202 = vmatprep.subr.mxu0 0.0
  %1203 = vmatpush1.msra.mxu0 0.0
  %1204 = vmatprep.subr.mxu0 0.0
  %1205 = vmatpush1.msra.mxu0 0.0
  %1206 = vmatprep.subr.mxu0 0.0
  %1207 = vmatpush1.msra.mxu0 0.0
  %1208 = vmatprep.subr.mxu0 0.0
  %1209 = vmatpush1.msra.mxu0 0.0
  %1210 = vmatprep.subr.mxu0 0.0
  %1211 = vmatpush1.msra.mxu0 0.0
  %1212 = vmatprep.subr.mxu0 0.0
  %1213 = vmatpush1.msra.mxu0 0.0
  %1214 = vmatprep.subr.mxu0 0.0
  %1215 = vmatpush1.msra.mxu0 0.0
  %1216 = vmatprep.subr.mxu0 0.0
  %1217 = vmatpush1.msra.mxu0 0.0
  %1218 = vmatprep.subr.mxu0 0.0
  %1219 = vmatpush1.msra.mxu0 0.0
  %1220 = vmatprep.subr.mxu0 0.0
  %1221 = vmatpush1.msra.mxu0 0.0
  %1222 = vmatprep.subr.mxu0 0.0
  %1223 = vmatpush1.msra.mxu0 0.0
  %1224 = vmatprep.subr.mxu0 0.0
  %1225 = vmatpush1.msra.mxu0 0.0
  %1226 = vmatprep.subr.mxu0 0.0
  %1227 = vmatpush1.msra.mxu0 0.0
  %1228 = vmatprep.subr.mxu0 0.0
  %1229 = vmatpush1.msra.mxu0 0.0
  %1230 = vmatprep.subr.mxu0 0.0
  %1231 = vmatpush1.msra.mxu0 0.0
  %1232 = vmatprep.subr.mxu0 0.0
  %1233 = vmatpush1.msra.mxu0 0.0
  %1234 = vmatprep.subr.mxu0 0.0
  %1235 = vmatpush1.msra.mxu0 0.0
  %1236 = vmatprep.subr.mxu0 0.0
  %1237 = vmatpush1.msra.mxu0 0.0
  %1238 = vmatprep.subr.mxu0 0.0
  %1239 = vmatpush1.msra.mxu0 0.0
  %1240 = vmatprep.subr.mxu0 0.0
  %1241 = vmatpush1.msra.mxu0 0.0
  %1242 = vmatprep.subr.mxu0 0.0
  %1243 = vmatpush1.msra.mxu0 0.0
  %1244 = vmatprep.subr.mxu0 0.0
  %1245 = vmatpush1.msra.mxu0 0.0
  %1246 = vmatprep.subr.mxu0 0.0
  %1247 = vmatpush1.msra.mxu0 0.0
  %1248 = vmatprep.subr.mxu0 0.0
  %1249 = vmatpush1.msra.mxu0 0.0
  %1250 = vmatprep.subr.mxu0 0.0
  %1251 = vmatpush1.msra.mxu0 0.0
  %1252 = vmatprep.subr.mxu0 0.0
  %1253 = vmatpush1.msra.mxu0 0.0
  %1254 = vmatprep.subr.mxu0 0.0
  %1255 = vmatpush1.msra.mxu0 0.0
  %1256 = vmatprep.subr.mxu0 0.0
  %1257 = vmatpush1.msra.mxu0 0.0
  %1258 = vmatprep.subr.mxu0 0.0
  %1259 = vmatpush1.msra.mxu0 0.0
  %1260 = vmatprep.mubr.f32.mxu0 0.0
  %1261 = vmatmul.mubr.f32.gmra.mrb[0].mxu0 %v656
  %v1262 = vpop.f32.mrb[0].mxu0
  %v1263 = vadd.f32 0.0, %v1262
  %v1264 = vpop.f32.mrb[0].mxu0
  %1265 = vdwg.mxu0
  %v1267 = vsel %vm732, %v1263, 0
  %1269 = vmatprep.subr.mxu0 0.0
  %1270 = vmatpush1.msra.mxu0 %v1267
  %1271 = vmatprep.subr.mxu0 0.0
  %1272 = vmatpush1.msra.mxu0 0.0
  %1273 = vmatprep.subr.mxu0 0.0
  %1274 = vmatpush1.msra.mxu0 0.0
  %1275 = vmatprep.subr.mxu0 0.0
  %1276 = vmatpush1.msra.mxu0 0.0
  %1277 = vmatprep.subr.mxu0 0.0
  %1278 = vmatpush1.msra.mxu0 0.0
  %1279 = vmatprep.subr.mxu0 0.0
  %1280 = vmatpush1.msra.mxu0 0.0
  %1281 = vmatprep.subr.mxu0 0.0
  %1282 = vmatpush1.msra.mxu0 0.0
  %1283 = vmatprep.subr.mxu0 0.0
  %1284 = vmatpush1.msra.mxu0 0.0
  %1285 = vmatprep.subr.mxu0 0.0
  %1286 = vmatpush1.msra.mxu0 0.0
  %1287 = vmatprep.subr.mxu0 0.0
  %1288 = vmatpush1.msra.mxu0 0.0
  %1289 = vmatprep.subr.mxu0 0.0
  %1290 = vmatpush1.msra.mxu0 0.0
  %1291 = vmatprep.subr.mxu0 0.0
  %1292 = vmatpush1.msra.mxu0 0.0
  %1293 = vmatprep.subr.mxu0 0.0
  %1294 = vmatpush1.msra.mxu0 0.0
  %1295 = vmatprep.subr.mxu0 0.0
  %1296 = vmatpush1.msra.mxu0 0.0
  %1297 = vmatprep.subr.mxu0 0.0
  %1298 = vmatpush1.msra.mxu0 0.0
  %1299 = vmatprep.subr.mxu0 0.0
  %1300 = vmatpush1.msra.mxu0 0.0
  %1301 = vmatprep.subr.mxu0 0.0
  %1302 = vmatpush1.msra.mxu0 0.0
  %1303 = vmatprep.subr.mxu0 0.0
  %1304 = vmatpush1.msra.mxu0 0.0
  %1305 = vmatprep.subr.mxu0 0.0
  %1306 = vmatpush1.msra.mxu0 0.0
  %1307 = vmatprep.subr.mxu0 0.0
  %1308 = vmatpush1.msra.mxu0 0.0
  %1309 = vmatprep.subr.mxu0 0.0
  %1310 = vmatpush1.msra.mxu0 0.0
  %1311 = vmatprep.subr.mxu0 0.0
  %1312 = vmatpush1.msra.mxu0 0.0
  %1313 = vmatprep.subr.mxu0 0.0
  %1314 = vmatpush1.msra.mxu0 0.0
  %1315 = vmatprep.subr.mxu0 0.0
  %1316 = vmatpush1.msra.mxu0 0.0
  %1317 = vmatprep.subr.mxu0 0.0
  %1318 = vmatpush1.msra.mxu0 0.0
  %1319 = vmatprep.subr.mxu0 0.0
  %1320 = vmatpush1.msra.mxu0 0.0
  %1321 = vmatprep.subr.mxu0 0.0
  %1322 = vmatpush1.msra.mxu0 0.0
  %1323 = vmatprep.subr.mxu0 0.0
  %1324 = vmatpush1.msra.mxu0 0.0
  %1325 = vmatprep.subr.mxu0 0.0
  %1326 = vmatpush1.msra.mxu0 0.0
  %1327 = vmatprep.subr.mxu0 0.0
  %1328 = vmatpush1.msra.mxu0 0.0
  %1329 = vmatprep.subr.mxu0 0.0
  %1330 = vmatpush1.msra.mxu0 0.0
  %1331 = vmatprep.subr.mxu0 0.0
  %1332 = vmatpush1.msra.mxu0 0.0
  %1333 = vmatprep.mubr.f32.mxu0 0.0
  %1334 = vmatmul.mubr.f32.gmra.mrb[0].mxu0 %v730
  %v1335 = vpop.f32.mrb[0].mxu0
  %v1336 = vadd.f32 1e-05, %v1335
  %v1337 = vpop.f32.mrb[0].mxu0
  %1338 = vdwg.mxu0
  %v1339 = vrsqrt.pop %v1336
  %v1340 = vmul.f32 %v1194, %v1339
  %v1341 = vmul.f32 %v1340, %v1049
  %v1342 = vadd.f32 %v1341, %v1050
  %v1343 = vmax.f32 %v1342, 0.0
  %v1344 = vld [vmem:[%s2] sm:$0xff]
  %v1346 = vsel %vm136, %v1344, 0
  %1348 = vmatprep.subr.mxu0 0.0
  %1349 = vmatpush1.msra.mxu0 %v552
  %1350 = vmatprep.subr.mxu0 0.0
  %1351 = vmatpush1.msra.mxu0 %v553
  %1352 = vmatprep.subr.mxu0 0.0
  %1353 = vmatpush1.msra.mxu0 %v554
  %1354 = vmatprep.subr.mxu0 0.0
  %1355 = vmatpush1.msra.mxu0 %v555
  %1356 = vmatprep.subr.mxu0 0.0
  %1357 = vmatpush1.msra.mxu0 0.0
  %1358 = vmatprep.subr.mxu0 0.0
  %1359 = vmatpush1.msra.mxu0 0.0
  %1360 = vmatprep.subr.mxu0 0.0
  %1361 = vmatpush1.msra.mxu0 0.0
  %1362 = vmatprep.subr.mxu0 0.0
  %1363 = vmatpush1.msra.mxu0 0.0
  %1364 = vmatprep.subr.mxu0 0.0
  %1365 = vmatpush1.msra.mxu0 0.0
  %1366 = vmatprep.subr.mxu0 0.0
  %1367 = vmatpush1.msra.mxu0 0.0
  %1368 = vmatprep.subr.mxu0 0.0
  %1369 = vmatpush1.msra.mxu0 0.0
  %1370 = vmatprep.subr.mxu0 0.0
  %1371 = vmatpush1.msra.mxu0 0.0
  %1372 = vmatprep.subr.mxu0 0.0
  %1373 = vmatpush1.msra.mxu0 0.0
  %1374 = vmatprep.subr.mxu0 0.0
  %1375 = vmatpush1.msra.mxu0 0.0
  %1376 = vmatprep.subr.mxu0 0.0
  %1377 = vmatpush1.msra.mxu0 0.0
  %1378 = vmatprep.subr.mxu0 0.0
  %1379 = vmatpush1.msra.mxu0 0.0
  %1380 = vmatprep.subr.mxu0 0.0
  %1381 = vmatpush1.msra.mxu0 0.0
  %1382 = vmatprep.subr.mxu0 0.0
  %1383 = vmatpush1.msra.mxu0 0.0
  %1384 = vmatprep.subr.mxu0 0.0
  %1385 = vmatpush1.msra.mxu0 0.0
  %1386 = vmatprep.subr.mxu0 0.0
  %1387 = vmatpush1.msra.mxu0 0.0
  %1388 = vmatprep.subr.mxu0 0.0
  %1389 = vmatpush1.msra.mxu0 0.0
  %1390 = vmatprep.subr.mxu0 0.0
  %1391 = vmatpush1.msra.mxu0 0.0
  %1392 = vmatprep.subr.mxu0 0.0
  %1393 = vmatpush1.msra.mxu0 0.0
  %1394 = vmatprep.subr.mxu0 0.0
  %1395 = vmatpush1.msra.mxu0 0.0
  %1396 = vmatprep.subr.mxu0 0.0
  %1397 = vmatpush1.msra.mxu0 0.0
  %1398 = vmatprep.subr.mxu0 0.0
  %1399 = vmatpush1.msra.mxu0 0.0
  %1400 = vmatprep.subr.mxu0 0.0
  %1401 = vmatpush1.msra.mxu0 0.0
  %1402 = vmatprep.subr.mxu0 0.0
  %1403 = vmatpush1.msra.mxu0 0.0
  %1404 = vmatprep.subr.mxu0 0.0
  %1405 = vmatpush1.msra.mxu0 0.0
  %1406 = vmatprep.subr.mxu0 0.0
  %1407 = vmatpush1.msra.mxu0 0.0
  %1408 = vmatprep.subr.mxu0 0.0
  %1409 = vmatpush1.msra.mxu0 0.0
  %1410 = vmatprep.subr.mxu0 0.0
  %1411 = vmatpush1.msra.mxu0 0.0
  %1412 = vmatprep.mubr.f32.mxu0 0.0
  %1413 = vmatmul.mubr.f32.gmra.mrb[0].mxu0 %v1346
  %v1414 = vpop.f32.mrb[0].mxu0
  %v1415 = vadd.f32 %v1343, %v1414
  %v1416 = vpop.f32.mrb[0].mxu0
  %1417 = vdwg.mxu0
  %1418 = vst [vmem:[%s23] sm:$0xff] %v1415
  %1419 = vxpose.xlu0.b32.start [1/16] %v1344, 128
  %1420 = vxpose.xlu0.b32.cont [2/16] 0.0, 128
  %1421 = vxpose.xlu0.b32.cont [3/16] 0.0, 128
  %1422 = vxpose.xlu0.b32.cont [4/16] 0.0, 128
  %1423 = vxpose.xlu0.b32.cont [5/16] 0.0, 128
  %1424 = vxpose.xlu0.b32.cont [6/16] 0.0, 128
  %1425 = vxpose.xlu0.b32.cont [7/16] 0.0, 128
  %1426 = vxpose.xlu0.b32.cont [8/16] 0.0, 128
  %1427 = vxpose.xlu0.b32.cont [9/16] 0.0, 128
  %1428 = vxpose.xlu0.b32.cont [10/16] 0.0, 128
  %1429 = vxpose.xlu0.b32.cont [11/16] 0.0, 128
  %1430 = vxpose.xlu0.b32.cont [12/16] 0.0, 128
  %1431 = vxpose.xlu0.b32.cont [13/16] 0.0, 128
  %1432 = vxpose.xlu0.b32.cont [14/16] 0.0, 128
  %1433 = vxpose.xlu0.b32.cont [15/16] 0.0, 128
  %1434 = vxpose.xlu0.b32.end [16/16] 0.0, 128
  %v1435 = vpop.trf.xlu0
  %v1436 = vpop.trf.xlu0
  %v1437 = vpop.trf.xlu0
  %v1438 = vpop.trf.xlu0
  %v1439 = vpop.trf.xlu0
  %v1440 = vpop.trf.xlu0
  %v1441 = vpop.trf.xlu0
  %v1442 = vpop.trf.xlu0
  %v1443 = vpop.trf.xlu0
  %v1444 = vpop.trf.xlu0
  %v1445 = vpop.trf.xlu0
  %v1446 = vpop.trf.xlu0
  %v1447 = vpop.trf.xlu0
  %v1448 = vpop.trf.xlu0
  %v1449 = vpop.trf.xlu0
  %v1450 = vpop.trf.xlu0
  %v1452 = vsel %vm654, %v1435, 0
  %v1455 = vsel %vm654, %v1436, 0
  %v1458 = vsel %vm654, %v1437, 0
  %v1461 = vsel %vm654, %v1438, 0
  %1463 = vmatprep.subr.mxu0 0.0
  %1464 = vmatpush1.msra.mxu0 %v1343
  %1465 = vmatprep.subr.mxu0 0.0
  %1466 = vmatpush1.msra.mxu0 0.0
  %1467 = vmatprep.subr.mxu0 0.0
  %1468 = vmatpush1.msra.mxu0 0.0
  %1469 = vmatprep.subr.mxu0 0.0
  %1470 = vmatpush1.msra.mxu0 0.0
  %1471 = vmatprep.subr.mxu0 0.0
  %1472 = vmatpush1.msra.mxu0 0.0
  %1473 = vmatprep.subr.mxu0 0.0
  %1474 = vmatpush1.msra.mxu0 0.0
  %1475 = vmatprep.subr.mxu0 0.0
  %1476 = vmatpush1.msra.mxu0 0.0
  %1477 = vmatprep.subr.mxu0 0.0
  %1478 = vmatpush1.msra.mxu0 0.0
  %1479 = vmatprep.subr.mxu0 0.0
  %1480 = vmatpush1.msra.mxu0 0.0
  %1481 = vmatprep.subr.mxu0 0.0
  %1482 = vmatpush1.msra.mxu0 0.0
  %1483 = vmatprep.subr.mxu0 0.0
  %1484 = vmatpush1.msra.mxu0 0.0
  %1485 = vmatprep.subr.mxu0 0.0
  %1486 = vmatpush1.msra.mxu0 0.0
  %1487 = vmatprep.subr.mxu0 0.0
  %1488 = vmatpush1.msra.mxu0 0.0
  %1489 = vmatprep.subr.mxu0 0.0
  %1490 = vmatpush1.msra.mxu0 0.0
  %1491 = vmatprep.subr.mxu0 0.0
  %1492 = vmatpush1.msra.mxu0 0.0
  %1493 = vmatprep.subr.mxu0 0.0
  %1494 = vmatpush1.msra.mxu0 0.0
  %1495 = vmatprep.subr.mxu0 0.0
  %1496 = vmatpush1.msra.mxu0 0.0
  %1497 = vmatprep.subr.mxu0 0.0
  %1498 = vmatpush1.msra.mxu0 0.0
  %1499 = vmatprep.subr.mxu0 0.0
  %1500 = vmatpush1.msra.mxu0 0.0
  %1501 = vmatprep.subr.mxu0 0.0
  %1502 = vmatpush1.msra.mxu0 0.0
  %1503 = vmatprep.subr.mxu0 0.0
  %1504 = vmatpush1.msra.mxu0 0.0
  %1505 = vmatprep.subr.mxu0 0.0
  %1506 = vmatpush1.msra.mxu0 0.0
  %1507 = vmatprep.subr.mxu0 0.0
  %1508 = vmatpush1.msra.mxu0 0.0
  %1509 = vmatprep.subr.mxu0 0.0
  %1510 = vmatpush1.msra.mxu0 0.0
  %1511 = vmatprep.subr.mxu0 0.0
  %1512 = vmatpush1.msra.mxu0 0.0
  %1513 = vmatprep.subr.mxu0 0.0
  %1514 = vmatpush1.msra.mxu0 0.0
  %1515 = vmatprep.subr.mxu0 0.0
  %1516 = vmatpush1.msra.mxu0 0.0
  %1517 = vmatprep.subr.mxu0 0.0
  %1518 = vmatpush1.msra.mxu0 0.0
  %1519 = vmatprep.subr.mxu0 0.0
  %1520 = vmatpush1.msra.mxu0 0.0
  %1521 = vmatprep.subr.mxu0 0.0
  %1522 = vmatpush1.msra.mxu0 0.0
  %1523 = vmatprep.subr.mxu0 0.0
  %1524 = vmatpush1.msra.mxu0 0.0
  %1525 = vmatprep.subr.mxu0 0.0
  %1526 = vmatpush1.msra.mxu0 0.0
  %1527 = vmatprep.mubr.f32.mxu0 0.0
  %1528 = vmatmul.mubr.f32.gmra.mrb[0].mxu0 %v1452
  %v1529 = vpop.f32.mrb[0].mxu0
  %v1530 = vadd.f32 0.0, %v1529
  %v1531 = vpop.f32.mrb[0].mxu0
  %1532 = vmatprep.mubr.f32.mxu0 0.0
  %1533 = vmatmul.mubr.f32.gmra.mrb[0].mxu0 %v1455
  %v1534 = vpop.f32.mrb[0].mxu0
  %v1535 = vadd.f32 0.0, %v1534
  %v1536 = vpop.f32.mrb[0].mxu0
  %1537 = vmatprep.mubr.f32.mxu0 0.0
  %1538 = vmatmul.mubr.f32.gmra.mrb[0].mxu0 %v1458
  %v1539 = vpop.f32.mrb[0].mxu0
  %v1540 = vadd.f32 0.0, %v1539
  %v1541 = vpop.f32.mrb[0].mxu0
  %1542 = vmatprep.mubr.f32.mxu0 0.0
  %1543 = vmatmul.mubr.f32.gmra.mrb[0].mxu0 %v1461
  %v1544 = vpop.f32.mrb[0].mxu0
  %v1545 = vadd.f32 0.0, %v1544
  %v1546 = vpop.f32.mrb[0].mxu0
  %1547 = vdwg.mxu0
  %v1548 = vadd.f32 %v552, %v1530
  %v1549 = vadd.f32 %v553, %v1535
  %v1550 = vadd.f32 %v554, %v1540
  %v1551 = vadd.f32 %v555, %v1545
  %1552 = vst [vmem:[%s22] sm:$0xff] %v1548
  %1553 = vst [vmem:[%s22 + $0x8] sm:$0xff] %v1549
  %1554 = vst [vmem:[%s22 + $0x10] sm:$0xff] %v1550
  %1555 = vst [vmem:[%s22 + $0x18] sm:$0xff] %v1551
  // Predicated region
  $region90: #{vgin_encoder_forward.5} parent=0 // pred_check
    _
  $region91: #{vgin_encoder_forward.5} parent=0 // pred_check_branch
    %1557 = sbr.rel (0) target = $region93
  $region92: #{vgin_encoder_forward.5} parent=0 // pred_region
    _
  $region93: #{vgin_encoder_forward.5} parent=0 // pred_fallthru
    _
  // Predicated region
  $region94: #{vgin_encoder_forward.5} parent=0 // pred_check
    _
  $region95: #{vgin_encoder_forward.5} parent=0 // pred_check_branch
    %1559 = sbr.rel (0) target = $region97
  $region96: #{vgin_encoder_forward.5} parent=0 // pred_region
    _
  $region97: #{vgin_encoder_forward.5} parent=0 // pred_fallthru
    _
  // Predicated region
  $region98: #{vgin_encoder_forward.5} parent=0 // pred_check
    _
  $region99: #{vgin_encoder_forward.5} parent=0 // pred_check_branch
    %1561 = sbr.rel (0) target = $region101
  $region100: #{vgin_encoder_forward.5} parent=0 // pred_region
    _
  $region101: #{vgin_encoder_forward.5} parent=0 // pred_fallthru
    _
  // Predicated region
  $region102: #{vgin_encoder_forward.5} parent=0 // pred_check
    _
  $region103: #{vgin_encoder_forward.5} parent=0 // pred_check_branch
    %1563 = sbr.rel (0) target = $region105
  $region104: #{vgin_encoder_forward.5} parent=0 // pred_region
    _
  $region105: #{vgin_encoder_forward.5} parent=0 // pred_fallthru
    _

// kernel: vgin_encoder_forward.6
$region0: #{vgin_encoder_forward.6}
  #allocation0 [shape = 'u32[]', space=smem, size = 0x4, offset = 0x4, fixed_abs, tag = 'smem constant byte address 0x4 - core index']
  #allocation1 [shape = 'u32[144,128]{1,0:T(1,128)}', space=vmem, size = 0x12000, scoped, tag = 'internal scratch']
  %s0 = inlined_call_operand.vmem [shape: f32[32,128], index: 0, kind: input, shape index: {}]
  %s1 = inlined_call_operand.vmem [shape: f32[32,32], index: 1, kind: input, shape index: {}]
  %s2 = inlined_call_operand.vmem [shape: f32[8,32], index: 2, kind: input, shape index: {}]
  %s3 = inlined_call_operand.vmem [shape: f32[128,128], index: 3, kind: input, shape index: {}]
  %s4 = inlined_call_operand.vmem [shape: f32[1,128], index: 4, kind: input, shape index: {}]
  %s5 = inlined_call_operand.vmem [shape: f32[1,128], index: 5, kind: input, shape index: {}]
  %s6 = inlined_call_operand.vmem [shape: f32[1,128], index: 6, kind: input, shape index: {}]
  %s7 = inlined_call_operand.vmem [shape: f32[128,128], index: 7, kind: input, shape index: {}]
  %s8 = inlined_call_operand.vmem [shape: f32[1,128], index: 8, kind: input, shape index: {}]
  %s9 = inlined_call_operand.vmem [shape: f32[1,128], index: 9, kind: input, shape index: {}]
  %s10 = inlined_call_operand.vmem [shape: f32[1,128], index: 10, kind: input, shape index: {}]
  %s11 = inlined_call_operand.vmem [shape: f32[8,128], index: 11, kind: input, shape index: {}]
  %s12 = inlined_call_operand.vmem [shape: f32[128,128], index: 12, kind: input, shape index: {}]
  %s13 = inlined_call_operand.vmem [shape: f32[1,128], index: 13, kind: input, shape index: {}]
  %s14 = inlined_call_operand.vmem [shape: f32[8,128], index: 14, kind: input, shape index: {}]
  %s15 = inlined_call_operand.vmem [shape: f32[8,128], index: 15, kind: input, shape index: {}]
  %s16 = inlined_call_operand.vmem [shape: f32[128,128], index: 16, kind: input, shape index: {}]
  %s17 = inlined_call_operand.vmem [shape: f32[1,128], index: 17, kind: input, shape index: {}]
  %s18 = inlined_call_operand.vmem [shape: f32[8,128], index: 18, kind: input, shape index: {}]
  %s19 = inlined_call_operand.vmem [shape: f32[8,128], index: 19, kind: input, shape index: {}]
  %s20 = inlined_call_operand.vmem [shape: f32[4,8], index: 20, kind: input, shape index: {}]
  %s21 = inlined_call_operand.vmem [shape: f32[8,4], index: 21, kind: input, shape index: {}]
  %s22 = inlined_call_operand.vmem [shape: f32[32,128], index: 22, kind: output, shape index: {0}]
  %s23 = inlined_call_operand.hbm [shape: f32[8,128], index: 23, kind: output, shape index: {1}]
  %24 = xla_tuple %s22, %s23
  %s25 = sld [smem:[#allocation0]]
  $region106: #{vgin_encoder_forward.6} parent=0
    _
  %s27 = ssub.s32 1, %s25
  %s28 = scalar_select 0, %s27, %s25
  $region1: #{vgin_encoder_forward.6} parent=0
    #allocation2 [shape = 'u8[4096]{0}', space=vmem, size = 0x1000, scoped, tag = 'output window, operand 1, single buffered']
    #allocation3 [shape = 's32[1]{0}', space=sflag, size = 0x4, scoped, tag = 'scoped memory for vgin_encoder_forward.6']
    %29 = vsyncpa [#allocation3], 0
    // Predicated region
    $region2: #{vgin_encoder_forward.6} parent=1 // pred_check
      _
    $region3: #{vgin_encoder_forward.6} parent=1 // pred_check_branch
      %31 = sbr.rel (0) target = $region5
    $region4: #{vgin_encoder_forward.6} parent=1 // pred_region
      _
    $region5: #{vgin_encoder_forward.6} parent=1 // pred_fallthru
      _
    // Predicated region
    $region6: #{vgin_encoder_forward.6} parent=1 // pred_check
      _
    $region7: #{vgin_encoder_forward.6} parent=1 // pred_check_branch
      %33 = sbr.rel (0) target = $region9
    $region8: #{vgin_encoder_forward.6} parent=1 // pred_region
      _
    $region9: #{vgin_encoder_forward.6} parent=1 // pred_fallthru
      _
    // Predicated region
    $region10: #{vgin_encoder_forward.6} parent=1 // pred_check
      _
    $region11: #{vgin_encoder_forward.6} parent=1 // pred_check_branch
      %35 = sbr.rel (0) target = $region13
    $region12: #{vgin_encoder_forward.6} parent=1 // pred_region
      _
    $region13: #{vgin_encoder_forward.6} parent=1 // pred_fallthru
      _
    // Predicated region
    $region14: #{vgin_encoder_forward.6} parent=1 // pred_check
      _
    $region15: #{vgin_encoder_forward.6} parent=1 // pred_check_branch
      %37 = sbr.rel (0) target = $region17
    $region16: #{vgin_encoder_forward.6} parent=1 // pred_region
      _
    $region17: #{vgin_encoder_forward.6} parent=1 // pred_fallthru
      _
    // Predicated region
    $region18: #{vgin_encoder_forward.6} parent=1 // pred_check
      _
    $region19: #{vgin_encoder_forward.6} parent=1 // pred_check_branch
      %39 = sbr.rel (0) target = $region21
    $region20: #{vgin_encoder_forward.6} parent=1 // pred_region
      _
    $region21: #{vgin_encoder_forward.6} parent=1 // pred_fallthru
      _
    // Predicated region
    $region22: #{vgin_encoder_forward.6} parent=1 // pred_check
      _
    $region23: #{vgin_encoder_forward.6} parent=1 // pred_check_branch
      %41 = sbr.rel (0) target = $region25
    $region24: #{vgin_encoder_forward.6} parent=1 // pred_region
      _
    $region25: #{vgin_encoder_forward.6} parent=1 // pred_fallthru
      _
    // Predicated region
    $region26: #{vgin_encoder_forward.6} parent=1 // pred_check
      _
    $region27: #{vgin_encoder_forward.6} parent=1 // pred_check_branch
      %43 = sbr.rel (0) target = $region29
    $region28: #{vgin_encoder_forward.6} parent=1 // pred_region
      _
    $region29: #{vgin_encoder_forward.6} parent=1 // pred_fallthru
      _
    // Predicated region
    $region30: #{vgin_encoder_forward.6} parent=1 // pred_check
      _
    $region31: #{vgin_encoder_forward.6} parent=1 // pred_check_branch
      %45 = sbr.rel (0) target = $region33
    $region32: #{vgin_encoder_forward.6} parent=1 // pred_region
      _
    $region33: #{vgin_encoder_forward.6} parent=1 // pred_fallthru
      _
    // Predicated region
    $region34: #{vgin_encoder_forward.6} parent=1 // pred_check
      _
    $region35: #{vgin_encoder_forward.6} parent=1 // pred_check_branch
      %47 = sbr.rel (0) target = $region37
    $region36: #{vgin_encoder_forward.6} parent=1 // pred_region
      _
    $region37: #{vgin_encoder_forward.6} parent=1 // pred_fallthru
      _
    // Predicated region
    $region38: #{vgin_encoder_forward.6} parent=1 // pred_check
      _
    $region39: #{vgin_encoder_forward.6} parent=1 // pred_check_branch
      %49 = sbr.rel (0) target = $region41
    $region40: #{vgin_encoder_forward.6} parent=1 // pred_region
      _
    $region41: #{vgin_encoder_forward.6} parent=1 // pred_fallthru
      _
    // Predicated region
    $region42: #{vgin_encoder_forward.6} parent=1 // pred_check
      _
    $region43: #{vgin_encoder_forward.6} parent=1 // pred_check_branch
      %51 = sbr.rel (0) target = $region45
    $region44: #{vgin_encoder_forward.6} parent=1 // pred_region
      _
    $region45: #{vgin_encoder_forward.6} parent=1 // pred_fallthru
      _
    // Predicated region
    $region46: #{vgin_encoder_forward.6} parent=1 // pred_check
      _
    $region47: #{vgin_encoder_forward.6} parent=1 // pred_check_branch
      %53 = sbr.rel (0) target = $region49
    $region48: #{vgin_encoder_forward.6} parent=1 // pred_region
      _
    $region49: #{vgin_encoder_forward.6} parent=1 // pred_fallthru
      _
    // Predicated region
    $region50: #{vgin_encoder_forward.6} parent=1 // pred_check
      _
    $region51: #{vgin_encoder_forward.6} parent=1 // pred_check_branch
      %55 = sbr.rel (0) target = $region53
    $region52: #{vgin_encoder_forward.6} parent=1 // pred_region
      _
    $region53: #{vgin_encoder_forward.6} parent=1 // pred_fallthru
      _
    // Predicated region
    $region54: #{vgin_encoder_forward.6} parent=1 // pred_check
      _
    $region55: #{vgin_encoder_forward.6} parent=1 // pred_check_branch
      %57 = sbr.rel (0) target = $region57
    $region56: #{vgin_encoder_forward.6} parent=1 // pred_region
      _
    $region57: #{vgin_encoder_forward.6} parent=1 // pred_fallthru
      _
    // Predicated region
    $region58: #{vgin_encoder_forward.6} parent=1 // pred_check
      _
    $region59: #{vgin_encoder_forward.6} parent=1 // pred_check_branch
      %59 = sbr.rel (0) target = $region61
    $region60: #{vgin_encoder_forward.6} parent=1 // pred_region
      _
    $region61: #{vgin_encoder_forward.6} parent=1 // pred_fallthru
      _
    // Predicated region
    $region62: #{vgin_encoder_forward.6} parent=1 // pred_check
      _
    $region63: #{vgin_encoder_forward.6} parent=1 // pred_check_branch
      %61 = sbr.rel (0) target = $region65
    $region64: #{vgin_encoder_forward.6} parent=1 // pred_region
      _
    $region65: #{vgin_encoder_forward.6} parent=1 // pred_fallthru
      _
    // Predicated region
    $region66: #{vgin_encoder_forward.6} parent=1 // pred_check
      _
    $region67: #{vgin_encoder_forward.6} parent=1 // pred_check_branch
      %63 = sbr.rel (0) target = $region69
    $region68: #{vgin_encoder_forward.6} parent=1 // pred_region
      _
    $region69: #{vgin_encoder_forward.6} parent=1 // pred_fallthru
      _
    // Predicated region
    $region70: #{vgin_encoder_forward.6} parent=1 // pred_check
      _
    $region71: #{vgin_encoder_forward.6} parent=1 // pred_check_branch
      %65 = sbr.rel (0) target = $region73
    $region72: #{vgin_encoder_forward.6} parent=1 // pred_region
      _
    $region73: #{vgin_encoder_forward.6} parent=1 // pred_fallthru
      _
    // Predicated region
    $region74: #{vgin_encoder_forward.6} parent=1 // pred_check
      _
    $region75: #{vgin_encoder_forward.6} parent=1 // pred_check_branch
      %67 = sbr.rel (0) target = $region77
    $region76: #{vgin_encoder_forward.6} parent=1 // pred_region
      _
    $region77: #{vgin_encoder_forward.6} parent=1 // pred_fallthru
      _
    // Predicated region
    $region78: #{vgin_encoder_forward.6} parent=1 // pred_check
      _
    $region79: #{vgin_encoder_forward.6} parent=1 // pred_check_branch
      %69 = sbr.rel (0) target = $region81
    $region80: #{vgin_encoder_forward.6} parent=1 // pred_region
      _
    $region81: #{vgin_encoder_forward.6} parent=1 // pred_fallthru
      _
    // Predicated region
    $region82: #{vgin_encoder_forward.6} parent=1 // pred_check
      _
    $region83: #{vgin_encoder_forward.6} parent=1 // pred_check_branch
      %71 = sbr.rel (0) target = $region85
    $region84: #{vgin_encoder_forward.6} parent=1 // pred_region
      _
    $region85: #{vgin_encoder_forward.6} parent=1 // pred_fallthru
      _
    // Predicated region
    $region86: #{vgin_encoder_forward.6} parent=1 // pred_check
      _
    $region87: #{vgin_encoder_forward.6} parent=1 // pred_check_branch
      %73 = sbr.rel (0) target = $region89
    $region88: #{vgin_encoder_forward.6} parent=1 // pred_region
      _
    $region89: #{vgin_encoder_forward.6} parent=1 // pred_fallthru
      _
    %v74 = vlaneseq
    %v75 = vshrl.u32 %v74, 7
    %v76 = vadd.s32 %v75, 8
    %v77 = vadd.s32 %v75, 16
    %v78 = vadd.s32 %v75, 24
    %vm79 = vcmp.lt.s32.totalorder %v75, 32
    %vm80 = vcmp.lt.s32.totalorder %v76, 32
    %vm81 = vcmp.lt.s32.totalorder %v77, 32
    %vm82 = vcmp.lt.s32.totalorder %v78, 32
    %v83 = vsel %vm79, 1, 0
    %v84 = vsel %vm80, 1, 0
    %v85 = vsel %vm81, 1, 0
    %v86 = vsel %vm82, 1, 0
    %v87 = vcvt.s32.f32 %v83
    %v88 = vcvt.s32.f32 %v84
    %v89 = vcvt.s32.f32 %v85
    %v90 = vcvt.s32.f32 %v86
    %v91 = vld [vmem:[%s0] sm:$0xff]
    %v92 = vld [vmem:[%s0 + $0x8] sm:$0xff]
    %v93 = vld [vmem:[%s0 + $0x10] sm:$0xff]
    %v94 = vld [vmem:[%s0 + $0x18] sm:$0xff]
    %v95 = vld [vmem:[%s1] sm:$0xff]
    %v96 = vld [vmem:[%s1 + $0x8] sm:$0xff]
    %v97 = vld [vmem:[%s1 + $0x10] sm:$0xff]
    %v98 = vld [vmem:[%s1 + $0x18] sm:$0xff]
    %v99 = vld [vmem:[%s3] sm:$0xff]
    %v100 = vld [vmem:[%s3 + $0x8] sm:$0xff]
    %v101 = vld [vmem:[%s3 + $0x10] sm:$0xff]
    %v102 = vld [vmem:[%s3 + $0x18] sm:$0xff]
    %v103 = vld [vmem:[%s3 + $0x20] sm:$0xff]
    %v104 = vld [vmem:[%s3 + $0x28] sm:$0xff]
    %v105 = vld [vmem:[%s3 + $0x30] sm:$0xff]
    %v106 = vld [vmem:[%s3 + $0x38] sm:$0xff]
    %v107 = vld [vmem:[%s3 + $0x40] sm:$0xff]
    %v108 = vld [vmem:[%s3 + $0x48] sm:$0xff]
    %v109 = vld [vmem:[%s3 + $0x50] sm:$0xff]
    %v110 = vld [vmem:[%s3 + $0x58] sm:$0xff]
    %v111 = vld [vmem:[%s3 + $0x60] sm:$0xff]
    %v112 = vld [vmem:[%s3 + $0x68] sm:$0xff]
    %v113 = vld [vmem:[%s3 + $0x70] sm:$0xff]
    %v114 = vld [vmem:[%s3 + $0x78] sm:$0xff]
    %v115 = vld [vmem:[%s4] sm:$0x1]
    %v116 = vld [vmem:[%s5] sm:$0x1]
    %v117 = vld [vmem:[%s6] sm:$0x1]
    %v118 = vld [vmem:[%s7] sm:$0xff]
    %v119 = vld [vmem:[%s7 + $0x8] sm:$0xff]
    %v120 = vld [vmem:[%s7 + $0x10] sm:$0xff]
    %v121 = vld [vmem:[%s7 + $0x18] sm:$0xff]
    %v122 = vld [vmem:[%s7 + $0x20] sm:$0xff]
    %v123 = vld [vmem:[%s7 + $0x28] sm:$0xff]
    %v124 = vld [vmem:[%s7 + $0x30] sm:$0xff]
    %v125 = vld [vmem:[%s7 + $0x38] sm:$0xff]
    %v126 = vld [vmem:[%s7 + $0x40] sm:$0xff]
    %v127 = vld [vmem:[%s7 + $0x48] sm:$0xff]
    %v128 = vld [vmem:[%s7 + $0x50] sm:$0xff]
    %v129 = vld [vmem:[%s7 + $0x58] sm:$0xff]
    %v130 = vld [vmem:[%s7 + $0x60] sm:$0xff]
    %v131 = vld [vmem:[%s7 + $0x68] sm:$0xff]
    %v132 = vld [vmem:[%s7 + $0x70] sm:$0xff]
    %v133 = vld [vmem:[%s7 + $0x78] sm:$0xff]
    %v134 = vld [vmem:[%s8] sm:$0x1]
    %v135 = vld [vmem:[%s9] sm:$0x1]
    %v136 = vld [vmem:[%s10] sm:$0x1]
    %vm137 = vcmask 261120
    %v139 = vsel %vm137, %v95, 0
    %v142 = vsel %vm137, %v96, 0
    %v145 = vsel %vm137, %v97, 0
    %v148 = vsel %vm137, %v98, 0
    %150 = vmatprep.subr.mxu0 0.0
    %151 = vmatpush1.msra.mxu0 %v91
    %152 = vmatprep.subr.mxu0 0.0
    %153 = vmatpush1.msra.mxu0 %v92
    %154 = vmatprep.subr.mxu0 0.0
    %155 = vmatpush1.msra.mxu0 %v93
    %156 = vmatprep.subr.mxu0 0.0
    %157 = vmatpush1.msra.mxu0 %v94
    %158 = vmatprep.subr.mxu0 0.0
    %159 = vmatpush1.msra.mxu0 0.0
    %160 = vmatprep.subr.mxu0 0.0
    %161 = vmatpush1.msra.mxu0 0.0
    %162 = vmatprep.subr.mxu0 0.0
    %163 = vmatpush1.msra.mxu0 0.0
    %164 = vmatprep.subr.mxu0 0.0
    %165 = vmatpush1.msra.mxu0 0.0
    %166 = vmatprep.subr.mxu0 0.0
    %167 = vmatpush1.msra.mxu0 0.0
    %168 = vmatprep.subr.mxu0 0.0
    %169 = vmatpush1.msra.mxu0 0.0
    %170 = vmatprep.subr.mxu0 0.0
    %171 = vmatpush1.msra.mxu0 0.0
    %172 = vmatprep.subr.mxu0 0.0
    %173 = vmatpush1.msra.mxu0 0.0
    %174 = vmatprep.subr.mxu0 0.0
    %175 = vmatpush1.msra.mxu0 0.0
    %176 = vmatprep.subr.mxu0 0.0
    %177 = vmatpush1.msra.mxu0 0.0
    %178 = vmatprep.subr.mxu0 0.0
    %179 = vmatpush1.msra.mxu0 0.0
    %180 = vmatprep.subr.mxu0 0.0
    %181 = vmatpush1.msra.mxu0 0.0
    %182 = vmatprep.subr.mxu0 0.0
    %183 = vmatpush1.msra.mxu0 0.0
    %184 = vmatprep.subr.mxu0 0.0
    %185 = vmatpush1.msra.mxu0 0.0
    %186 = vmatprep.subr.mxu0 0.0
    %187 = vmatpush1.msra.mxu0 0.0
    %188 = vmatprep.subr.mxu0 0.0
    %189 = vmatpush1.msra.mxu0 0.0
    %190 = vmatprep.subr.mxu0 0.0
    %191 = vmatpush1.msra.mxu0 0.0
    %192 = vmatprep.subr.mxu0 0.0
    %193 = vmatpush1.msra.mxu0 0.0
    %194 = vmatprep.subr.mxu0 0.0
    %195 = vmatpush1.msra.mxu0 0.0
    %196 = vmatprep.subr.mxu0 0.0
    %197 = vmatpush1.msra.mxu0 0.0
    %198 = vmatprep.subr.mxu0 0.0
    %199 = vmatpush1.msra.mxu0 0.0
    %200 = vmatprep.subr.mxu0 0.0
    %201 = vmatpush1.msra.mxu0 0.0
    %202 = vmatprep.subr.mxu0 0.0
    %203 = vmatpush1.msra.mxu0 0.0
    %204 = vmatprep.subr.mxu0 0.0
    %205 = vmatpush1.msra.mxu0 0.0
    %206 = vmatprep.subr.mxu0 0.0
    %207 = vmatpush1.msra.mxu0 0.0
    %208 = vmatprep.subr.mxu0 0.0
    %209 = vmatpush1.msra.mxu0 0.0
    %210 = vmatprep.subr.mxu0 0.0
    %211 = vmatpush1.msra.mxu0 0.0
    %212 = vmatprep.subr.mxu0 0.0
    %213 = vmatpush1.msra.mxu0 0.0
    %214 = vmatprep.mubr.f32.mxu0 0.0
    %215 = vmatmul.mubr.f32.gmra.mrb[0].mxu0 %v139
    %v216 = vpop.f32.mrb[0].mxu0
    %v217 = vadd.f32 0.0, %v216
    %v218 = vpop.f32.mrb[0].mxu0
    %219 = vmatprep.mubr.f32.mxu0 0.0
    %220 = vmatmul.mubr.f32.gmra.mrb[0].mxu0 %v142
    %v221 = vpop.f32.mrb[0].mxu0
    %v222 = vadd.f32 0.0, %v221
    %v223 = vpop.f32.mrb[0].mxu0
    %224 = vmatprep.mubr.f32.mxu0 0.0
    %225 = vmatmul.mubr.f32.gmra.mrb[0].mxu0 %v145
    %v226 = vpop.f32.mrb[0].mxu0
    %v227 = vadd.f32 0.0, %v226
    %v228 = vpop.f32.mrb[0].mxu0
    %229 = vmatprep.mubr.f32.mxu0 0.0
    %230 = vmatmul.mubr.f32.gmra.mrb[0].mxu0 %v148
    %v231 = vpop.f32.mrb[0].mxu0
    %v232 = vadd.f32 0.0, %v231
    %v233 = vpop.f32.mrb[0].mxu0
    %234 = vdwg.mxu0
    %v235 = vadd.f32 %v91, %v217
    %v236 = vadd.f32 %v92, %v222
    %v237 = vadd.f32 %v93, %v227
    %v238 = vadd.f32 %v94, %v232
    %v240 = vlaneseq
    %v241 = vshrl.u32 %v240, 7
    %v242 = vsub.s32 0, %v241
    %v243 = vrot.slane %v115, %v242
    %245 = vmatprep.subr.mxu0 0.0
    %246 = vmatpush1.msra.mxu0 %v99
    %247 = vmatprep.subr.mxu0 0.0
    %248 = vmatpush1.msra.mxu0 %v100
    %249 = vmatprep.subr.mxu0 0.0
    %250 = vmatpush1.msra.mxu0 %v101
    %251 = vmatprep.subr.mxu0 0.0
    %252 = vmatpush1.msra.mxu0 %v102
    %253 = vmatprep.subr.mxu0 0.0
    %254 = vmatpush1.msra.mxu0 %v103
    %255 = vmatprep.subr.mxu0 0.0
    %256 = vmatpush1.msra.mxu0 %v104
    %257 = vmatprep.subr.mxu0 0.0
    %258 = vmatpush1.msra.mxu0 %v105
    %259 = vmatprep.subr.mxu0 0.0
    %260 = vmatpush1.msra.mxu0 %v106
    %261 = vmatprep.subr.mxu0 0.0
    %262 = vmatpush1.msra.mxu0 %v107
    %263 = vmatprep.subr.mxu0 0.0
    %264 = vmatpush1.msra.mxu0 %v108
    %265 = vmatprep.subr.mxu0 0.0
    %266 = vmatpush1.msra.mxu0 %v109
    %267 = vmatprep.subr.mxu0 0.0
    %268 = vmatpush1.msra.mxu0 %v110
    %269 = vmatprep.subr.mxu0 0.0
    %270 = vmatpush1.msra.mxu0 %v111
    %271 = vmatprep.subr.mxu0 0.0
    %272 = vmatpush1.msra.mxu0 %v112
    %273 = vmatprep.subr.mxu0 0.0
    %274 = vmatpush1.msra.mxu0 %v113
    %275 = vmatprep.subr.mxu0 0.0
    %276 = vmatpush1.msra.mxu0 %v114
    %277 = vmatprep.subr.mxu0 0.0
    %278 = vmatpush1.msra.mxu0 0.0
    %279 = vmatprep.subr.mxu0 0.0
    %280 = vmatpush1.msra.mxu0 0.0
    %281 = vmatprep.subr.mxu0 0.0
    %282 = vmatpush1.msra.mxu0 0.0
    %283 = vmatprep.subr.mxu0 0.0
    %284 = vmatpush1.msra.mxu0 0.0
    %285 = vmatprep.subr.mxu0 0.0
    %286 = vmatpush1.msra.mxu0 0.0
    %287 = vmatprep.subr.mxu0 0.0
    %288 = vmatpush1.msra.mxu0 0.0
    %289 = vmatprep.subr.mxu0 0.0
    %290 = vmatpush1.msra.mxu0 0.0
    %291 = vmatprep.subr.mxu0 0.0
    %292 = vmatpush1.msra.mxu0 0.0
    %293 = vmatprep.subr.mxu0 0.0
    %294 = vmatpush1.msra.mxu0 0.0
    %295 = vmatprep.subr.mxu0 0.0
    %296 = vmatpush1.msra.mxu0 0.0
    %297 = vmatprep.subr.mxu0 0.0
    %298 = vmatpush1.msra.mxu0 0.0
    %299 = vmatprep.subr.mxu0 0.0
    %300 = vmatpush1.msra.mxu0 0.0
    %301 = vmatprep.subr.mxu0 0.0
    %302 = vmatpush1.msra.mxu0 0.0
    %303 = vmatprep.subr.mxu0 0.0
    %304 = vmatpush1.msra.mxu0 0.0
    %305 = vmatprep.subr.mxu0 0.0
    %306 = vmatpush1.msra.mxu0 0.0
    %307 = vmatprep.subr.mxu0 0.0
    %308 = vmatpush1.msra.mxu0 0.0
    %309 = vmatprep.mubr.f32.mxu0 0.0
    %310 = vmatmul.mubr.f32.gmra.mrb[0].mxu0 %v235
    %v311 = vpop.f32.mrb[0].mxu0
    %v312 = vadd.f32 %v243, %v311
    %v313 = vpop.f32.mrb[0].mxu0
    %314 = vmatprep.mubr.f32.mxu0 0.0
    %315 = vmatmul.mubr.f32.gmra.mrb[0].mxu0 %v236
    %v316 = vpop.f32.mrb[0].mxu0
    %v317 = vadd.f32 %v243, %v316
    %v318 = vpop.f32.mrb[0].mxu0
    %319 = vmatprep.mubr.f32.mxu0 0.0
    %320 = vmatmul.mubr.f32.gmra.mrb[0].mxu0 %v237
    %v321 = vpop.f32.mrb[0].mxu0
    %v322 = vadd.f32 %v243, %v321
    %v323 = vpop.f32.mrb[0].mxu0
    %324 = vmatprep.mubr.f32.mxu0 0.0
    %325 = vmatmul.mubr.f32.gmra.mrb[0].mxu0 %v238
    %v326 = vpop.f32.mrb[0].mxu0
    %v327 = vadd.f32 %v243, %v326
    %v328 = vpop.f32.mrb[0].mxu0
    %329 = vdwg.mxu0
    %v330 = vmul.f32 %v312, %v87
    %v331 = vmul.f32 %v317, %v88
    %v332 = vmul.f32 %v322, %v89
    %v333 = vmul.f32 %v327, %v90
    %v334 = vadd.f32 %v330, %v331
    %v335 = vadd.f32 %v334, %v332
    %v336 = vadd.f32 %v335, %v333
    %v337 = vrot.slane %v336, 4
    %v338 = vadd.f32 %v336, %v337
    %v339 = vrot.slane %v338, 2
    %v340 = vadd.f32 %v338, %v339
    %v341 = vrot.slane %v340, 1
    %v342 = vadd.f32 %v340, %v341
    %v343 = vmul.f32 %v342, 0.03125
    %v344 = vsub.f32 %v312, %v343
    %v345 = vsub.f32 %v317, %v343
    %v346 = vsub.f32 %v322, %v343
    %v347 = vsub.f32 %v327, %v343
    %v348 = vmul.f32 %v344, %v344
    %v349 = vmul.f32 %v345, %v345
    %v350 = vmul.f32 %v346, %v346
    %v351 = vmul.f32 %v347, %v347
    %v352 = vmul.f32 %v348, %v87
    %v353 = vmul.f32 %v349, %v88
    %v354 = vmul.f32 %v350, %v89
    %v355 = vmul.f32 %v351, %v90
    %v356 = vadd.f32 %v352, %v353
    %v357 = vadd.f32 %v356, %v354
    %v358 = vadd.f32 %v357, %v355
    %v359 = vrot.slane %v358, 4
    %v360 = vadd.f32 %v358, %v359
    %v361 = vrot.slane %v360, 2
    %v362 = vadd.f32 %v360, %v361
    %v363 = vrot.slane %v362, 1
    %v364 = vadd.f32 %v362, %v363
    %v365 = vmul.f32 %v364, 0.03125
    %v366 = vadd.f32 %v365, 1e-05
    %v367 = vrsqrt.pop %v366
    %v368 = vmul.f32 %v344, %v367
    %v369 = vmul.f32 %v345, %v367
    %v370 = vmul.f32 %v346, %v367
    %v371 = vmul.f32 %v347, %v367
    %v373 = vlaneseq
    %v374 = vshrl.u32 %v373, 7
    %v375 = vsub.s32 0, %v374
    %v376 = vrot.slane %v116, %v375
    %v378 = vmul.f32 %v368, %v376
    %v379 = vmul.f32 %v369, %v376
    %v380 = vmul.f32 %v370, %v376
    %v381 = vmul.f32 %v371, %v376
    %v383 = vlaneseq
    %v384 = vshrl.u32 %v383, 7
    %v385 = vsub.s32 0, %v384
    %v386 = vrot.slane %v117, %v385
    %v388 = vadd.f32 %v378, %v386
    %v389 = vadd.f32 %v379, %v386
    %v390 = vadd.f32 %v380, %v386
    %v391 = vadd.f32 %v381, %v386
    %v392 = vmax.f32 %v388, 0.0
    %v393 = vmax.f32 %v389, 0.0
    %v394 = vmax.f32 %v390, 0.0
    %v395 = vmax.f32 %v391, 0.0
    %v397 = vlaneseq
    %v398 = vshrl.u32 %v397, 7
    %v399 = vsub.s32 0, %v398
    %v400 = vrot.slane %v134, %v399
    %402 = vmatprep.subr.mxu0 0.0
    %403 = vmatpush1.msra.mxu0 %v118
    %404 = vmatprep.subr.mxu0 0.0
    %405 = vmatpush1.msra.mxu0 %v119
    %406 = vmatprep.subr.mxu0 0.0
    %407 = vmatpush1.msra.mxu0 %v120
    %408 = vmatprep.subr.mxu0 0.0
    %409 = vmatpush1.msra.mxu0 %v121
    %410 = vmatprep.subr.mxu0 0.0
    %411 = vmatpush1.msra.mxu0 %v122
    %412 = vmatprep.subr.mxu0 0.0
    %413 = vmatpush1.msra.mxu0 %v123
    %414 = vmatprep.subr.mxu0 0.0
    %415 = vmatpush1.msra.mxu0 %v124
    %416 = vmatprep.subr.mxu0 0.0
    %417 = vmatpush1.msra.mxu0 %v125
    %418 = vmatprep.subr.mxu0 0.0
    %419 = vmatpush1.msra.mxu0 %v126
    %420 = vmatprep.subr.mxu0 0.0
    %421 = vmatpush1.msra.mxu0 %v127
    %422 = vmatprep.subr.mxu0 0.0
    %423 = vmatpush1.msra.mxu0 %v128
    %424 = vmatprep.subr.mxu0 0.0
    %425 = vmatpush1.msra.mxu0 %v129
    %426 = vmatprep.subr.mxu0 0.0
    %427 = vmatpush1.msra.mxu0 %v130
    %428 = vmatprep.subr.mxu0 0.0
    %429 = vmatpush1.msra.mxu0 %v131
    %430 = vmatprep.subr.mxu0 0.0
    %431 = vmatpush1.msra.mxu0 %v132
    %432 = vmatprep.subr.mxu0 0.0
    %433 = vmatpush1.msra.mxu0 %v133
    %434 = vmatprep.subr.mxu0 0.0
    %435 = vmatpush1.msra.mxu0 0.0
    %436 = vmatprep.subr.mxu0 0.0
    %437 = vmatpush1.msra.mxu0 0.0
    %438 = vmatprep.subr.mxu0 0.0
    %439 = vmatpush1.msra.mxu0 0.0
    %440 = vmatprep.subr.mxu0 0.0
    %441 = vmatpush1.msra.mxu0 0.0
    %442 = vmatprep.subr.mxu0 0.0
    %443 = vmatpush1.msra.mxu0 0.0
    %444 = vmatprep.subr.mxu0 0.0
    %445 = vmatpush1.msra.mxu0 0.0
    %446 = vmatprep.subr.mxu0 0.0
    %447 = vmatpush1.msra.mxu0 0.0
    %448 = vmatprep.subr.mxu0 0.0
    %449 = vmatpush1.msra.mxu0 0.0
    %450 = vmatprep.subr.mxu0 0.0
    %451 = vmatpush1.msra.mxu0 0.0
    %452 = vmatprep.subr.mxu0 0.0
    %453 = vmatpush1.msra.mxu0 0.0
    %454 = vmatprep.subr.mxu0 0.0
    %455 = vmatpush1.msra.mxu0 0.0
    %456 = vmatprep.subr.mxu0 0.0
    %457 = vmatpush1.msra.mxu0 0.0
    %458 = vmatprep.subr.mxu0 0.0
    %459 = vmatpush1.msra.mxu0 0.0
    %460 = vmatprep.subr.mxu0 0.0
    %461 = vmatpush1.msra.mxu0 0.0
    %462 = vmatprep.subr.mxu0 0.0
    %463 = vmatpush1.msra.mxu0 0.0
    %464 = vmatprep.subr.mxu0 0.0
    %465 = vmatpush1.msra.mxu0 0.0
    %466 = vmatprep.mubr.f32.mxu0 0.0
    %467 = vmatmul.mubr.f32.gmra.mrb[0].mxu0 %v392
    %v468 = vpop.f32.mrb[0].mxu0
    %v469 = vadd.f32 %v400, %v468
    %v470 = vpop.f32.mrb[0].mxu0
    %471 = vmatprep.mubr.f32.mxu0 0.0
    %472 = vmatmul.mubr.f32.gmra.mrb[0].mxu0 %v393
    %v473 = vpop.f32.mrb[0].mxu0
    %v474 = vadd.f32 %v400, %v473
    %v475 = vpop.f32.mrb[0].mxu0
    %476 = vmatprep.mubr.f32.mxu0 0.0
    %477 = vmatmul.mubr.f32.gmra.mrb[0].mxu0 %v394
    %v478 = vpop.f32.mrb[0].mxu0
    %v479 = vadd.f32 %v400, %v478
    %v480 = vpop.f32.mrb[0].mxu0
    %481 = vmatprep.mubr.f32.mxu0 0.0
    %482 = vmatmul.mubr.f32.gmra.mrb[0].mxu0 %v395
    %v483 = vpop.f32.mrb[0].mxu0
    %v484 = vadd.f32 %v400, %v483
    %v485 = vpop.f32.mrb[0].mxu0
    %486 = vdwg.mxu0
    %v487 = vmul.f32 %v469, %v87
    %v488 = vmul.f32 %v474, %v88
    %v489 = vmul.f32 %v479, %v89
    %v490 = vmul.f32 %v484, %v90
    %v491 = vadd.f32 %v487, %v488
    %v492 = vadd.f32 %v491, %v489
    %v493 = vadd.f32 %v492, %v490
    %v494 = vrot.slane %v493, 4
    %v495 = vadd.f32 %v493, %v494
    %v496 = vrot.slane %v495, 2
    %v497 = vadd.f32 %v495, %v496
    %v498 = vrot.slane %v497, 1
    %v499 = vadd.f32 %v497, %v498
    %v500 = vmul.f32 %v499, 0.03125
    %v501 = vsub.f32 %v469, %v500
    %v502 = vsub.f32 %v474, %v500
    %v503 = vsub.f32 %v479, %v500
    %v504 = vsub.f32 %v484, %v500
    %v505 = vmul.f32 %v501, %v501
    %v506 = vmul.f32 %v502, %v502
    %v507 = vmul.f32 %v503, %v503
    %v508 = vmul.f32 %v504, %v504
    %v509 = vmul.f32 %v505, %v87
    %v510 = vmul.f32 %v506, %v88
    %v511 = vmul.f32 %v507, %v89
    %v512 = vmul.f32 %v508, %v90
    %v513 = vadd.f32 %v509, %v510
    %v514 = vadd.f32 %v513, %v511
    %v515 = vadd.f32 %v514, %v512
    %v516 = vrot.slane %v515, 4
    %v517 = vadd.f32 %v515, %v516
    %v518 = vrot.slane %v517, 2
    %v519 = vadd.f32 %v517, %v518
    %v520 = vrot.slane %v519, 1
    %v521 = vadd.f32 %v519, %v520
    %v522 = vmul.f32 %v521, 0.03125
    %v523 = vadd.f32 %v522, 1e-05
    %v524 = vrsqrt.pop %v523
    %v525 = vmul.f32 %v501, %v524
    %v526 = vmul.f32 %v502, %v524
    %v527 = vmul.f32 %v503, %v524
    %v528 = vmul.f32 %v504, %v524
    %v530 = vlaneseq
    %v531 = vshrl.u32 %v530, 7
    %v532 = vsub.s32 0, %v531
    %v533 = vrot.slane %v135, %v532
    %v535 = vmul.f32 %v525, %v533
    %v536 = vmul.f32 %v526, %v533
    %v537 = vmul.f32 %v527, %v533
    %v538 = vmul.f32 %v528, %v533
    %v540 = vlaneseq
    %v541 = vshrl.u32 %v540, 7
    %v542 = vsub.s32 0, %v541
    %v543 = vrot.slane %v136, %v542
    %v545 = vadd.f32 %v535, %v543
    %v546 = vadd.f32 %v536, %v543
    %v547 = vadd.f32 %v537, %v543
    %v548 = vadd.f32 %v538, %v543
    %v549 = vmax.f32 %v545, 0.0
    %v550 = vmax.f32 %v546, 0.0
    %v551 = vmax.f32 %v547, 0.0
    %v552 = vmax.f32 %v548, 0.0
    %v553 = vmul.f32 %v549, %v87
    %v554 = vmul.f32 %v550, %v88
    %v555 = vmul.f32 %v551, %v89
    %v556 = vmul.f32 %v552, %v90
    %v557 = vld [vmem:[%s20] sm:$0xf]
    %v558 = vld [vmem:[%s21] sm:$0xff]
    %v559 = vld [vmem:[%s11] sm:$0xff]
    %v560 = vld [vmem:[%s12] sm:$0xff]
    %v561 = vld [vmem:[%s12 + $0x8] sm:$0xff]
    %v562 = vld [vmem:[%s12 + $0x10] sm:$0xff]
    %v563 = vld [vmem:[%s12 + $0x18] sm:$0xff]
    %v564 = vld [vmem:[%s12 + $0x20] sm:$0xff]
    %v565 = vld [vmem:[%s12 + $0x28] sm:$0xff]
    %v566 = vld [vmem:[%s12 + $0x30] sm:$0xff]
    %v567 = vld [vmem:[%s12 + $0x38] sm:$0xff]
    %v568 = vld [vmem:[%s12 + $0x40] sm:$0xff]
    %v569 = vld [vmem:[%s12 + $0x48] sm:$0xff]
    %v570 = vld [vmem:[%s12 + $0x50] sm:$0xff]
    %v571 = vld [vmem:[%s12 + $0x58] sm:$0xff]
    %v572 = vld [vmem:[%s12 + $0x60] sm:$0xff]
    %v573 = vld [vmem:[%s12 + $0x68] sm:$0xff]
    %v574 = vld [vmem:[%s12 + $0x70] sm:$0xff]
    %v575 = vld [vmem:[%s12 + $0x78] sm:$0xff]
    %v576 = vld [vmem:[%s13] sm:$0x1]
    %v578 = vlaneseq
    %v579 = vshrl.u32 %v578, 7
    %v580 = vsub.s32 0, %v579
    %v581 = vrot.slane %v576, %v580
    %583 = vmatprep.subr.mxu0 0.0
    %584 = vmatpush1.msra.mxu0 %v560
    %585 = vmatprep.subr.mxu0 0.0
    %586 = vmatpush1.msra.mxu0 %v561
    %587 = vmatprep.subr.mxu0 0.0
    %588 = vmatpush1.msra.mxu0 %v562
    %589 = vmatprep.subr.mxu0 0.0
    %590 = vmatpush1.msra.mxu0 %v563
    %591 = vmatprep.subr.mxu0 0.0
    %592 = vmatpush1.msra.mxu0 %v564
    %593 = vmatprep.subr.mxu0 0.0
    %594 = vmatpush1.msra.mxu0 %v565
    %595 = vmatprep.subr.mxu0 0.0
    %596 = vmatpush1.msra.mxu0 %v566
    %597 = vmatprep.subr.mxu0 0.0
    %598 = vmatpush1.msra.mxu0 %v567
    %599 = vmatprep.subr.mxu0 0.0
    %600 = vmatpush1.msra.mxu0 %v568
    %601 = vmatprep.subr.mxu0 0.0
    %602 = vmatpush1.msra.mxu0 %v569
    %603 = vmatprep.subr.mxu0 0.0
    %604 = vmatpush1.msra.mxu0 %v570
    %605 = vmatprep.subr.mxu0 0.0
    %606 = vmatpush1.msra.mxu0 %v571
    %607 = vmatprep.subr.mxu0 0.0
    %608 = vmatpush1.msra.mxu0 %v572
    %609 = vmatprep.subr.mxu0 0.0
    %610 = vmatpush1.msra.mxu0 %v573
    %611 = vmatprep.subr.mxu0 0.0
    %612 = vmatpush1.msra.mxu0 %v574
    %613 = vmatprep.subr.mxu0 0.0
    %614 = vmatpush1.msra.mxu0 %v575
    %615 = vmatprep.subr.mxu0 0.0
    %616 = vmatpush1.msra.mxu0 0.0
    %617 = vmatprep.subr.mxu0 0.0
    %618 = vmatpush1.msra.mxu0 0.0
    %619 = vmatprep.subr.mxu0 0.0
    %620 = vmatpush1.msra.mxu0 0.0
    %621 = vmatprep.subr.mxu0 0.0
    %622 = vmatpush1.msra.mxu0 0.0
    %623 = vmatprep.subr.mxu0 0.0
    %624 = vmatpush1.msra.mxu0 0.0
    %625 = vmatprep.subr.mxu0 0.0
    %626 = vmatpush1.msra.mxu0 0.0
    %627 = vmatprep.subr.mxu0 0.0
    %628 = vmatpush1.msra.mxu0 0.0
    %629 = vmatprep.subr.mxu0 0.0
    %630 = vmatpush1.msra.mxu0 0.0
    %631 = vmatprep.subr.mxu0 0.0
    %632 = vmatpush1.msra.mxu0 0.0
    %633 = vmatprep.subr.mxu0 0.0
    %634 = vmatpush1.msra.mxu0 0.0
    %635 = vmatprep.subr.mxu0 0.0
    %636 = vmatpush1.msra.mxu0 0.0
    %637 = vmatprep.subr.mxu0 0.0
    %638 = vmatpush1.msra.mxu0 0.0
    %639 = vmatprep.subr.mxu0 0.0
    %640 = vmatpush1.msra.mxu0 0.0
    %641 = vmatprep.subr.mxu0 0.0
    %642 = vmatpush1.msra.mxu0 0.0
    %643 = vmatprep.subr.mxu0 0.0
    %644 = vmatpush1.msra.mxu0 0.0
    %645 = vmatprep.subr.mxu0 0.0
    %646 = vmatpush1.msra.mxu0 0.0
    %647 = vmatprep.mubr.f32.mxu0 0.0
    %648 = vmatmul.mubr.f32.gmra.mrb[0].mxu0 %v559
    %v649 = vpop.f32.mrb[0].mxu0
    %v650 = vadd.f32 %v581, %v649
    %v651 = vpop.f32.mrb[0].mxu0
    %652 = vdwg.mxu0
    %v653 = vld [vmem:[%s14] sm:$0xff]
    %v654 = vld [vmem:[%s15] sm:$0xff]
    %vm655 = vcmask 64512
    %v657 = vsel %vm655, %v557, 0
    %659 = vmatprep.subr.mxu0 0.0
    %660 = vmatpush1.msra.mxu0 %v650
    %661 = vmatprep.subr.mxu0 0.0
    %662 = vmatpush1.msra.mxu0 0.0
    %663 = vmatprep.subr.mxu0 0.0
    %664 = vmatpush1.msra.mxu0 0.0
    %665 = vmatprep.subr.mxu0 0.0
    %666 = vmatpush1.msra.mxu0 0.0
    %667 = vmatprep.subr.mxu0 0.0
    %668 = vmatpush1.msra.mxu0 0.0
    %669 = vmatprep.subr.mxu0 0.0
    %670 = vmatpush1.msra.mxu0 0.0
    %671 = vmatprep.subr.mxu0 0.0
    %672 = vmatpush1.msra.mxu0 0.0
    %673 = vmatprep.subr.mxu0 0.0
    %674 = vmatpush1.msra.mxu0 0.0
    %675 = vmatprep.subr.mxu0 0.0
    %676 = vmatpush1.msra.mxu0 0.0
    %677 = vmatprep.subr.mxu0 0.0
    %678 = vmatpush1.msra.mxu0 0.0
    %679 = vmatprep.subr.mxu0 0.0
    %680 = vmatpush1.msra.mxu0 0.0
    %681 = vmatprep.subr.mxu0 0.0
    %682 = vmatpush1.msra.mxu0 0.0
    %683 = vmatprep.subr.mxu0 0.0
    %684 = vmatpush1.msra.mxu0 0.0
    %685 = vmatprep.subr.mxu0 0.0
    %686 = vmatpush1.msra.mxu0 0.0
    %687 = vmatprep.subr.mxu0 0.0
    %688 = vmatpush1.msra.mxu0 0.0
    %689 = vmatprep.subr.mxu0 0.0
    %690 = vmatpush1.msra.mxu0 0.0
    %691 = vmatprep.subr.mxu0 0.0
    %692 = vmatpush1.msra.mxu0 0.0
    %693 = vmatprep.subr.mxu0 0.0
    %694 = vmatpush1.msra.mxu0 0.0
    %695 = vmatprep.subr.mxu0 0.0
    %696 = vmatpush1.msra.mxu0 0.0
    %697 = vmatprep.subr.mxu0 0.0
    %698 = vmatpush1.msra.mxu0 0.0
    %699 = vmatprep.subr.mxu0 0.0
    %700 = vmatpush1.msra.mxu0 0.0
    %701 = vmatprep.subr.mxu0 0.0
    %702 = vmatpush1.msra.mxu0 0.0
    %703 = vmatprep.subr.mxu0 0.0
    %704 = vmatpush1.msra.mxu0 0.0
    %705 = vmatprep.subr.mxu0 0.0
    %706 = vmatpush1.msra.mxu0 0.0
    %707 = vmatprep.subr.mxu0 0.0
    %708 = vmatpush1.msra.mxu0 0.0
    %709 = vmatprep.subr.mxu0 0.0
    %710 = vmatpush1.msra.mxu0 0.0
    %711 = vmatprep.subr.mxu0 0.0
    %712 = vmatpush1.msra.mxu0 0.0
    %713 = vmatprep.subr.mxu0 0.0
    %714 = vmatpush1.msra.mxu0 0.0
    %715 = vmatprep.subr.mxu0 0.0
    %716 = vmatpush1.msra.mxu0 0.0
    %717 = vmatprep.subr.mxu0 0.0
    %718 = vmatpush1.msra.mxu0 0.0
    %719 = vmatprep.subr.mxu0 0.0
    %720 = vmatpush1.msra.mxu0 0.0
    %721 = vmatprep.subr.mxu0 0.0
    %722 = vmatpush1.msra.mxu0 0.0
    %723 = vmatprep.mubr.f32.mxu0 0.0
    %724 = vmatmul.mubr.f32.gmra.mrb[0].mxu0 %v657
    %v725 = vpop.f32.mrb[0].mxu0
    %v726 = vadd.f32 0.0, %v725
    %v727 = vpop.f32.mrb[0].mxu0
    %728 = vdwg.mxu0
    %vm729 = vcmask 31744
    %v731 = vsel %vm729, %v558, 0
    %vm733 = vcmask 1043456
    %v735 = vsel %vm733, %v726, 0
    %737 = vmatprep.subr.mxu0 0.0
    %738 = vmatpush1.msra.mxu0 %v735
    %739 = vmatprep.subr.mxu0 0.0
    %740 = vmatpush1.msra.mxu0 0.0
    %741 = vmatprep.subr.mxu0 0.0
    %742 = vmatpush1.msra.mxu0 0.0
    %743 = vmatprep.subr.mxu0 0.0
    %744 = vmatpush1.msra.mxu0 0.0
    %745 = vmatprep.subr.mxu0 0.0
    %746 = vmatpush1.msra.mxu0 0.0
    %747 = vmatprep.subr.mxu0 0.0
    %748 = vmatpush1.msra.mxu0 0.0
    %749 = vmatprep.subr.mxu0 0.0
    %750 = vmatpush1.msra.mxu0 0.0
    %751 = vmatprep.subr.mxu0 0.0
    %752 = vmatpush1.msra.mxu0 0.0
    %753 = vmatprep.subr.mxu0 0.0
    %754 = vmatpush1.msra.mxu0 0.0
    %755 = vmatprep.subr.mxu0 0.0
    %756 = vmatpush1.msra.mxu0 0.0
    %757 = vmatprep.subr.mxu0 0.0
    %758 = vmatpush1.msra.mxu0 0.0
    %759 = vmatprep.subr.mxu0 0.0
    %760 = vmatpush1.msra.mxu0 0.0
    %761 = vmatprep.subr.mxu0 0.0
    %762 = vmatpush1.msra.mxu0 0.0
    %763 = vmatprep.subr.mxu0 0.0
    %764 = vmatpush1.msra.mxu0 0.0
    %765 = vmatprep.subr.mxu0 0.0
    %766 = vmatpush1.msra.mxu0 0.0
    %767 = vmatprep.subr.mxu0 0.0
    %768 = vmatpush1.msra.mxu0 0.0
    %769 = vmatprep.subr.mxu0 0.0
    %770 = vmatpush1.msra.mxu0 0.0
    %771 = vmatprep.subr.mxu0 0.0
    %772 = vmatpush1.msra.mxu0 0.0
    %773 = vmatprep.subr.mxu0 0.0
    %774 = vmatpush1.msra.mxu0 0.0
    %775 = vmatprep.subr.mxu0 0.0
    %776 = vmatpush1.msra.mxu0 0.0
    %777 = vmatprep.subr.mxu0 0.0
    %778 = vmatpush1.msra.mxu0 0.0
    %779 = vmatprep.subr.mxu0 0.0
    %780 = vmatpush1.msra.mxu0 0.0
    %781 = vmatprep.subr.mxu0 0.0
    %782 = vmatpush1.msra.mxu0 0.0
    %783 = vmatprep.subr.mxu0 0.0
    %784 = vmatpush1.msra.mxu0 0.0
    %785 = vmatprep.subr.mxu0 0.0
    %786 = vmatpush1.msra.mxu0 0.0
    %787 = vmatprep.subr.mxu0 0.0
    %788 = vmatpush1.msra.mxu0 0.0
    %789 = vmatprep.subr.mxu0 0.0
    %790 = vmatpush1.msra.mxu0 0.0
    %791 = vmatprep.subr.mxu0 0.0
    %792 = vmatpush1.msra.mxu0 0.0
    %793 = vmatprep.subr.mxu0 0.0
    %794 = vmatpush1.msra.mxu0 0.0
    %795 = vmatprep.subr.mxu0 0.0
    %796 = vmatpush1.msra.mxu0 0.0
    %797 = vmatprep.subr.mxu0 0.0
    %798 = vmatpush1.msra.mxu0 0.0
    %799 = vmatprep.subr.mxu0 0.0
    %800 = vmatpush1.msra.mxu0 0.0
    %801 = vmatprep.mubr.f32.mxu0 0.0
    %802 = vmatmul.mubr.f32.gmra.mrb[0].mxu0 %v731
    %v803 = vpop.f32.mrb[0].mxu0
    %v804 = vadd.f32 0.0, %v803
    %v805 = vpop.f32.mrb[0].mxu0
    %806 = vdwg.mxu0
    %v807 = vsub.f32 %v650, %v804
    %v808 = vmul.f32 %v807, %v807
    %809 = vmatprep.subr.mxu0 0.0
    %810 = vmatpush1.msra.mxu0 %v808
    %811 = vmatprep.subr.mxu0 0.0
    %812 = vmatpush1.msra.mxu0 0.0
    %813 = vmatprep.subr.mxu0 0.0
    %814 = vmatpush1.msra.mxu0 0.0
    %815 = vmatprep.subr.mxu0 0.0
    %816 = vmatpush1.msra.mxu0 0.0
    %817 = vmatprep.subr.mxu0 0.0
    %818 = vmatpush1.msra.mxu0 0.0
    %819 = vmatprep.subr.mxu0 0.0
    %820 = vmatpush1.msra.mxu0 0.0
    %821 = vmatprep.subr.mxu0 0.0
    %822 = vmatpush1.msra.mxu0 0.0
    %823 = vmatprep.subr.mxu0 0.0
    %824 = vmatpush1.msra.mxu0 0.0
    %825 = vmatprep.subr.mxu0 0.0
    %826 = vmatpush1.msra.mxu0 0.0
    %827 = vmatprep.subr.mxu0 0.0
    %828 = vmatpush1.msra.mxu0 0.0
    %829 = vmatprep.subr.mxu0 0.0
    %830 = vmatpush1.msra.mxu0 0.0
    %831 = vmatprep.subr.mxu0 0.0
    %832 = vmatpush1.msra.mxu0 0.0
    %833 = vmatprep.subr.mxu0 0.0
    %834 = vmatpush1.msra.mxu0 0.0
    %835 = vmatprep.subr.mxu0 0.0
    %836 = vmatpush1.msra.mxu0 0.0
    %837 = vmatprep.subr.mxu0 0.0
    %838 = vmatpush1.msra.mxu0 0.0
    %839 = vmatprep.subr.mxu0 0.0
    %840 = vmatpush1.msra.mxu0 0.0
    %841 = vmatprep.subr.mxu0 0.0
    %842 = vmatpush1.msra.mxu0 0.0
    %843 = vmatprep.subr.mxu0 0.0
    %844 = vmatpush1.msra.mxu0 0.0
    %845 = vmatprep.subr.mxu0 0.0
    %846 = vmatpush1.msra.mxu0 0.0
    %847 = vmatprep.subr.mxu0 0.0
    %848 = vmatpush1.msra.mxu0 0.0
    %849 = vmatprep.subr.mxu0 0.0
    %850 = vmatpush1.msra.mxu0 0.0
    %851 = vmatprep.subr.mxu0 0.0
    %852 = vmatpush1.msra.mxu0 0.0
    %853 = vmatprep.subr.mxu0 0.0
    %854 = vmatpush1.msra.mxu0 0.0
    %855 = vmatprep.subr.mxu0 0.0
    %856 = vmatpush1.msra.mxu0 0.0
    %857 = vmatprep.subr.mxu0 0.0
    %858 = vmatpush1.msra.mxu0 0.0
    %859 = vmatprep.subr.mxu0 0.0
    %860 = vmatpush1.msra.mxu0 0.0
    %861 = vmatprep.subr.mxu0 0.0
    %862 = vmatpush1.msra.mxu0 0.0
    %863 = vmatprep.subr.mxu0 0.0
    %864 = vmatpush1.msra.mxu0 0.0
    %865 = vmatprep.subr.mxu0 0.0
    %866 = vmatpush1.msra.mxu0 0.0
    %867 = vmatprep.subr.mxu0 0.0
    %868 = vmatpush1.msra.mxu0 0.0
    %869 = vmatprep.subr.mxu0 0.0
    %870 = vmatpush1.msra.mxu0 0.0
    %871 = vmatprep.subr.mxu0 0.0
    %872 = vmatpush1.msra.mxu0 0.0
    %873 = vmatprep.mubr.f32.mxu0 0.0
    %874 = vmatmul.mubr.f32.gmra.mrb[0].mxu0 %v657
    %v875 = vpop.f32.mrb[0].mxu0
    %v876 = vadd.f32 0.0, %v875
    %v877 = vpop.f32.mrb[0].mxu0
    %878 = vdwg.mxu0
    %v880 = vsel %vm733, %v876, 0
    %882 = vmatprep.subr.mxu0 0.0
    %883 = vmatpush1.msra.mxu0 %v880
    %884 = vmatprep.subr.mxu0 0.0
    %885 = vmatpush1.msra.mxu0 0.0
    %886 = vmatprep.subr.mxu0 0.0
    %887 = vmatpush1.msra.mxu0 0.0
    %888 = vmatprep.subr.mxu0 0.0
    %889 = vmatpush1.msra.mxu0 0.0
    %890 = vmatprep.subr.mxu0 0.0
    %891 = vmatpush1.msra.mxu0 0.0
    %892 = vmatprep.subr.mxu0 0.0
    %893 = vmatpush1.msra.mxu0 0.0
    %894 = vmatprep.subr.mxu0 0.0
    %895 = vmatpush1.msra.mxu0 0.0
    %896 = vmatprep.subr.mxu0 0.0
    %897 = vmatpush1.msra.mxu0 0.0
    %898 = vmatprep.subr.mxu0 0.0
    %899 = vmatpush1.msra.mxu0 0.0
    %900 = vmatprep.subr.mxu0 0.0
    %901 = vmatpush1.msra.mxu0 0.0
    %902 = vmatprep.subr.mxu0 0.0
    %903 = vmatpush1.msra.mxu0 0.0
    %904 = vmatprep.subr.mxu0 0.0
    %905 = vmatpush1.msra.mxu0 0.0
    %906 = vmatprep.subr.mxu0 0.0
    %907 = vmatpush1.msra.mxu0 0.0
    %908 = vmatprep.subr.mxu0 0.0
    %909 = vmatpush1.msra.mxu0 0.0
    %910 = vmatprep.subr.mxu0 0.0
    %911 = vmatpush1.msra.mxu0 0.0
    %912 = vmatprep.subr.mxu0 0.0
    %913 = vmatpush1.msra.mxu0 0.0
    %914 = vmatprep.subr.mxu0 0.0
    %915 = vmatpush1.msra.mxu0 0.0
    %916 = vmatprep.subr.mxu0 0.0
    %917 = vmatpush1.msra.mxu0 0.0
    %918 = vmatprep.subr.mxu0 0.0
    %919 = vmatpush1.msra.mxu0 0.0
    %920 = vmatprep.subr.mxu0 0.0
    %921 = vmatpush1.msra.mxu0 0.0
    %922 = vmatprep.subr.mxu0 0.0
    %923 = vmatpush1.msra.mxu0 0.0
    %924 = vmatprep.subr.mxu0 0.0
    %925 = vmatpush1.msra.mxu0 0.0
    %926 = vmatprep.subr.mxu0 0.0
    %927 = vmatpush1.msra.mxu0 0.0
    %928 = vmatprep.subr.mxu0 0.0
    %929 = vmatpush1.msra.mxu0 0.0
    %930 = vmatprep.subr.mxu0 0.0
    %931 = vmatpush1.msra.mxu0 0.0
    %932 = vmatprep.subr.mxu0 0.0
    %933 = vmatpush1.msra.mxu0 0.0
    %934 = vmatprep.subr.mxu0 0.0
    %935 = vmatpush1.msra.mxu0 0.0
    %936 = vmatprep.subr.mxu0 0.0
    %937 = vmatpush1.msra.mxu0 0.0
    %938 = vmatprep.subr.mxu0 0.0
    %939 = vmatpush1.msra.mxu0 0.0
    %940 = vmatprep.subr.mxu0 0.0
    %941 = vmatpush1.msra.mxu0 0.0
    %942 = vmatprep.subr.mxu0 0.0
    %943 = vmatpush1.msra.mxu0 0.0
    %944 = vmatprep.subr.mxu0 0.0
    %945 = vmatpush1.msra.mxu0 0.0
    %946 = vmatprep.mubr.f32.mxu0 0.0
    %947 = vmatmul.mubr.f32.gmra.mrb[0].mxu0 %v731
    %v948 = vpop.f32.mrb[0].mxu0
    %v949 = vadd.f32 1e-05, %v948
    %v950 = vpop.f32.mrb[0].mxu0
    %951 = vdwg.mxu0
    %v952 = vrsqrt.pop %v949
    %v953 = vmul.f32 %v807, %v952
    %v954 = vmul.f32 %v953, %v653
    %v955 = vadd.f32 %v954, %v654
    %v956 = vmax.f32 %v955, 0.0
    %v957 = vld [vmem:[%s16] sm:$0xff]
    %v958 = vld [vmem:[%s16 + $0x8] sm:$0xff]
    %v959 = vld [vmem:[%s16 + $0x10] sm:$0xff]
    %v960 = vld [vmem:[%s16 + $0x18] sm:$0xff]
    %v961 = vld [vmem:[%s16 + $0x20] sm:$0xff]
    %v962 = vld [vmem:[%s16 + $0x28] sm:$0xff]
    %v963 = vld [vmem:[%s16 + $0x30] sm:$0xff]
    %v964 = vld [vmem:[%s16 + $0x38] sm:$0xff]
    %v965 = vld [vmem:[%s16 + $0x40] sm:$0xff]
    %v966 = vld [vmem:[%s16 + $0x48] sm:$0xff]
    %v967 = vld [vmem:[%s16 + $0x50] sm:$0xff]
    %v968 = vld [vmem:[%s16 + $0x58] sm:$0xff]
    %v969 = vld [vmem:[%s16 + $0x60] sm:$0xff]
    %v970 = vld [vmem:[%s16 + $0x68] sm:$0xff]
    %v971 = vld [vmem:[%s16 + $0x70] sm:$0xff]
    %v972 = vld [vmem:[%s16 + $0x78] sm:$0xff]
    %v973 = vld [vmem:[%s17] sm:$0x1]
    %v975 = vlaneseq
    %v976 = vshrl.u32 %v975, 7
    %v977 = vsub.s32 0, %v976
    %v978 = vrot.slane %v973, %v977
    %980 = vmatprep.subr.mxu0 0.0
    %981 = vmatpush1.msra.mxu0 %v957
    %982 = vmatprep.subr.mxu0 0.0
    %983 = vmatpush1.msra.mxu0 %v958
    %984 = vmatprep.subr.mxu0 0.0
    %985 = vmatpush1.msra.mxu0 %v959
    %986 = vmatprep.subr.mxu0 0.0
    %987 = vmatpush1.msra.mxu0 %v960
    %988 = vmatprep.subr.mxu0 0.0
    %989 = vmatpush1.msra.mxu0 %v961
    %990 = vmatprep.subr.mxu0 0.0
    %991 = vmatpush1.msra.mxu0 %v962
    %992 = vmatprep.subr.mxu0 0.0
    %993 = vmatpush1.msra.mxu0 %v963
    %994 = vmatprep.subr.mxu0 0.0
    %995 = vmatpush1.msra.mxu0 %v964
    %996 = vmatprep.subr.mxu0 0.0
    %997 = vmatpush1.msra.mxu0 %v965
    %998 = vmatprep.subr.mxu0 0.0
    %999 = vmatpush1.msra.mxu0 %v966
    %1000 = vmatprep.subr.mxu0 0.0
    %1001 = vmatpush1.msra.mxu0 %v967
    %1002 = vmatprep.subr.mxu0 0.0
    %1003 = vmatpush1.msra.mxu0 %v968
    %1004 = vmatprep.subr.mxu0 0.0
    %1005 = vmatpush1.msra.mxu0 %v969
    %1006 = vmatprep.subr.mxu0 0.0
    %1007 = vmatpush1.msra.mxu0 %v970
    %1008 = vmatprep.subr.mxu0 0.0
    %1009 = vmatpush1.msra.mxu0 %v971
    %1010 = vmatprep.subr.mxu0 0.0
    %1011 = vmatpush1.msra.mxu0 %v972
    %1012 = vmatprep.subr.mxu0 0.0
    %1013 = vmatpush1.msra.mxu0 0.0
    %1014 = vmatprep.subr.mxu0 0.0
    %1015 = vmatpush1.msra.mxu0 0.0
    %1016 = vmatprep.subr.mxu0 0.0
    %1017 = vmatpush1.msra.mxu0 0.0
    %1018 = vmatprep.subr.mxu0 0.0
    %1019 = vmatpush1.msra.mxu0 0.0
    %1020 = vmatprep.subr.mxu0 0.0
    %1021 = vmatpush1.msra.mxu0 0.0
    %1022 = vmatprep.subr.mxu0 0.0
    %1023 = vmatpush1.msra.mxu0 0.0
    %1024 = vmatprep.subr.mxu0 0.0
    %1025 = vmatpush1.msra.mxu0 0.0
    %1026 = vmatprep.subr.mxu0 0.0
    %1027 = vmatpush1.msra.mxu0 0.0
    %1028 = vmatprep.subr.mxu0 0.0
    %1029 = vmatpush1.msra.mxu0 0.0
    %1030 = vmatprep.subr.mxu0 0.0
    %1031 = vmatpush1.msra.mxu0 0.0
    %1032 = vmatprep.subr.mxu0 0.0
    %1033 = vmatpush1.msra.mxu0 0.0
    %1034 = vmatprep.subr.mxu0 0.0
    %1035 = vmatpush1.msra.mxu0 0.0
    %1036 = vmatprep.subr.mxu0 0.0
    %1037 = vmatpush1.msra.mxu0 0.0
    %1038 = vmatprep.subr.mxu0 0.0
    %1039 = vmatpush1.msra.mxu0 0.0
    %1040 = vmatprep.subr.mxu0 0.0
    %1041 = vmatpush1.msra.mxu0 0.0
    %1042 = vmatprep.subr.mxu0 0.0
    %1043 = vmatpush1.msra.mxu0 0.0
    %1044 = vmatprep.mubr.f32.mxu0 0.0
    %1045 = vmatmul.mubr.f32.gmra.mrb[0].mxu0 %v956
    %v1046 = vpop.f32.mrb[0].mxu0
    %v1047 = vadd.f32 %v978, %v1046
    %v1048 = vpop.f32.mrb[0].mxu0
    %1049 = vdwg.mxu0
    %v1050 = vld [vmem:[%s18] sm:$0xff]
    %v1051 = vld [vmem:[%s19] sm:$0xff]
    %1052 = vmatprep.subr.mxu0 0.0
    %1053 = vmatpush1.msra.mxu0 %v1047
    %1054 = vmatprep.subr.mxu0 0.0
    %1055 = vmatpush1.msra.mxu0 0.0
    %1056 = vmatprep.subr.mxu0 0.0
    %1057 = vmatpush1.msra.mxu0 0.0
    %1058 = vmatprep.subr.mxu0 0.0
    %1059 = vmatpush1.msra.mxu0 0.0
    %1060 = vmatprep.subr.mxu0 0.0
    %1061 = vmatpush1.msra.mxu0 0.0
    %1062 = vmatprep.subr.mxu0 0.0
    %1063 = vmatpush1.msra.mxu0 0.0
    %1064 = vmatprep.subr.mxu0 0.0
    %1065 = vmatpush1.msra.mxu0 0.0
    %1066 = vmatprep.subr.mxu0 0.0
    %1067 = vmatpush1.msra.mxu0 0.0
    %1068 = vmatprep.subr.mxu0 0.0
    %1069 = vmatpush1.msra.mxu0 0.0
    %1070 = vmatprep.subr.mxu0 0.0
    %1071 = vmatpush1.msra.mxu0 0.0
    %1072 = vmatprep.subr.mxu0 0.0
    %1073 = vmatpush1.msra.mxu0 0.0
    %1074 = vmatprep.subr.mxu0 0.0
    %1075 = vmatpush1.msra.mxu0 0.0
    %1076 = vmatprep.subr.mxu0 0.0
    %1077 = vmatpush1.msra.mxu0 0.0
    %1078 = vmatprep.subr.mxu0 0.0
    %1079 = vmatpush1.msra.mxu0 0.0
    %1080 = vmatprep.subr.mxu0 0.0
    %1081 = vmatpush1.msra.mxu0 0.0
    %1082 = vmatprep.subr.mxu0 0.0
    %1083 = vmatpush1.msra.mxu0 0.0
    %1084 = vmatprep.subr.mxu0 0.0
    %1085 = vmatpush1.msra.mxu0 0.0
    %1086 = vmatprep.subr.mxu0 0.0
    %1087 = vmatpush1.msra.mxu0 0.0
    %1088 = vmatprep.subr.mxu0 0.0
    %1089 = vmatpush1.msra.mxu0 0.0
    %1090 = vmatprep.subr.mxu0 0.0
    %1091 = vmatpush1.msra.mxu0 0.0
    %1092 = vmatprep.subr.mxu0 0.0
    %1093 = vmatpush1.msra.mxu0 0.0
    %1094 = vmatprep.subr.mxu0 0.0
    %1095 = vmatpush1.msra.mxu0 0.0
    %1096 = vmatprep.subr.mxu0 0.0
    %1097 = vmatpush1.msra.mxu0 0.0
    %1098 = vmatprep.subr.mxu0 0.0
    %1099 = vmatpush1.msra.mxu0 0.0
    %1100 = vmatprep.subr.mxu0 0.0
    %1101 = vmatpush1.msra.mxu0 0.0
    %1102 = vmatprep.subr.mxu0 0.0
    %1103 = vmatpush1.msra.mxu0 0.0
    %1104 = vmatprep.subr.mxu0 0.0
    %1105 = vmatpush1.msra.mxu0 0.0
    %1106 = vmatprep.subr.mxu0 0.0
    %1107 = vmatpush1.msra.mxu0 0.0
    %1108 = vmatprep.subr.mxu0 0.0
    %1109 = vmatpush1.msra.mxu0 0.0
    %1110 = vmatprep.subr.mxu0 0.0
    %1111 = vmatpush1.msra.mxu0 0.0
    %1112 = vmatprep.subr.mxu0 0.0
    %1113 = vmatpush1.msra.mxu0 0.0
    %1114 = vmatprep.subr.mxu0 0.0
    %1115 = vmatpush1.msra.mxu0 0.0
    %1116 = vmatprep.mubr.f32.mxu0 0.0
    %1117 = vmatmul.mubr.f32.gmra.mrb[0].mxu0 %v657
    %v1118 = vpop.f32.mrb[0].mxu0
    %v1119 = vadd.f32 0.0, %v1118
    %v1120 = vpop.f32.mrb[0].mxu0
    %1121 = vdwg.mxu0
    %v1123 = vsel %vm733, %v1119, 0
    %1125 = vmatprep.subr.mxu0 0.0
    %1126 = vmatpush1.msra.mxu0 %v1123
    %1127 = vmatprep.subr.mxu0 0.0
    %1128 = vmatpush1.msra.mxu0 0.0
    %1129 = vmatprep.subr.mxu0 0.0
    %1130 = vmatpush1.msra.mxu0 0.0
    %1131 = vmatprep.subr.mxu0 0.0
    %1132 = vmatpush1.msra.mxu0 0.0
    %1133 = vmatprep.subr.mxu0 0.0
    %1134 = vmatpush1.msra.mxu0 0.0
    %1135 = vmatprep.subr.mxu0 0.0
    %1136 = vmatpush1.msra.mxu0 0.0
    %1137 = vmatprep.subr.mxu0 0.0
    %1138 = vmatpush1.msra.mxu0 0.0
    %1139 = vmatprep.subr.mxu0 0.0
    %1140 = vmatpush1.msra.mxu0 0.0
    %1141 = vmatprep.subr.mxu0 0.0
    %1142 = vmatpush1.msra.mxu0 0.0
    %1143 = vmatprep.subr.mxu0 0.0
    %1144 = vmatpush1.msra.mxu0 0.0
    %1145 = vmatprep.subr.mxu0 0.0
    %1146 = vmatpush1.msra.mxu0 0.0
    %1147 = vmatprep.subr.mxu0 0.0
    %1148 = vmatpush1.msra.mxu0 0.0
    %1149 = vmatprep.subr.mxu0 0.0
    %1150 = vmatpush1.msra.mxu0 0.0
    %1151 = vmatprep.subr.mxu0 0.0
    %1152 = vmatpush1.msra.mxu0 0.0
    %1153 = vmatprep.subr.mxu0 0.0
    %1154 = vmatpush1.msra.mxu0 0.0
    %1155 = vmatprep.subr.mxu0 0.0
    %1156 = vmatpush1.msra.mxu0 0.0
    %1157 = vmatprep.subr.mxu0 0.0
    %1158 = vmatpush1.msra.mxu0 0.0
    %1159 = vmatprep.subr.mxu0 0.0
    %1160 = vmatpush1.msra.mxu0 0.0
    %1161 = vmatprep.subr.mxu0 0.0
    %1162 = vmatpush1.msra.mxu0 0.0
    %1163 = vmatprep.subr.mxu0 0.0
    %1164 = vmatpush1.msra.mxu0 0.0
    %1165 = vmatprep.subr.mxu0 0.0
    %1166 = vmatpush1.msra.mxu0 0.0
    %1167 = vmatprep.subr.mxu0 0.0
    %1168 = vmatpush1.msra.mxu0 0.0
    %1169 = vmatprep.subr.mxu0 0.0
    %1170 = vmatpush1.msra.mxu0 0.0
    %1171 = vmatprep.subr.mxu0 0.0
    %1172 = vmatpush1.msra.mxu0 0.0
    %1173 = vmatprep.subr.mxu0 0.0
    %1174 = vmatpush1.msra.mxu0 0.0
    %1175 = vmatprep.subr.mxu0 0.0
    %1176 = vmatpush1.msra.mxu0 0.0
    %1177 = vmatprep.subr.mxu0 0.0
    %1178 = vmatpush1.msra.mxu0 0.0
    %1179 = vmatprep.subr.mxu0 0.0
    %1180 = vmatpush1.msra.mxu0 0.0
    %1181 = vmatprep.subr.mxu0 0.0
    %1182 = vmatpush1.msra.mxu0 0.0
    %1183 = vmatprep.subr.mxu0 0.0
    %1184 = vmatpush1.msra.mxu0 0.0
    %1185 = vmatprep.subr.mxu0 0.0
    %1186 = vmatpush1.msra.mxu0 0.0
    %1187 = vmatprep.subr.mxu0 0.0
    %1188 = vmatpush1.msra.mxu0 0.0
    %1189 = vmatprep.mubr.f32.mxu0 0.0
    %1190 = vmatmul.mubr.f32.gmra.mrb[0].mxu0 %v731
    %v1191 = vpop.f32.mrb[0].mxu0
    %v1192 = vadd.f32 0.0, %v1191
    %v1193 = vpop.f32.mrb[0].mxu0
    %1194 = vdwg.mxu0
    %v1195 = vsub.f32 %v1047, %v1192
    %v1196 = vmul.f32 %v1195, %v1195
    %1197 = vmatprep.subr.mxu0 0.0
    %1198 = vmatpush1.msra.mxu0 %v1196
    %1199 = vmatprep.subr.mxu0 0.0
    %1200 = vmatpush1.msra.mxu0 0.0
    %1201 = vmatprep.subr.mxu0 0.0
    %1202 = vmatpush1.msra.mxu0 0.0
    %1203 = vmatprep.subr.mxu0 0.0
    %1204 = vmatpush1.msra.mxu0 0.0
    %1205 = vmatprep.subr.mxu0 0.0
    %1206 = vmatpush1.msra.mxu0 0.0
    %1207 = vmatprep.subr.mxu0 0.0
    %1208 = vmatpush1.msra.mxu0 0.0
    %1209 = vmatprep.subr.mxu0 0.0
    %1210 = vmatpush1.msra.mxu0 0.0
    %1211 = vmatprep.subr.mxu0 0.0
    %1212 = vmatpush1.msra.mxu0 0.0
    %1213 = vmatprep.subr.mxu0 0.0
    %1214 = vmatpush1.msra.mxu0 0.0
    %1215 = vmatprep.subr.mxu0 0.0
    %1216 = vmatpush1.msra.mxu0 0.0
    %1217 = vmatprep.subr.mxu0 0.0
    %1218 = vmatpush1.msra.mxu0 0.0
    %1219 = vmatprep.subr.mxu0 0.0
    %1220 = vmatpush1.msra.mxu0 0.0
    %1221 = vmatprep.subr.mxu0 0.0
    %1222 = vmatpush1.msra.mxu0 0.0
    %1223 = vmatprep.subr.mxu0 0.0
    %1224 = vmatpush1.msra.mxu0 0.0
    %1225 = vmatprep.subr.mxu0 0.0
    %1226 = vmatpush1.msra.mxu0 0.0
    %1227 = vmatprep.subr.mxu0 0.0
    %1228 = vmatpush1.msra.mxu0 0.0
    %1229 = vmatprep.subr.mxu0 0.0
    %1230 = vmatpush1.msra.mxu0 0.0
    %1231 = vmatprep.subr.mxu0 0.0
    %1232 = vmatpush1.msra.mxu0 0.0
    %1233 = vmatprep.subr.mxu0 0.0
    %1234 = vmatpush1.msra.mxu0 0.0
    %1235 = vmatprep.subr.mxu0 0.0
    %1236 = vmatpush1.msra.mxu0 0.0
    %1237 = vmatprep.subr.mxu0 0.0
    %1238 = vmatpush1.msra.mxu0 0.0
    %1239 = vmatprep.subr.mxu0 0.0
    %1240 = vmatpush1.msra.mxu0 0.0
    %1241 = vmatprep.subr.mxu0 0.0
    %1242 = vmatpush1.msra.mxu0 0.0
    %1243 = vmatprep.subr.mxu0 0.0
    %1244 = vmatpush1.msra.mxu0 0.0
    %1245 = vmatprep.subr.mxu0 0.0
    %1246 = vmatpush1.msra.mxu0 0.0
    %1247 = vmatprep.subr.mxu0 0.0
    %1248 = vmatpush1.msra.mxu0 0.0
    %1249 = vmatprep.subr.mxu0 0.0
    %1250 = vmatpush1.msra.mxu0 0.0
    %1251 = vmatprep.subr.mxu0 0.0
    %1252 = vmatpush1.msra.mxu0 0.0
    %1253 = vmatprep.subr.mxu0 0.0
    %1254 = vmatpush1.msra.mxu0 0.0
    %1255 = vmatprep.subr.mxu0 0.0
    %1256 = vmatpush1.msra.mxu0 0.0
    %1257 = vmatprep.subr.mxu0 0.0
    %1258 = vmatpush1.msra.mxu0 0.0
    %1259 = vmatprep.subr.mxu0 0.0
    %1260 = vmatpush1.msra.mxu0 0.0
    %1261 = vmatprep.mubr.f32.mxu0 0.0
    %1262 = vmatmul.mubr.f32.gmra.mrb[0].mxu0 %v657
    %v1263 = vpop.f32.mrb[0].mxu0
    %v1264 = vadd.f32 0.0, %v1263
    %v1265 = vpop.f32.mrb[0].mxu0
    %1266 = vdwg.mxu0
    %v1268 = vsel %vm733, %v1264, 0
    %1270 = vmatprep.subr.mxu0 0.0
    %1271 = vmatpush1.msra.mxu0 %v1268
    %1272 = vmatprep.subr.mxu0 0.0
    %1273 = vmatpush1.msra.mxu0 0.0
    %1274 = vmatprep.subr.mxu0 0.0
    %1275 = vmatpush1.msra.mxu0 0.0
    %1276 = vmatprep.subr.mxu0 0.0
    %1277 = vmatpush1.msra.mxu0 0.0
    %1278 = vmatprep.subr.mxu0 0.0
    %1279 = vmatpush1.msra.mxu0 0.0
    %1280 = vmatprep.subr.mxu0 0.0
    %1281 = vmatpush1.msra.mxu0 0.0
    %1282 = vmatprep.subr.mxu0 0.0
    %1283 = vmatpush1.msra.mxu0 0.0
    %1284 = vmatprep.subr.mxu0 0.0
    %1285 = vmatpush1.msra.mxu0 0.0
    %1286 = vmatprep.subr.mxu0 0.0
    %1287 = vmatpush1.msra.mxu0 0.0
    %1288 = vmatprep.subr.mxu0 0.0
    %1289 = vmatpush1.msra.mxu0 0.0
    %1290 = vmatprep.subr.mxu0 0.0
    %1291 = vmatpush1.msra.mxu0 0.0
    %1292 = vmatprep.subr.mxu0 0.0
    %1293 = vmatpush1.msra.mxu0 0.0
    %1294 = vmatprep.subr.mxu0 0.0
    %1295 = vmatpush1.msra.mxu0 0.0
    %1296 = vmatprep.subr.mxu0 0.0
    %1297 = vmatpush1.msra.mxu0 0.0
    %1298 = vmatprep.subr.mxu0 0.0
    %1299 = vmatpush1.msra.mxu0 0.0
    %1300 = vmatprep.subr.mxu0 0.0
    %1301 = vmatpush1.msra.mxu0 0.0
    %1302 = vmatprep.subr.mxu0 0.0
    %1303 = vmatpush1.msra.mxu0 0.0
    %1304 = vmatprep.subr.mxu0 0.0
    %1305 = vmatpush1.msra.mxu0 0.0
    %1306 = vmatprep.subr.mxu0 0.0
    %1307 = vmatpush1.msra.mxu0 0.0
    %1308 = vmatprep.subr.mxu0 0.0
    %1309 = vmatpush1.msra.mxu0 0.0
    %1310 = vmatprep.subr.mxu0 0.0
    %1311 = vmatpush1.msra.mxu0 0.0
    %1312 = vmatprep.subr.mxu0 0.0
    %1313 = vmatpush1.msra.mxu0 0.0
    %1314 = vmatprep.subr.mxu0 0.0
    %1315 = vmatpush1.msra.mxu0 0.0
    %1316 = vmatprep.subr.mxu0 0.0
    %1317 = vmatpush1.msra.mxu0 0.0
    %1318 = vmatprep.subr.mxu0 0.0
    %1319 = vmatpush1.msra.mxu0 0.0
    %1320 = vmatprep.subr.mxu0 0.0
    %1321 = vmatpush1.msra.mxu0 0.0
    %1322 = vmatprep.subr.mxu0 0.0
    %1323 = vmatpush1.msra.mxu0 0.0
    %1324 = vmatprep.subr.mxu0 0.0
    %1325 = vmatpush1.msra.mxu0 0.0
    %1326 = vmatprep.subr.mxu0 0.0
    %1327 = vmatpush1.msra.mxu0 0.0
    %1328 = vmatprep.subr.mxu0 0.0
    %1329 = vmatpush1.msra.mxu0 0.0
    %1330 = vmatprep.subr.mxu0 0.0
    %1331 = vmatpush1.msra.mxu0 0.0
    %1332 = vmatprep.subr.mxu0 0.0
    %1333 = vmatpush1.msra.mxu0 0.0
    %1334 = vmatprep.mubr.f32.mxu0 0.0
    %1335 = vmatmul.mubr.f32.gmra.mrb[0].mxu0 %v731
    %v1336 = vpop.f32.mrb[0].mxu0
    %v1337 = vadd.f32 1e-05, %v1336
    %v1338 = vpop.f32.mrb[0].mxu0
    %1339 = vdwg.mxu0
    %v1340 = vrsqrt.pop %v1337
    %v1341 = vmul.f32 %v1195, %v1340
    %v1342 = vmul.f32 %v1341, %v1050
    %v1343 = vadd.f32 %v1342, %v1051
    %v1344 = vmax.f32 %v1343, 0.0
    %v1345 = vld [vmem:[%s2] sm:$0xff]
    %v1347 = vsel %vm137, %v1345, 0
    %1349 = vmatprep.subr.mxu0 0.0
    %1350 = vmatpush1.msra.mxu0 %v553
    %1351 = vmatprep.subr.mxu0 0.0
    %1352 = vmatpush1.msra.mxu0 %v554
    %1353 = vmatprep.subr.mxu0 0.0
    %1354 = vmatpush1.msra.mxu0 %v555
    %1355 = vmatprep.subr.mxu0 0.0
    %1356 = vmatpush1.msra.mxu0 %v556
    %1357 = vmatprep.subr.mxu0 0.0
    %1358 = vmatpush1.msra.mxu0 0.0
    %1359 = vmatprep.subr.mxu0 0.0
    %1360 = vmatpush1.msra.mxu0 0.0
    %1361 = vmatprep.subr.mxu0 0.0
    %1362 = vmatpush1.msra.mxu0 0.0
    %1363 = vmatprep.subr.mxu0 0.0
    %1364 = vmatpush1.msra.mxu0 0.0
    %1365 = vmatprep.subr.mxu0 0.0
    %1366 = vmatpush1.msra.mxu0 0.0
    %1367 = vmatprep.subr.mxu0 0.0
    %1368 = vmatpush1.msra.mxu0 0.0
    %1369 = vmatprep.subr.mxu0 0.0
    %1370 = vmatpush1.msra.mxu0 0.0
    %1371 = vmatprep.subr.mxu0 0.0
    %1372 = vmatpush1.msra.mxu0 0.0
    %1373 = vmatprep.subr.mxu0 0.0
    %1374 = vmatpush1.msra.mxu0 0.0
    %1375 = vmatprep.subr.mxu0 0.0
    %1376 = vmatpush1.msra.mxu0 0.0
    %1377 = vmatprep.subr.mxu0 0.0
    %1378 = vmatpush1.msra.mxu0 0.0
    %1379 = vmatprep.subr.mxu0 0.0
    %1380 = vmatpush1.msra.mxu0 0.0
    %1381 = vmatprep.subr.mxu0 0.0
    %1382 = vmatpush1.msra.mxu0 0.0
    %1383 = vmatprep.subr.mxu0 0.0
    %1384 = vmatpush1.msra.mxu0 0.0
    %1385 = vmatprep.subr.mxu0 0.0
    %1386 = vmatpush1.msra.mxu0 0.0
    %1387 = vmatprep.subr.mxu0 0.0
    %1388 = vmatpush1.msra.mxu0 0.0
    %1389 = vmatprep.subr.mxu0 0.0
    %1390 = vmatpush1.msra.mxu0 0.0
    %1391 = vmatprep.subr.mxu0 0.0
    %1392 = vmatpush1.msra.mxu0 0.0
    %1393 = vmatprep.subr.mxu0 0.0
    %1394 = vmatpush1.msra.mxu0 0.0
    %1395 = vmatprep.subr.mxu0 0.0
    %1396 = vmatpush1.msra.mxu0 0.0
    %1397 = vmatprep.subr.mxu0 0.0
    %1398 = vmatpush1.msra.mxu0 0.0
    %1399 = vmatprep.subr.mxu0 0.0
    %1400 = vmatpush1.msra.mxu0 0.0
    %1401 = vmatprep.subr.mxu0 0.0
    %1402 = vmatpush1.msra.mxu0 0.0
    %1403 = vmatprep.subr.mxu0 0.0
    %1404 = vmatpush1.msra.mxu0 0.0
    %1405 = vmatprep.subr.mxu0 0.0
    %1406 = vmatpush1.msra.mxu0 0.0
    %1407 = vmatprep.subr.mxu0 0.0
    %1408 = vmatpush1.msra.mxu0 0.0
    %1409 = vmatprep.subr.mxu0 0.0
    %1410 = vmatpush1.msra.mxu0 0.0
    %1411 = vmatprep.subr.mxu0 0.0
    %1412 = vmatpush1.msra.mxu0 0.0
    %1413 = vmatprep.mubr.f32.mxu0 0.0
    %1414 = vmatmul.mubr.f32.gmra.mrb[0].mxu0 %v1347
    %v1415 = vpop.f32.mrb[0].mxu0
    %v1416 = vadd.f32 %v1344, %v1415
    %v1417 = vpop.f32.mrb[0].mxu0
    %1418 = vdwg.mxu0
    %1419 = vst [vmem:[#allocation2] sm:$0xff] %v1416
    %1420 = vxpose.xlu0.b32.start [1/16] %v1345, 128
    %1421 = vxpose.xlu0.b32.cont [2/16] 0.0, 128
    %1422 = vxpose.xlu0.b32.cont [3/16] 0.0, 128
    %1423 = vxpose.xlu0.b32.cont [4/16] 0.0, 128
    %1424 = vxpose.xlu0.b32.cont [5/16] 0.0, 128
    %1425 = vxpose.xlu0.b32.cont [6/16] 0.0, 128
    %1426 = vxpose.xlu0.b32.cont [7/16] 0.0, 128
    %1427 = vxpose.xlu0.b32.cont [8/16] 0.0, 128
    %1428 = vxpose.xlu0.b32.cont [9/16] 0.0, 128
    %1429 = vxpose.xlu0.b32.cont [10/16] 0.0, 128
    %1430 = vxpose.xlu0.b32.cont [11/16] 0.0, 128
    %1431 = vxpose.xlu0.b32.cont [12/16] 0.0, 128
    %1432 = vxpose.xlu0.b32.cont [13/16] 0.0, 128
    %1433 = vxpose.xlu0.b32.cont [14/16] 0.0, 128
    %1434 = vxpose.xlu0.b32.cont [15/16] 0.0, 128
    %1435 = vxpose.xlu0.b32.end [16/16] 0.0, 128
    %v1436 = vpop.trf.xlu0
    %v1437 = vpop.trf.xlu0
    %v1438 = vpop.trf.xlu0
    %v1439 = vpop.trf.xlu0
    %v1440 = vpop.trf.xlu0
    %v1441 = vpop.trf.xlu0
    %v1442 = vpop.trf.xlu0
    %v1443 = vpop.trf.xlu0
    %v1444 = vpop.trf.xlu0
    %v1445 = vpop.trf.xlu0
    %v1446 = vpop.trf.xlu0
    %v1447 = vpop.trf.xlu0
    %v1448 = vpop.trf.xlu0
    %v1449 = vpop.trf.xlu0
    %v1450 = vpop.trf.xlu0
    %v1451 = vpop.trf.xlu0
    %v1453 = vsel %vm655, %v1436, 0
    %v1456 = vsel %vm655, %v1437, 0
    %v1459 = vsel %vm655, %v1438, 0
    %v1462 = vsel %vm655, %v1439, 0
    %1464 = vmatprep.subr.mxu0 0.0
    %1465 = vmatpush1.msra.mxu0 %v1344
    %1466 = vmatprep.subr.mxu0 0.0
    %1467 = vmatpush1.msra.mxu0 0.0
    %1468 = vmatprep.subr.mxu0 0.0
    %1469 = vmatpush1.msra.mxu0 0.0
    %1470 = vmatprep.subr.mxu0 0.0
    %1471 = vmatpush1.msra.mxu0 0.0
    %1472 = vmatprep.subr.mxu0 0.0
    %1473 = vmatpush1.msra.mxu0 0.0
    %1474 = vmatprep.subr.mxu0 0.0
    %1475 = vmatpush1.msra.mxu0 0.0
    %1476 = vmatprep.subr.mxu0 0.0
    %1477 = vmatpush1.msra.mxu0 0.0
    %1478 = vmatprep.subr.mxu0 0.0
    %1479 = vmatpush1.msra.mxu0 0.0
    %1480 = vmatprep.subr.mxu0 0.0
    %1481 = vmatpush1.msra.mxu0 0.0
    %1482 = vmatprep.subr.mxu0 0.0
    %1483 = vmatpush1.msra.mxu0 0.0
    %1484 = vmatprep.subr.mxu0 0.0
    %1485 = vmatpush1.msra.mxu0 0.0
    %1486 = vmatprep.subr.mxu0 0.0
    %1487 = vmatpush1.msra.mxu0 0.0
    %1488 = vmatprep.subr.mxu0 0.0
    %1489 = vmatpush1.msra.mxu0 0.0
    %1490 = vmatprep.subr.mxu0 0.0
    %1491 = vmatpush1.msra.mxu0 0.0
    %1492 = vmatprep.subr.mxu0 0.0
    %1493 = vmatpush1.msra.mxu0 0.0
    %1494 = vmatprep.subr.mxu0 0.0
    %1495 = vmatpush1.msra.mxu0 0.0
    %1496 = vmatprep.subr.mxu0 0.0
    %1497 = vmatpush1.msra.mxu0 0.0
    %1498 = vmatprep.subr.mxu0 0.0
    %1499 = vmatpush1.msra.mxu0 0.0
    %1500 = vmatprep.subr.mxu0 0.0
    %1501 = vmatpush1.msra.mxu0 0.0
    %1502 = vmatprep.subr.mxu0 0.0
    %1503 = vmatpush1.msra.mxu0 0.0
    %1504 = vmatprep.subr.mxu0 0.0
    %1505 = vmatpush1.msra.mxu0 0.0
    %1506 = vmatprep.subr.mxu0 0.0
    %1507 = vmatpush1.msra.mxu0 0.0
    %1508 = vmatprep.subr.mxu0 0.0
    %1509 = vmatpush1.msra.mxu0 0.0
    %1510 = vmatprep.subr.mxu0 0.0
    %1511 = vmatpush1.msra.mxu0 0.0
    %1512 = vmatprep.subr.mxu0 0.0
    %1513 = vmatpush1.msra.mxu0 0.0
    %1514 = vmatprep.subr.mxu0 0.0
    %1515 = vmatpush1.msra.mxu0 0.0
    %1516 = vmatprep.subr.mxu0 0.0
    %1517 = vmatpush1.msra.mxu0 0.0
    %1518 = vmatprep.subr.mxu0 0.0
    %1519 = vmatpush1.msra.mxu0 0.0
    %1520 = vmatprep.subr.mxu0 0.0
    %1521 = vmatpush1.msra.mxu0 0.0
    %1522 = vmatprep.subr.mxu0 0.0
    %1523 = vmatpush1.msra.mxu0 0.0
    %1524 = vmatprep.subr.mxu0 0.0
    %1525 = vmatpush1.msra.mxu0 0.0
    %1526 = vmatprep.subr.mxu0 0.0
    %1527 = vmatpush1.msra.mxu0 0.0
    %1528 = vmatprep.mubr.f32.mxu0 0.0
    %1529 = vmatmul.mubr.f32.gmra.mrb[0].mxu0 %v1453
    %v1530 = vpop.f32.mrb[0].mxu0
    %v1531 = vadd.f32 0.0, %v1530
    %v1532 = vpop.f32.mrb[0].mxu0
    %1533 = vmatprep.mubr.f32.mxu0 0.0
    %1534 = vmatmul.mubr.f32.gmra.mrb[0].mxu0 %v1456
    %v1535 = vpop.f32.mrb[0].mxu0
    %v1536 = vadd.f32 0.0, %v1535
    %v1537 = vpop.f32.mrb[0].mxu0
    %1538 = vmatprep.mubr.f32.mxu0 0.0
    %1539 = vmatmul.mubr.f32.gmra.mrb[0].mxu0 %v1459
    %v1540 = vpop.f32.mrb[0].mxu0
    %v1541 = vadd.f32 0.0, %v1540
    %v1542 = vpop.f32.mrb[0].mxu0
    %1543 = vmatprep.mubr.f32.mxu0 0.0
    %1544 = vmatmul.mubr.f32.gmra.mrb[0].mxu0 %v1462
    %v1545 = vpop.f32.mrb[0].mxu0
    %v1546 = vadd.f32 0.0, %v1545
    %v1547 = vpop.f32.mrb[0].mxu0
    %1548 = vdwg.mxu0
    %v1549 = vadd.f32 %v553, %v1531
    %v1550 = vadd.f32 %v554, %v1536
    %v1551 = vadd.f32 %v555, %v1541
    %v1552 = vadd.f32 %v556, %v1546
    %1553 = vst [vmem:[%s22] sm:$0xff] %v1549
    %1554 = vst [vmem:[%s22 + $0x8] sm:$0xff] %v1550
    %1555 = vst [vmem:[%s22 + $0x10] sm:$0xff] %v1551
    %1556 = vst [vmem:[%s22 + $0x18] sm:$0xff] %v1552
    // Predicated region
    $region90: #{vgin_encoder_forward.6} parent=1 // pred_check
      _
    $region91: #{vgin_encoder_forward.6} parent=1 // pred_check_branch
      %1558 = sbr.rel (0) target = $region93
    $region92: #{vgin_encoder_forward.6} parent=1 // pred_region
      _
    $region93: #{vgin_encoder_forward.6} parent=1 // pred_fallthru
      _
    // Predicated region
    $region94: #{vgin_encoder_forward.6} parent=1 // pred_check
      _
    $region95: #{vgin_encoder_forward.6} parent=1 // pred_check_branch
      %1560 = sbr.rel (0) target = $region97
    $region96: #{vgin_encoder_forward.6} parent=1 // pred_region
      %s1562 = ssub.s32 128, 128
      %1563 = vsyncadd [#allocation3], %s1562
      %s1565 = sshll.u32 [#allocation2], 4
      %s1566 = int_to_ptr.vmem [resolvable:$true] %s1565
      %1568 = dma.vmem_to_hbm [thread:$0]  %s1566, 128, %s23, [#allocation3]
    $region97: #{vgin_encoder_forward.6} parent=1 // pred_fallthru
      _
    // Predicated region
    $region98: #{vgin_encoder_forward.6} parent=1 // pred_check
      _
    $region99: #{vgin_encoder_forward.6} parent=1 // pred_check_branch
      %1570 = sbr.rel (0) target = $region101
    $region100: #{vgin_encoder_forward.6} parent=1 // pred_region
      _
    $region101: #{vgin_encoder_forward.6} parent=1 // pred_fallthru
      _
    // Predicated region
    $region102: #{vgin_encoder_forward.6} parent=1 // pred_check
      _
    $region103: #{vgin_encoder_forward.6} parent=1 // pred_check_branch
      %1572 = sbr.rel (0) target = $region105
    $region104: #{vgin_encoder_forward.6} parent=1 // pred_region
      %1573 = dma.done [#allocation3], 128
    $region105: #{vgin_encoder_forward.6} parent=1 // pred_fallthru
      _
    %1574 = vsyncpa [#allocation3], 1

</llo_original>
